<compile_context>
chip_gen: v7x
topology: tpu7x:2x2x1
jax: 0.10.0
libtpu: 0.0.40
codegen_flags: <defaults>
</compile_context>

<pallas_src>
import math
from functools import partial

import jax
import jax.numpy as jnp
from jax.experimental import pallas as pl
from jax.experimental.pallas import tpu as pltpu


# ----------------------------------------------------------------------------
# tiling helpers
# ----------------------------------------------------------------------------
def _round_up(x, m):
    return (x + m - 1) // m * m


def _tpu_generation():
    try:
        kind = jax.devices()[0].device_kind.lower()
    except Exception:  # pragma: no cover
        kind = ""
    if "v5" in kind and ("lite" in kind or "5e" in kind):
        return "v5e"
    if "v7" in kind or "7x" in kind:
        return "v7x"
    return "v6e"


def _preferred_tiles():
    """Per-generation tile preferences + VMEM cap for vmem_limit_bytes."""
    gen = _tpu_generation()
    if gen == "v5e":
        return dict(tm=256, tn=512, tk=1024, vmem_cap=64 << 20)
    if gen == "v7x":
        # v7x: only 64 MiB physical VMEM -> keep the working set under ~48 MiB
        return dict(tm=256, tn=512, tk=2048, vmem_cap=48 << 20)
    return dict(tm=256, tn=512, tk=2048, vmem_cap=64 << 20)   # v6e / default


def _pick_tile(dim, preferred, align=128):
    """Largest multiple of `align` <= preferred that divides round_up(dim, align)."""
    padded = _round_up(dim, align)
    t = min(_round_up(preferred, align), padded)
    t = (t // align) * align
    while padded % t != 0:
        t -= align
    return t, padded


def _linear_tiling(K, N):
    p = _preferred_tiles()
    tk, Kp = _pick_tile(K, p["tk"], 128)   # fc1 real size: K=73728 -> tk=2048 (36 steps)
    tn, Np = _pick_tile(N, p["tn"], 128)   # N=1028 -> Np=1152, tn=384 (3 parallel tiles)
    return tk, tn, Kp, Np


# ----------------------------------------------------------------------------
# Pallas kernel: tiled  out = relu(x @ w + b)
# The output block index is constant across k, so o_ref is resident in VMEM and
# we accumulate directly into it (no scratch accumulator, f32 output tile).
# ----------------------------------------------------------------------------
def _linear_kernel(x_ref, w_ref, b_ref, o_ref, *, relu: bool):
    @pl.when(pl.program_id(2) == 0)
    def _init():
        o_ref[...] = jnp.zeros_like(o_ref)

    o_ref[...] += jnp.dot(x_ref[...], w_ref[...],
                          preferred_element_type=jnp.float32)

    @pl.when(pl.program_id(2) == pl.num_programs(2) - 1)
    def _finalize():
        out = o_ref[...] + b_ref[...]          # bias only in the epilogue
        if relu:
            out = jnp.maximum(out, 0.0)
        o_ref[...] = out


def pallas_linear(x, w_pad, b_pad, n_out, *, relu=False):
    """x: (M, K) f32; w_pad: (Kp, Np) pre-padded bf16; b_pad: (1, Np) f32.
    Returns (M, n_out) f32."""
    M, K = x.shape
    p = _preferred_tiles()
    tk, tn, Kp, Np = _linear_tiling(K, n_out)
    assert w_pad.shape == (Kp, Np), (w_pad.shape, (Kp, Np))
    assert b_pad.shape == (1, Np)

    # M tiling: single tile with minimal (mult-of-8) padding when M is smallish,
    # otherwise a 256-row tile (real-shape conv1 has M ~ 20k rows).
    m8 = _round_up(M, 8)
    if m8 <= 2 * p["tm"]:
        tm, Mp = m8, m8
    else:
        tm = p["tm"]
        Mp = _round_up(M, tm)

    if Mp != M or Kp != K:
        x = jnp.pad(x, ((0, Mp - M), (0, Kp - K)))
    x = x.astype(w_pad.dtype)                  # bf16 activations into the MXU

    grid = (Mp // tm, Np // tn, Kp // tk)

    bx, bw, bo = x.dtype.itemsize, w_pad.dtype.itemsize, 4
    cost = pl.CostEstimate(
        flops=2 * Mp * Np * Kp,
        transcendentals=0,
        bytes_accessed=(Mp * Kp * bx * (Np // tn)      # x re-streamed per column tile
                        + Kp * Np * bw * (Mp // tm)    # w re-streamed per row tile
                        + Np * 4 * (Mp // tm)
                        + Mp * Np * bo),
    )

    # double-buffered x & w tiles + bias + f32 output tiles
    vmem_est = 2 * (tm * tk * bx + tk * tn * bw + tn * 4 + tm * tn * bo)
    vmem_limit = int(min(p["vmem_cap"], max(32 << 20, 2 * vmem_est)))

    out = pl.pallas_call(
        partial(_linear_kernel, relu=relu),
        out_shape=jax.ShapeDtypeStruct((Mp, Np), jnp.float32),
        grid_spec=pltpu.PrefetchScalarGridSpec(
            num_scalar_prefetch=0,
            grid=grid,
            in_specs=[
                pl.BlockSpec((tm, tk), lambda i, j, k: (i, k)),
                pl.BlockSpec((tk, tn), lambda i, j, k: (k, j)),
                pl.BlockSpec((1, tn), lambda i, j, k: (0, j)),
            ],
            out_specs=pl.BlockSpec((tm, tn), lambda i, j, k: (i, j)),
        ),
        compiler_params=pltpu.CompilerParams(
            dimension_semantics=("parallel", "parallel", "arbitrary"),
            vmem_limit_bytes=vmem_limit),
        cost_estimate=cost,
    )(x, w_pad, b_pad)

    if Mp != M or Np != n_out:
        out = out[:M, :n_out]
    return out


# ----------------------------------------------------------------------------
# Conv2d (valid padding, square kernel, stride s) = strided-slice im2col
# (no gather) + the tiled Pallas matmul above.  Activations are NHWC.
# (Convs are negligible next to fc1 at the real shape; left as im2col+matmul.)
# ----------------------------------------------------------------------------
def _im2col_nhwc(x, k, s):
    """x: (B, H, W, C) -> (B*OH*OW, C*k*k) with (c, kh, kw) feature order."""
    B, H, W, C = x.shape
    OH = (H - k) // s + 1
    OW = (W - k) // s + 1
    cols = []
    for kh in range(k):
        for kw in range(k):
            cols.append(x[:, kh:kh + s * OH:s, kw:kw + s * OW:s, :])  # (B,OH,OW,C)
    p = jnp.stack(cols, axis=-1)                  # (B, OH, OW, C, k*k)
    return p.reshape(B * OH * OW, C * k * k), OH, OW


def conv2d_pallas(x, w_pad, b_pad, cout, *, k, stride, relu):
    """x: (B, H, W, Cin) NHWC; w_pad: pre-padded (Kp, Np) im2col weight (bf16)."""
    B = x.shape[0]
    patches, OH, OW = _im2col_nhwc(x, k, stride)
    out = pallas_linear(patches, w_pad, b_pad, cout, relu=relu)   # (B*OH*OW, Cout)
    return out.reshape(B, OH, OW, cout)


# ----------------------------------------------------------------------------
# BranchNet parameters
# ----------------------------------------------------------------------------
def _conv_out(n, k=5, s=2):
    return (n - k) // s + 1


def init_branchnet_params(key, shape):
    """PyTorch-layout parameters (Conv2d: (Cout,Cin,k,k), Linear: (out,in))."""
    oh2 = _conv_out(_conv_out(shape))
    flat = 32 * oh2 * oh2            # original module: 73728 (shape == 201)

    def u(key, fan_in, shp):
        bound = 1.0 / math.sqrt(fan_in)
        return jax.random.uniform(key, shp, jnp.float32, -bound, bound)

    ks = jax.random.split(key, 8)
    return {
        "conv1_w": u(ks[0], 2 * 5 * 5, (16, 2, 5, 5)),
        "conv1_b": u(ks[1], 2 * 5 * 5, (16,)),
        "conv2_w": u(ks[2], 16 * 5 * 5, (32, 16, 5, 5)),
        "conv2_b": u(ks[3], 16 * 5 * 5, (32,)),
        "fc1_w": u(ks[4], flat, (1028, flat)),
        "fc1_b": u(ks[5], flat, (1028,)),
        "fc2_w": u(ks[6], 1028, (256, 1028)),
        "fc2_b": u(ks[7], 1028, (256,)),
    }


def prepare_params(pt_params, shape):
    """One-time conversion to kernel layout: (K, N) matmul weights in bf16,
    fc1 input columns permuted to NHWC flatten order, padded to the tiling."""
    oh2 = _conv_out(_conv_out(shape))
    flat = 32 * oh2 * oh2

    def prep(w_kn, b, n_out):
        K = w_kn.shape[0]
        tk, tn, Kp, Np = _linear_tiling(K, n_out)
        w = jnp.pad(w_kn, ((0, Kp - K), (0, Np - n_out))).astype(jnp.bfloat16)
        bp = jnp.pad(b, (0, Np - n_out)).reshape(1, Np).astype(jnp.float32)
        return w, bp

    # conv weights -> im2col matmul layout (Cin*k*k, Cout)
    c1 = pt_params["conv1_w"].reshape(16, 2 * 25).T
    c2 = pt_params["conv2_w"].reshape(32, 16 * 25).T
    # fc1: permute input columns from NCHW (c,h,w) to NHWC (h,w,c) flatten order
    f1 = (pt_params["fc1_w"].reshape(1028, 32, oh2, oh2)
          .transpose(0, 2, 3, 1).reshape(1028, flat).T)
    f2 = pt_params["fc2_w"].T

    kp = {}
    kp["conv1_w"], kp["conv1_b"] = prep(c1, pt_params["conv1_b"], 16)
    kp["conv2_w"], kp["conv2_b"] = prep(c2, pt_params["conv2_b"], 32)
    kp["fc1_w"], kp["fc1_b"] = prep(f1, pt_params["fc1_b"], 1028)
    kp["fc2_w"], kp["fc2_b"] = prep(f2, pt_params["fc2_b"], 256)
    return kp


# ----------------------------------------------------------------------------
# forward pass (matches the PyTorch module semantically, bf16 weights)
# ----------------------------------------------------------------------------
def branchnet_forward(kparams, x, *, shape):
    B = x.shape[0]
    x = x.reshape(B, -1, shape, shape)            # (B, 2, S, S)  NCHW, as in torch
    x = jnp.transpose(x, (0, 2, 3, 1))            # -> NHWC once (cheap, input only)

    x = conv2d_pallas(x, kparams["conv1_w"], kparams["conv1_b"], 16,
                      k=5, stride=2, relu=True)
    x = conv2d_pallas(x, kparams["conv2_w"], kparams["conv2_b"], 32,
                      k=5, stride=2, relu=True)

    x = x.reshape(B, -1)                          # NHWC flatten (fc1_w pre-permuted)
    x = pallas_linear(x, kparams["fc1_w"], kparams["fc1_b"], 1028, relu=True)
    x = pallas_linear(x, kparams["fc2_w"], kparams["fc2_b"], 256, relu=False)
    return x


# ----------------------------------------------------------------------------
# pure-JAX reference (PyTorch semantics, full f32) for a correctness check
# ----------------------------------------------------------------------------
def _reference_forward(pt_params, x, shape):
    B = x.shape[0]
    x = x.reshape(B, -1, shape, shape)

    def conv(x, w, b, s):
        y = jax.lax.conv_general_dilated(
            x, w, window_strides=(s, s), padding="VALID",
            dimension_numbers=("NCHW", "OIHW", "NCHW"))
        return y + b[None, :, None, None]

    x = jnp.maximum(conv(x, pt_params["conv1_w"], pt_params["conv1_b"], 2), 0.0)
    x = jnp.maximum(conv(x, pt_params["conv2_w"], pt_params["conv2_b"], 2), 0.0)
    x = x.reshape(B, -1)
    x = jnp.maximum(x @ pt_params["fc1_w"].T + pt_params["fc1_b"], 0.0)
    x = x @ pt_params["fc2_w"].T + pt_params["fc2_b"]
    return x


# ----------------------------------------------------------------------------
if __name__ == "__main__":
    SHAPE = 29   # small spatial size (original module implies 201)
    BATCH = 2

    key = jax.random.PRNGKey(0)
    k_param, k_x = jax.random.split(key)

    pt_params = init_branchnet_params(k_param, SHAPE)
    kparams = prepare_params(pt_params, SHAPE)     # one-time kernel layout/padding
    x = jax.random.normal(k_x, (BATCH, 2, SHAPE, SHAPE), dtype=jnp.float32)

    fwd = jax.jit(partial(branchnet_forward, shape=SHAPE))
    out = jax.block_until_ready(fwd(kparams, x))

    assert out.shape == (BATCH, 256), out.shape
    assert out.dtype == jnp.float32
    assert bool(jnp.all(jnp.isfinite(out)))

    # numerical check vs. the f32 PyTorch-semantics reference.
    # Kernel path uses bf16 weights/activations with f32 accumulation, so the
    # tolerance reflects bf16 quantization (expected max |err| ~ a few 1e-3).
    ref = jax.block_until_ready(_reference_forward(pt_params, x, SHAPE))
    max_err = float(jnp.max(jnp.abs(out - ref)))
    assert max_err < 2e-2, f"max abs err {max_err}"

    print("KERNEL_OK")
</pallas_src>

<mosaic_0001>
module attributes {stable_mosaic.version = 11 : i64} {
  func.func @_linear_kernel(%arg0: i32, %arg1: i32, %arg2: i32, %arg3: memref<344x128xbf16, #tpu.memory_space<vmem>>, %arg4: memref<128x128xbf16, #tpu.memory_space<vmem>>, %arg5: memref<1x128xf32, #tpu.memory_space<vmem>>, %arg6: memref<344x128xf32, #tpu.memory_space<vmem>>) attributes {dimension_semantics = [#tpu.dimension_semantics<parallel>, #tpu.dimension_semantics<parallel>, #tpu.dimension_semantics<arbitrary>], iteration_bounds = array<i64: 1, 1, 1>, scalar_prefetch = 0 : i64, scratch_operands = 0 : i64, tpu.core_type = #tpu.core_type<tc>, window_params = [{transform_indices = @transform_0, window_bounds = array<i64: 344, 128>}, {transform_indices = @transform_1, window_bounds = array<i64: 128, 128>}, {transform_indices = @transform_2, window_bounds = array<i64: 1, 128>}, {transform_indices = @transform_3, window_bounds = array<i64: 344, 128>}]} {
    %c0_i32 = arith.constant 0 : i32
    %0 = arith.cmpi eq, %arg2, %c0_i32 : i32
    %1 = arith.extui %0 : i1 to i32
    %c0_i32_0 = arith.constant 0 : i32
    %2 = arith.cmpi ne, %1, %c0_i32_0 : i32
    scf.if %2 {
      %cst_10 = arith.constant 0.000000e+00 : f32
      %12 = vector.broadcast %cst_10 : f32 to vector<344x128xf32>
      %c0_11 = arith.constant 0 : index
      %c0_12 = arith.constant 0 : index
      %13 = vector.load %arg6[%c0_11, %c0_12] : memref<344x128xf32, #tpu.memory_space<vmem>>, vector<344x128xf32>
      tpu.vector_store %arg6[%c0_11, %c0_12], %12 {strides = array<i32>} : memref<344x128xf32, #tpu.memory_space<vmem>>, vector<344x128xf32>,
    } else {
    }
    %c0 = arith.constant 0 : index
    %c0_1 = arith.constant 0 : index
    %3 = vector.load %arg6[%c0, %c0_1] : memref<344x128xf32, #tpu.memory_space<vmem>>, vector<344x128xf32>
    %c0_2 = arith.constant 0 : index
    %c0_3 = arith.constant 0 : index
    %4 = vector.load %arg3[%c0_2, %c0_3] : memref<344x128xbf16, #tpu.memory_space<vmem>>, vector<344x128xbf16>
    %c0_4 = arith.constant 0 : index
    %c0_5 = arith.constant 0 : index
    %5 = vector.load %arg4[%c0_4, %c0_5] : memref<128x128xbf16, #tpu.memory_space<vmem>>, vector<128x128xbf16>
    %cst = arith.constant dense<0.000000e+00> : vector<344x128xf32>
    %6 = tpu.matmul %4, %5, %cst {dimension_numbers = #tpu.dot_dimension_numbers<[1], [0], [0], [1], [0, 0, 1, 1], [], []>} : vector<344x128xbf16>, vector<128x128xbf16>, vector<344x128xf32> -> vector<344x128xf32>
    %7 = arith.addf %3, %6 : vector<344x128xf32>
    %c0_6 = arith.constant 0 : index
    %c0_7 = arith.constant 0 : index
    %8 = vector.load %arg6[%c0_6, %c0_7] : memref<344x128xf32, #tpu.memory_space<vmem>>, vector<344x128xf32>
    tpu.vector_store %arg6[%c0_6, %c0_7], %7 {strides = array<i32>} : memref<344x128xf32, #tpu.memory_space<vmem>>, vector<344x128xf32>,
    %c0_i32_8 = arith.constant 0 : i32
    %9 = arith.cmpi eq, %arg2, %c0_i32_8 : i32
    %10 = arith.extui %9 : i1 to i32
    %c0_i32_9 = arith.constant 0 : i32
    %11 = arith.cmpi ne, %10, %c0_i32_9 : i32
    scf.if %11 {
      %c0_10 = arith.constant 0 : index
      %c0_11 = arith.constant 0 : index
      %12 = vector.load %arg6[%c0_10, %c0_11] : memref<344x128xf32, #tpu.memory_space<vmem>>, vector<344x128xf32>
      %c0_12 = arith.constant 0 : index
      %c0_13 = arith.constant 0 : index
      %13 = vector.load %arg5[%c0_12, %c0_13] : memref<1x128xf32, #tpu.memory_space<vmem>>, vector<1x128xf32>
      %14 = vector.broadcast %13 : vector<1x128xf32> to vector<344x128xf32>
      %15 = arith.addf %12, %14 : vector<344x128xf32>
      %cst_14 = arith.constant 0.000000e+00 : f32
      %16 = vector.broadcast %cst_14 : f32 to vector<344x128xf32>
      %17 = arith.maximumf %15, %16 : vector<344x128xf32>
      %c0_15 = arith.constant 0 : index
      %c0_16 = arith.constant 0 : index
      %18 = vector.load %arg6[%c0_15, %c0_16] : memref<344x128xf32, #tpu.memory_space<vmem>>, vector<344x128xf32>
      tpu.vector_store %arg6[%c0_15, %c0_16], %17 {strides = array<i32>} : memref<344x128xf32, #tpu.memory_space<vmem>>, vector<344x128xf32>,
    } else {
    }
    return
  }
  func.func @transform_0(%arg0: i32, %arg1: i32, %arg2: i32) -> (i32, i32) {
    %c0_i32 = arith.constant 0 : i32
    return %arg0, %arg2 : i32, i32
  }
  func.func @transform_1(%arg0: i32, %arg1: i32, %arg2: i32) -> (i32, i32) {
    %c0_i32 = arith.constant 0 : i32
    return %arg2, %arg1 : i32, i32
  }
  func.func @transform_2(%arg0: i32, %arg1: i32, %arg2: i32) -> (i32, i32) {
    %c0_i32 = arith.constant 0 : i32
    %c0_i32_0 = arith.constant 0 : i32
    return %c0_i32, %arg1 : i32, i32
  }
  func.func @transform_3(%arg0: i32, %arg1: i32, %arg2: i32) -> (i32, i32) {
    %c0_i32 = arith.constant 0 : i32
    return %arg0, %arg1 : i32, i32
  }
}

module attributes {stable_mosaic.version = 11 : i64} {
  func.func @_linear_kernel(%arg0: i32, %arg1: i32, %arg2: i32, %arg3: memref<56x512xbf16, #tpu.memory_space<vmem>>, %arg4: memref<512x128xbf16, #tpu.memory_space<vmem>>, %arg5: memref<1x128xf32, #tpu.memory_space<vmem>>, %arg6: memref<56x128xf32, #tpu.memory_space<vmem>>) attributes {dimension_semantics = [#tpu.dimension_semantics<parallel>, #tpu.dimension_semantics<parallel>, #tpu.dimension_semantics<arbitrary>], iteration_bounds = array<i64: 1, 1, 1>, scalar_prefetch = 0 : i64, scratch_operands = 0 : i64, tpu.core_type = #tpu.core_type<tc>, window_params = [{transform_indices = @transform_0, window_bounds = array<i64: 56, 512>}, {transform_indices = @transform_1, window_bounds = array<i64: 512, 128>}, {transform_indices = @transform_2, window_bounds = array<i64: 1, 128>}, {transform_indices = @transform_3, window_bounds = array<i64: 56, 128>}]} {
    %c0_i32 = arith.constant 0 : i32
    %0 = arith.cmpi eq, %arg2, %c0_i32 : i32
    %1 = arith.extui %0 : i1 to i32
    %c0_i32_0 = arith.constant 0 : i32
    %2 = arith.cmpi ne, %1, %c0_i32_0 : i32
    scf.if %2 {
      %cst_10 = arith.constant 0.000000e+00 : f32
      %12 = vector.broadcast %cst_10 : f32 to vector<56x128xf32>
      %c0_11 = arith.constant 0 : index
      %c0_12 = arith.constant 0 : index
      %13 = vector.load %arg6[%c0_11, %c0_12] : memref<56x128xf32, #tpu.memory_space<vmem>>, vector<56x128xf32>
      tpu.vector_store %arg6[%c0_11, %c0_12], %12 {strides = array<i32>} : memref<56x128xf32, #tpu.memory_space<vmem>>, vector<56x128xf32>,
    } else {
    }
    %c0 = arith.constant 0 : index
    %c0_1 = arith.constant 0 : index
    %3 = vector.load %arg6[%c0, %c0_1] : memref<56x128xf32, #tpu.memory_space<vmem>>, vector<56x128xf32>
    %c0_2 = arith.constant 0 : index
    %c0_3 = arith.constant 0 : index
    %4 = vector.load %arg3[%c0_2, %c0_3] : memref<56x512xbf16, #tpu.memory_space<vmem>>, vector<56x512xbf16>
    %c0_4 = arith.constant 0 : index
    %c0_5 = arith.constant 0 : index
    %5 = vector.load %arg4[%c0_4, %c0_5] : memref<512x128xbf16, #tpu.memory_space<vmem>>, vector<512x128xbf16>
    %cst = arith.constant dense<0.000000e+00> : vector<56x128xf32>
    %6 = tpu.matmul %4, %5, %cst {dimension_numbers = #tpu.dot_dimension_numbers<[1], [0], [0], [1], [0, 0, 1, 1], [], []>} : vector<56x512xbf16>, vector<512x128xbf16>, vector<56x128xf32> -> vector<56x128xf32>
    %7 = arith.addf %3, %6 : vector<56x128xf32>
    %c0_6 = arith.constant 0 : index
    %c0_7 = arith.constant 0 : index
    %8 = vector.load %arg6[%c0_6, %c0_7] : memref<56x128xf32, #tpu.memory_space<vmem>>, vector<56x128xf32>
    tpu.vector_store %arg6[%c0_6, %c0_7], %7 {strides = array<i32>} : memref<56x128xf32, #tpu.memory_space<vmem>>, vector<56x128xf32>,
    %c0_i32_8 = arith.constant 0 : i32
    %9 = arith.cmpi eq, %arg2, %c0_i32_8 : i32
    %10 = arith.extui %9 : i1 to i32
    %c0_i32_9 = arith.constant 0 : i32
    %11 = arith.cmpi ne, %10, %c0_i32_9 : i32
    scf.if %11 {
      %c0_10 = arith.constant 0 : index
      %c0_11 = arith.constant 0 : index
      %12 = vector.load %arg6[%c0_10, %c0_11] : memref<56x128xf32, #tpu.memory_space<vmem>>, vector<56x128xf32>
      %c0_12 = arith.constant 0 : index
      %c0_13 = arith.constant 0 : index
      %13 = vector.load %arg5[%c0_12, %c0_13] : memref<1x128xf32, #tpu.memory_space<vmem>>, vector<1x128xf32>
      %14 = vector.broadcast %13 : vector<1x128xf32> to vector<56x128xf32>
      %15 = arith.addf %12, %14 : vector<56x128xf32>
      %cst_14 = arith.constant 0.000000e+00 : f32
      %16 = vector.broadcast %cst_14 : f32 to vector<56x128xf32>
      %17 = arith.maximumf %15, %16 : vector<56x128xf32>
      %c0_15 = arith.constant 0 : index
      %c0_16 = arith.constant 0 : index
      %18 = vector.load %arg6[%c0_15, %c0_16] : memref<56x128xf32, #tpu.memory_space<vmem>>, vector<56x128xf32>
      tpu.vector_store %arg6[%c0_15, %c0_16], %17 {strides = array<i32>} : memref<56x128xf32, #tpu.memory_space<vmem>>, vector<56x128xf32>,
    } else {
    }
    return
  }
  func.func @transform_0(%arg0: i32, %arg1: i32, %arg2: i32) -> (i32, i32) {
    %c0_i32 = arith.constant 0 : i32
    return %arg0, %arg2 : i32, i32
  }
  func.func @transform_1(%arg0: i32, %arg1: i32, %arg2: i32) -> (i32, i32) {
    %c0_i32 = arith.constant 0 : i32
    return %arg2, %arg1 : i32, i32
  }
  func.func @transform_2(%arg0: i32, %arg1: i32, %arg2: i32) -> (i32, i32) {
    %c0_i32 = arith.constant 0 : i32
    %c0_i32_0 = arith.constant 0 : i32
    return %c0_i32, %arg1 : i32, i32
  }
  func.func @transform_3(%arg0: i32, %arg1: i32, %arg2: i32) -> (i32, i32) {
    %c0_i32 = arith.constant 0 : i32
    return %arg0, %arg1 : i32, i32
  }
}

module attributes {stable_mosaic.version = 11 : i64} {
  func.func @_linear_kernel(%arg0: i32, %arg1: i32, %arg2: i32, %arg3: memref<8x1152xbf16, #tpu.memory_space<vmem>>, %arg4: memref<1152x256xbf16, #tpu.memory_space<vmem>>, %arg5: memref<1x256xf32, #tpu.memory_space<vmem>>, %arg6: memref<8x256xf32, #tpu.memory_space<vmem>>) attributes {dimension_semantics = [#tpu.dimension_semantics<parallel>, #tpu.dimension_semantics<parallel>, #tpu.dimension_semantics<arbitrary>], iteration_bounds = array<i64: 1, 1, 1>, scalar_prefetch = 0 : i64, scratch_operands = 0 : i64, tpu.core_type = #tpu.core_type<tc>, window_params = [{transform_indices = @transform_0, window_bounds = array<i64: 8, 1152>}, {transform_indices = @transform_1, window_bounds = array<i64: 1152, 256>}, {transform_indices = @transform_2, window_bounds = array<i64: 1, 256>}, {transform_indices = @transform_3, window_bounds = array<i64: 8, 256>}]} {
    %c0_i32 = arith.constant 0 : i32
    %0 = arith.cmpi eq, %arg2, %c0_i32 : i32
    %1 = arith.extui %0 : i1 to i32
    %c0_i32_0 = arith.constant 0 : i32
    %2 = arith.cmpi ne, %1, %c0_i32_0 : i32
    scf.if %2 {
      %cst_10 = arith.constant 0.000000e+00 : f32
      %12 = vector.broadcast %cst_10 : f32 to vector<8x256xf32>
      %c0_11 = arith.constant 0 : index
      %c0_12 = arith.constant 0 : index
      %13 = vector.load %arg6[%c0_11, %c0_12] : memref<8x256xf32, #tpu.memory_space<vmem>>, vector<8x256xf32>
      tpu.vector_store %arg6[%c0_11, %c0_12], %12 {strides = array<i32>} : memref<8x256xf32, #tpu.memory_space<vmem>>, vector<8x256xf32>,
    } else {
    }
    %c0 = arith.constant 0 : index
    %c0_1 = arith.constant 0 : index
    %3 = vector.load %arg6[%c0, %c0_1] : memref<8x256xf32, #tpu.memory_space<vmem>>, vector<8x256xf32>
    %c0_2 = arith.constant 0 : index
    %c0_3 = arith.constant 0 : index
    %4 = vector.load %arg3[%c0_2, %c0_3] : memref<8x1152xbf16, #tpu.memory_space<vmem>>, vector<8x1152xbf16>
    %c0_4 = arith.constant 0 : index
    %c0_5 = arith.constant 0 : index
    %5 = vector.load %arg4[%c0_4, %c0_5] : memref<1152x256xbf16, #tpu.memory_space<vmem>>, vector<1152x256xbf16>
    %cst = arith.constant dense<0.000000e+00> : vector<8x256xf32>
    %6 = tpu.matmul %4, %5, %cst {dimension_numbers = #tpu.dot_dimension_numbers<[1], [0], [0], [1], [0, 0, 1, 1], [], []>} : vector<8x1152xbf16>, vector<1152x256xbf16>, vector<8x256xf32> -> vector<8x256xf32>
    %7 = arith.addf %3, %6 : vector<8x256xf32>
    %c0_6 = arith.constant 0 : index
    %c0_7 = arith.constant 0 : index
    %8 = vector.load %arg6[%c0_6, %c0_7] : memref<8x256xf32, #tpu.memory_space<vmem>>, vector<8x256xf32>
    tpu.vector_store %arg6[%c0_6, %c0_7], %7 {strides = array<i32>} : memref<8x256xf32, #tpu.memory_space<vmem>>, vector<8x256xf32>,
    %c0_i32_8 = arith.constant 0 : i32
    %9 = arith.cmpi eq, %arg2, %c0_i32_8 : i32
    %10 = arith.extui %9 : i1 to i32
    %c0_i32_9 = arith.constant 0 : i32
    %11 = arith.cmpi ne, %10, %c0_i32_9 : i32
    scf.if %11 {
      %c0_10 = arith.constant 0 : index
      %c0_11 = arith.constant 0 : index
      %12 = vector.load %arg6[%c0_10, %c0_11] : memref<8x256xf32, #tpu.memory_space<vmem>>, vector<8x256xf32>
      %c0_12 = arith.constant 0 : index
      %c0_13 = arith.constant 0 : index
      %13 = vector.load %arg5[%c0_12, %c0_13] : memref<1x256xf32, #tpu.memory_space<vmem>>, vector<1x256xf32>
      %14 = vector.broadcast %13 : vector<1x256xf32> to vector<8x256xf32>
      %15 = arith.addf %12, %14 : vector<8x256xf32>
      %c0_14 = arith.constant 0 : index
      %c0_15 = arith.constant 0 : index
      %16 = vector.load %arg6[%c0_14, %c0_15] : memref<8x256xf32, #tpu.memory_space<vmem>>, vector<8x256xf32>
      tpu.vector_store %arg6[%c0_14, %c0_15], %15 {strides = array<i32>} : memref<8x256xf32, #tpu.memory_space<vmem>>, vector<8x256xf32>,
    } else {
    }
    return
  }
  func.func @transform_0(%arg0: i32, %arg1: i32, %arg2: i32) -> (i32, i32) {
    %c0_i32 = arith.constant 0 : i32
    return %arg0, %arg2 : i32, i32
  }
  func.func @transform_1(%arg0: i32, %arg1: i32, %arg2: i32) -> (i32, i32) {
    %c0_i32 = arith.constant 0 : i32
    return %arg2, %arg1 : i32, i32
  }
  func.func @transform_2(%arg0: i32, %arg1: i32, %arg2: i32) -> (i32, i32) {
    %c0_i32 = arith.constant 0 : i32
    %c0_i32_0 = arith.constant 0 : i32
    return %c0_i32, %arg1 : i32, i32
  }
  func.func @transform_3(%arg0: i32, %arg1: i32, %arg2: i32) -> (i32, i32) {
    %c0_i32 = arith.constant 0 : i32
    return %arg0, %arg1 : i32, i32
  }
}

module attributes {stable_mosaic.version = 11 : i64} {
  func.func @_linear_kernel(%arg0: i32, %arg1: i32, %arg2: i32, %arg3: memref<8x896xbf16, #tpu.memory_space<vmem>>, %arg4: memref<896x384xbf16, #tpu.memory_space<vmem>>, %arg5: memref<1x384xf32, #tpu.memory_space<vmem>>, %arg6: memref<8x384xf32, #tpu.memory_space<vmem>>) attributes {dimension_semantics = [#tpu.dimension_semantics<parallel>, #tpu.dimension_semantics<parallel>, #tpu.dimension_semantics<arbitrary>], iteration_bounds = array<i64: 1, 3, 1>, scalar_prefetch = 0 : i64, scratch_operands = 0 : i64, tpu.core_type = #tpu.core_type<tc>, window_params = [{transform_indices = @transform_0, window_bounds = array<i64: 8, 896>}, {transform_indices = @transform_1, window_bounds = array<i64: 896, 384>}, {transform_indices = @transform_2, window_bounds = array<i64: 1, 384>}, {transform_indices = @transform_3, window_bounds = array<i64: 8, 384>}]} {
    %c0_i32 = arith.constant 0 : i32
    %0 = arith.cmpi eq, %arg2, %c0_i32 : i32
    %1 = arith.extui %0 : i1 to i32
    %c0_i32_0 = arith.constant 0 : i32
    %2 = arith.cmpi ne, %1, %c0_i32_0 : i32
    scf.if %2 {
      %cst_10 = arith.constant 0.000000e+00 : f32
      %12 = vector.broadcast %cst_10 : f32 to vector<8x384xf32>
      %c0_11 = arith.constant 0 : index
      %c0_12 = arith.constant 0 : index
      %13 = vector.load %arg6[%c0_11, %c0_12] : memref<8x384xf32, #tpu.memory_space<vmem>>, vector<8x384xf32>
      tpu.vector_store %arg6[%c0_11, %c0_12], %12 {strides = array<i32>} : memref<8x384xf32, #tpu.memory_space<vmem>>, vector<8x384xf32>,
    } else {
    }
    %c0 = arith.constant 0 : index
    %c0_1 = arith.constant 0 : index
    %3 = vector.load %arg6[%c0, %c0_1] : memref<8x384xf32, #tpu.memory_space<vmem>>, vector<8x384xf32>
    %c0_2 = arith.constant 0 : index
    %c0_3 = arith.constant 0 : index
    %4 = vector.load %arg3[%c0_2, %c0_3] : memref<8x896xbf16, #tpu.memory_space<vmem>>, vector<8x896xbf16>
    %c0_4 = arith.constant 0 : index
    %c0_5 = arith.constant 0 : index
    %5 = vector.load %arg4[%c0_4, %c0_5] : memref<896x384xbf16, #tpu.memory_space<vmem>>, vector<896x384xbf16>
    %cst = arith.constant dense<0.000000e+00> : vector<8x384xf32>
    %6 = tpu.matmul %4, %5, %cst {dimension_numbers = #tpu.dot_dimension_numbers<[1], [0], [0], [1], [0, 0, 1, 1], [], []>} : vector<8x896xbf16>, vector<896x384xbf16>, vector<8x384xf32> -> vector<8x384xf32>
    %7 = arith.addf %3, %6 : vector<8x384xf32>
    %c0_6 = arith.constant 0 : index
    %c0_7 = arith.constant 0 : index
    %8 = vector.load %arg6[%c0_6, %c0_7] : memref<8x384xf32, #tpu.memory_space<vmem>>, vector<8x384xf32>
    tpu.vector_store %arg6[%c0_6, %c0_7], %7 {strides = array<i32>} : memref<8x384xf32, #tpu.memory_space<vmem>>, vector<8x384xf32>,
    %c0_i32_8 = arith.constant 0 : i32
    %9 = arith.cmpi eq, %arg2, %c0_i32_8 : i32
    %10 = arith.extui %9 : i1 to i32
    %c0_i32_9 = arith.constant 0 : i32
    %11 = arith.cmpi ne, %10, %c0_i32_9 : i32
    scf.if %11 {
      %c0_10 = arith.constant 0 : index
      %c0_11 = arith.constant 0 : index
      %12 = vector.load %arg6[%c0_10, %c0_11] : memref<8x384xf32, #tpu.memory_space<vmem>>, vector<8x384xf32>
      %c0_12 = arith.constant 0 : index
      %c0_13 = arith.constant 0 : index
      %13 = vector.load %arg5[%c0_12, %c0_13] : memref<1x384xf32, #tpu.memory_space<vmem>>, vector<1x384xf32>
      %14 = vector.broadcast %13 : vector<1x384xf32> to vector<8x384xf32>
      %15 = arith.addf %12, %14 : vector<8x384xf32>
      %cst_14 = arith.constant 0.000000e+00 : f32
      %16 = vector.broadcast %cst_14 : f32 to vector<8x384xf32>
      %17 = arith.maximumf %15, %16 : vector<8x384xf32>
      %c0_15 = arith.constant 0 : index
      %c0_16 = arith.constant 0 : index
      %18 = vector.load %arg6[%c0_15, %c0_16] : memref<8x384xf32, #tpu.memory_space<vmem>>, vector<8x384xf32>
      tpu.vector_store %arg6[%c0_15, %c0_16], %17 {strides = array<i32>} : memref<8x384xf32, #tpu.memory_space<vmem>>, vector<8x384xf32>,
    } else {
    }
    return
  }
  func.func @transform_0(%arg0: i32, %arg1: i32, %arg2: i32) -> (i32, i32) {
    %c0_i32 = arith.constant 0 : i32
    return %arg0, %arg2 : i32, i32
  }
  func.func @transform_1(%arg0: i32, %arg1: i32, %arg2: i32) -> (i32, i32) {
    %c0_i32 = arith.constant 0 : i32
    return %arg2, %arg1 : i32, i32
  }
  func.func @transform_2(%arg0: i32, %arg1: i32, %arg2: i32) -> (i32, i32) {
    %c0_i32 = arith.constant 0 : i32
    %c0_i32_0 = arith.constant 0 : i32
    return %c0_i32, %arg1 : i32, i32
  }
  func.func @transform_3(%arg0: i32, %arg1: i32, %arg2: i32) -> (i32, i32) {
    %c0_i32 = arith.constant 0 : i32
    return %arg0, %arg1 : i32, i32
  }
}

</mosaic_0001>

<llo_original>
// kernel: branchnet_forward.4
$region0: #{branchnet_forward.4}
  #allocation0 [shape = 'u32[]', space=smem, size = 0x4, offset = 0x4, fixed_abs, tag = 'smem constant byte address 0x4 - core index']
  #allocation1 [shape = 'u32[144,128]{1,0:T(1,128)}', space=vmem, size = 0x12000, scoped, tag = 'internal scratch']
  %s0 = inlined_call_operand.vmem [shape: bf16[344,128], index: 0, kind: input, shape index: {}]
  %s1 = inlined_call_operand.vmem [shape: bf16[128,128], index: 1, kind: input, shape index: {}]
  %s2 = inlined_call_operand.vmem [shape: f32[1,128], index: 2, kind: input, shape index: {}]
  %s3 = inlined_call_operand.vmem [shape: f32[344,128], index: 3, kind: output, shape index: {}]
  %s4 = sld [smem:[#allocation0]]
  $region30: #{branchnet_forward.4} parent=0
    _
  %s6 = ssub.s32 1, %s4
  %s7 = scalar_select 0, %s6, %s4
  // Predicated region
  $region2: #{branchnet_forward.4} parent=0 // pred_check
    _
  $region3: #{branchnet_forward.4} parent=0 // pred_check_branch
    %9 = sbr.rel (0) target = $region5
  $region4: #{branchnet_forward.4} parent=0 // pred_region
    _
  $region5: #{branchnet_forward.4} parent=0 // pred_fallthru
    _
  // Predicated region
  $region6: #{branchnet_forward.4} parent=0 // pred_check
    _
  $region7: #{branchnet_forward.4} parent=0 // pred_check_branch
    %11 = sbr.rel (0) target = $region9
  $region8: #{branchnet_forward.4} parent=0 // pred_region
    _
  $region9: #{branchnet_forward.4} parent=0 // pred_fallthru
    _
  // Predicated region
  $region10: #{branchnet_forward.4} parent=0 // pred_check
    _
  $region11: #{branchnet_forward.4} parent=0 // pred_check_branch
    %13 = sbr.rel (0) target = $region13
  $region12: #{branchnet_forward.4} parent=0 // pred_region
    _
  $region13: #{branchnet_forward.4} parent=0 // pred_fallthru
    _
  %p15 = scmp.eq.s32.totalorder 0, 0
  // Predicated region
  $region14: #{branchnet_forward.4} parent=0 // pred_check
    %p16 = pneg %p15
  $region15: #{branchnet_forward.4} parent=0 // pred_check_branch
    %18 = sbr.rel (%p16) target = $region17
  $region16: #{branchnet_forward.4} parent=0 // pred_region
    %19 = vst [vmem:[%s3] sm:$0xff] 0.0
    %20 = vst [vmem:[%s3 + $0x8] sm:$0xff] 0.0
    %21 = vst [vmem:[%s3 + $0x10] sm:$0xff] 0.0
    %22 = vst [vmem:[%s3 + $0x18] sm:$0xff] 0.0
    %23 = vst [vmem:[%s3 + $0x20] sm:$0xff] 0.0
    %24 = vst [vmem:[%s3 + $0x28] sm:$0xff] 0.0
    %25 = vst [vmem:[%s3 + $0x30] sm:$0xff] 0.0
    %26 = vst [vmem:[%s3 + $0x38] sm:$0xff] 0.0
    %27 = vst [vmem:[%s3 + $0x40] sm:$0xff] 0.0
    %28 = vst [vmem:[%s3 + $0x48] sm:$0xff] 0.0
    %29 = vst [vmem:[%s3 + $0x50] sm:$0xff] 0.0
    %30 = vst [vmem:[%s3 + $0x58] sm:$0xff] 0.0
    %31 = vst [vmem:[%s3 + $0x60] sm:$0xff] 0.0
    %32 = vst [vmem:[%s3 + $0x68] sm:$0xff] 0.0
    %33 = vst [vmem:[%s3 + $0x70] sm:$0xff] 0.0
    %34 = vst [vmem:[%s3 + $0x78] sm:$0xff] 0.0
    %35 = vst [vmem:[%s3 + $0x80] sm:$0xff] 0.0
    %36 = vst [vmem:[%s3 + $0x88] sm:$0xff] 0.0
    %37 = vst [vmem:[%s3 + $0x90] sm:$0xff] 0.0
    %38 = vst [vmem:[%s3 + $0x98] sm:$0xff] 0.0
    %39 = vst [vmem:[%s3 + $0xa0] sm:$0xff] 0.0
    %40 = vst [vmem:[%s3 + $0xa8] sm:$0xff] 0.0
    %41 = vst [vmem:[%s3 + $0xb0] sm:$0xff] 0.0
    %42 = vst [vmem:[%s3 + $0xb8] sm:$0xff] 0.0
    %43 = vst [vmem:[%s3 + $0xc0] sm:$0xff] 0.0
    %44 = vst [vmem:[%s3 + $0xc8] sm:$0xff] 0.0
    %45 = vst [vmem:[%s3 + $0xd0] sm:$0xff] 0.0
    %46 = vst [vmem:[%s3 + $0xd8] sm:$0xff] 0.0
    %47 = vst [vmem:[%s3 + $0xe0] sm:$0xff] 0.0
    %48 = vst [vmem:[%s3 + $0xe8] sm:$0xff] 0.0
    %49 = vst [vmem:[%s3 + $0xf0] sm:$0xff] 0.0
    %50 = vst [vmem:[%s3 + $0xf8] sm:$0xff] 0.0
    %51 = vst [vmem:[%s3 + $0x100] sm:$0xff] 0.0
    %52 = vst [vmem:[%s3 + $0x108] sm:$0xff] 0.0
    %53 = vst [vmem:[%s3 + $0x110] sm:$0xff] 0.0
    %54 = vst [vmem:[%s3 + $0x118] sm:$0xff] 0.0
    %55 = vst [vmem:[%s3 + $0x120] sm:$0xff] 0.0
    %56 = vst [vmem:[%s3 + $0x128] sm:$0xff] 0.0
    %57 = vst [vmem:[%s3 + $0x130] sm:$0xff] 0.0
    %58 = vst [vmem:[%s3 + $0x138] sm:$0xff] 0.0
    %59 = vst [vmem:[%s3 + $0x140] sm:$0xff] 0.0
    %60 = vst [vmem:[%s3 + $0x148] sm:$0xff] 0.0
    %61 = vst [vmem:[%s3 + $0x150] sm:$0xff] 0.0
  $region17: #{branchnet_forward.4} parent=0 // pred_fallthru
    _
  %v62 = vld [vmem:[%s3] sm:$0xff]
  %v63 = vld [vmem:[%s3 + $0x8] sm:$0xff]
  %v64 = vld [vmem:[%s3 + $0x10] sm:$0xff]
  %v65 = vld [vmem:[%s3 + $0x18] sm:$0xff]
  %v66 = vld [vmem:[%s3 + $0x20] sm:$0xff]
  %v67 = vld [vmem:[%s3 + $0x28] sm:$0xff]
  %v68 = vld [vmem:[%s3 + $0x30] sm:$0xff]
  %v69 = vld [vmem:[%s3 + $0x38] sm:$0xff]
  %v70 = vld [vmem:[%s3 + $0x40] sm:$0xff]
  %v71 = vld [vmem:[%s3 + $0x48] sm:$0xff]
  %v72 = vld [vmem:[%s3 + $0x50] sm:$0xff]
  %v73 = vld [vmem:[%s3 + $0x58] sm:$0xff]
  %v74 = vld [vmem:[%s3 + $0x60] sm:$0xff]
  %v75 = vld [vmem:[%s3 + $0x68] sm:$0xff]
  %v76 = vld [vmem:[%s3 + $0x70] sm:$0xff]
  %v77 = vld [vmem:[%s3 + $0x78] sm:$0xff]
  %v78 = vld [vmem:[%s3 + $0x80] sm:$0xff]
  %v79 = vld [vmem:[%s3 + $0x88] sm:$0xff]
  %v80 = vld [vmem:[%s3 + $0x90] sm:$0xff]
  %v81 = vld [vmem:[%s3 + $0x98] sm:$0xff]
  %v82 = vld [vmem:[%s3 + $0xa0] sm:$0xff]
  %v83 = vld [vmem:[%s3 + $0xa8] sm:$0xff]
  %v84 = vld [vmem:[%s3 + $0xb0] sm:$0xff]
  %v85 = vld [vmem:[%s3 + $0xb8] sm:$0xff]
  %v86 = vld [vmem:[%s3 + $0xc0] sm:$0xff]
  %v87 = vld [vmem:[%s3 + $0xc8] sm:$0xff]
  %v88 = vld [vmem:[%s3 + $0xd0] sm:$0xff]
  %v89 = vld [vmem:[%s3 + $0xd8] sm:$0xff]
  %v90 = vld [vmem:[%s3 + $0xe0] sm:$0xff]
  %v91 = vld [vmem:[%s3 + $0xe8] sm:$0xff]
  %v92 = vld [vmem:[%s3 + $0xf0] sm:$0xff]
  %v93 = vld [vmem:[%s3 + $0xf8] sm:$0xff]
  %v94 = vld [vmem:[%s3 + $0x100] sm:$0xff]
  %v95 = vld [vmem:[%s3 + $0x108] sm:$0xff]
  %v96 = vld [vmem:[%s3 + $0x110] sm:$0xff]
  %v97 = vld [vmem:[%s3 + $0x118] sm:$0xff]
  %v98 = vld [vmem:[%s3 + $0x120] sm:$0xff]
  %v99 = vld [vmem:[%s3 + $0x128] sm:$0xff]
  %v100 = vld [vmem:[%s3 + $0x130] sm:$0xff]
  %v101 = vld [vmem:[%s3 + $0x138] sm:$0xff]
  %v102 = vld [vmem:[%s3 + $0x140] sm:$0xff]
  %v103 = vld [vmem:[%s3 + $0x148] sm:$0xff]
  %v104 = vld [vmem:[%s3 + $0x150] sm:$0xff]
  %v105 = vld [vmem:[%s0] sm:$0xf]
  %v106 = vld [vmem:[%s0 + $0x4] sm:$0xf]
  %v107 = vld [vmem:[%s0 + $0x8] sm:$0xf]
  %v108 = vld [vmem:[%s0 + $0xc] sm:$0xf]
  %v109 = vld [vmem:[%s0 + $0x10] sm:$0xf]
  %v110 = vld [vmem:[%s0 + $0x14] sm:$0xf]
  %v111 = vld [vmem:[%s0 + $0x18] sm:$0xf]
  %v112 = vld [vmem:[%s0 + $0x1c] sm:$0xf]
  %v113 = vld [vmem:[%s0 + $0x20] sm:$0xf]
  %v114 = vld [vmem:[%s0 + $0x24] sm:$0xf]
  %v115 = vld [vmem:[%s0 + $0x28] sm:$0xf]
  %v116 = vld [vmem:[%s0 + $0x2c] sm:$0xf]
  %v117 = vld [vmem:[%s0 + $0x30] sm:$0xf]
  %v118 = vld [vmem:[%s0 + $0x34] sm:$0xf]
  %v119 = vld [vmem:[%s0 + $0x38] sm:$0xf]
  %v120 = vld [vmem:[%s0 + $0x3c] sm:$0xf]
  %v121 = vld [vmem:[%s0 + $0x40] sm:$0xf]
  %v122 = vld [vmem:[%s0 + $0x44] sm:$0xf]
  %v123 = vld [vmem:[%s0 + $0x48] sm:$0xf]
  %v124 = vld [vmem:[%s0 + $0x4c] sm:$0xf]
  %v125 = vld [vmem:[%s0 + $0x50] sm:$0xf]
  %v126 = vld [vmem:[%s0 + $0x54] sm:$0xf]
  %v127 = vld [vmem:[%s0 + $0x58] sm:$0xf]
  %v128 = vld [vmem:[%s0 + $0x5c] sm:$0xf]
  %v129 = vld [vmem:[%s0 + $0x60] sm:$0xf]
  %v130 = vld [vmem:[%s0 + $0x64] sm:$0xf]
  %v131 = vld [vmem:[%s0 + $0x68] sm:$0xf]
  %v132 = vld [vmem:[%s0 + $0x6c] sm:$0xf]
  %v133 = vld [vmem:[%s0 + $0x70] sm:$0xf]
  %v134 = vld [vmem:[%s0 + $0x74] sm:$0xf]
  %v135 = vld [vmem:[%s0 + $0x78] sm:$0xf]
  %v136 = vld [vmem:[%s0 + $0x7c] sm:$0xf]
  %v137 = vld [vmem:[%s0 + $0x80] sm:$0xf]
  %v138 = vld [vmem:[%s0 + $0x84] sm:$0xf]
  %v139 = vld [vmem:[%s0 + $0x88] sm:$0xf]
  %v140 = vld [vmem:[%s0 + $0x8c] sm:$0xf]
  %v141 = vld [vmem:[%s0 + $0x90] sm:$0xf]
  %v142 = vld [vmem:[%s0 + $0x94] sm:$0xf]
  %v143 = vld [vmem:[%s0 + $0x98] sm:$0xf]
  %v144 = vld [vmem:[%s0 + $0x9c] sm:$0xf]
  %v145 = vld [vmem:[%s0 + $0xa0] sm:$0xf]
  %v146 = vld [vmem:[%s0 + $0xa4] sm:$0xf]
  %v147 = vld [vmem:[%s0 + $0xa8] sm:$0xf]
  %v148 = vld [vmem:[%s1] sm:$0xf]
  %v149 = vld [vmem:[%s1 + $0x4] sm:$0xf]
  %v150 = vld [vmem:[%s1 + $0x8] sm:$0xf]
  %v151 = vld [vmem:[%s1 + $0xc] sm:$0xf]
  %v152 = vld [vmem:[%s1 + $0x10] sm:$0xf]
  %v153 = vld [vmem:[%s1 + $0x14] sm:$0xf]
  %v154 = vld [vmem:[%s1 + $0x18] sm:$0xf]
  %v155 = vld [vmem:[%s1 + $0x1c] sm:$0xf]
  %v156 = vld [vmem:[%s1 + $0x20] sm:$0xf]
  %v157 = vld [vmem:[%s1 + $0x24] sm:$0xf]
  %v158 = vld [vmem:[%s1 + $0x28] sm:$0xf]
  %v159 = vld [vmem:[%s1 + $0x2c] sm:$0xf]
  %v160 = vld [vmem:[%s1 + $0x30] sm:$0xf]
  %v161 = vld [vmem:[%s1 + $0x34] sm:$0xf]
  %v162 = vld [vmem:[%s1 + $0x38] sm:$0xf]
  %v163 = vld [vmem:[%s1 + $0x3c] sm:$0xf]
  %v207 = vunpack.c.l.b16 %v105
  %v208 = vunpack.c.l.b16 %v106
  %v209 = vunpack.c.l.b16 %v107
  %v210 = vunpack.c.l.b16 %v108
  %v211 = vunpack.c.l.b16 %v109
  %v212 = vunpack.c.l.b16 %v110
  %v213 = vunpack.c.l.b16 %v111
  %v214 = vunpack.c.l.b16 %v112
  %v215 = vunpack.c.l.b16 %v113
  %v216 = vunpack.c.l.b16 %v114
  %v217 = vunpack.c.l.b16 %v115
  %v218 = vunpack.c.l.b16 %v116
  %v219 = vunpack.c.l.b16 %v117
  %v220 = vunpack.c.l.b16 %v118
  %v221 = vunpack.c.l.b16 %v119
  %v222 = vunpack.c.l.b16 %v120
  %v223 = vunpack.c.l.b16 %v121
  %v224 = vunpack.c.l.b16 %v122
  %v225 = vunpack.c.l.b16 %v123
  %v226 = vunpack.c.l.b16 %v124
  %v227 = vunpack.c.l.b16 %v125
  %v228 = vunpack.c.l.b16 %v126
  %v229 = vunpack.c.l.b16 %v127
  %v230 = vunpack.c.l.b16 %v128
  %v231 = vunpack.c.l.b16 %v129
  %v232 = vunpack.c.l.b16 %v130
  %v233 = vunpack.c.l.b16 %v131
  %v234 = vunpack.c.l.b16 %v132
  %v235 = vunpack.c.l.b16 %v133
  %v236 = vunpack.c.l.b16 %v134
  %v237 = vunpack.c.l.b16 %v135
  %v238 = vunpack.c.l.b16 %v136
  %v239 = vunpack.c.l.b16 %v137
  %v240 = vunpack.c.l.b16 %v138
  %v241 = vunpack.c.l.b16 %v139
  %v242 = vunpack.c.l.b16 %v140
  %v243 = vunpack.c.l.b16 %v141
  %v244 = vunpack.c.l.b16 %v142
  %v245 = vunpack.c.l.b16 %v143
  %v246 = vunpack.c.l.b16 %v144
  %v247 = vunpack.c.l.b16 %v145
  %v248 = vunpack.c.l.b16 %v146
  %v249 = vunpack.c.l.b16 %v147
  %v250 = vpack.c.b16 %v208, %v207
  %v251 = vpack.c.b16 %v210, %v209
  %v252 = vpack.c.b16 %v212, %v211
  %v253 = vpack.c.b16 %v214, %v213
  %v254 = vpack.c.b16 %v216, %v215
  %v255 = vpack.c.b16 %v218, %v217
  %v256 = vpack.c.b16 %v220, %v219
  %v257 = vpack.c.b16 %v222, %v221
  %v258 = vpack.c.b16 %v224, %v223
  %v259 = vpack.c.b16 %v226, %v225
  %v260 = vpack.c.b16 %v228, %v227
  %v261 = vpack.c.b16 %v230, %v229
  %v262 = vpack.c.b16 %v232, %v231
  %v263 = vpack.c.b16 %v234, %v233
  %v264 = vpack.c.b16 %v236, %v235
  %v265 = vpack.c.b16 %v238, %v237
  %v266 = vpack.c.b16 %v240, %v239
  %v267 = vpack.c.b16 %v242, %v241
  %v268 = vpack.c.b16 %v244, %v243
  %v269 = vpack.c.b16 %v246, %v245
  %v270 = vpack.c.b16 %v248, %v247
  %v271 = vpack.c.b16 %v249, %v249
  %v310 = vunpack.c.l.b16 %v148
  %v311 = vunpack.c.l.b16 %v149
  %v312 = vunpack.c.l.b16 %v150
  %v313 = vunpack.c.l.b16 %v151
  %v314 = vunpack.c.l.b16 %v152
  %v315 = vunpack.c.l.b16 %v153
  %v316 = vunpack.c.l.b16 %v154
  %v317 = vunpack.c.l.b16 %v155
  %v318 = vunpack.c.l.b16 %v156
  %v319 = vunpack.c.l.b16 %v157
  %v320 = vunpack.c.l.b16 %v158
  %v321 = vunpack.c.l.b16 %v159
  %v322 = vunpack.c.l.b16 %v160
  %v323 = vunpack.c.l.b16 %v161
  %v324 = vunpack.c.l.b16 %v162
  %v325 = vunpack.c.l.b16 %v163
  %v326 = vpack.c.b16 %v311, %v310
  %v327 = vpack.c.b16 %v313, %v312
  %v328 = vpack.c.b16 %v315, %v314
  %v329 = vpack.c.b16 %v317, %v316
  %v330 = vpack.c.b16 %v319, %v318
  %v331 = vpack.c.b16 %v321, %v320
  %v332 = vpack.c.b16 %v323, %v322
  %v333 = vpack.c.b16 %v325, %v324
  %342 = vmatprep.subr.bf16.mxu0 0
  %343 = vmatpush1.bf16.msra.mxu0 %v326
  %344 = vmatprep.subr.bf16.mxu0 0
  %345 = vmatpush1.bf16.msra.mxu0 %v327
  %346 = vmatprep.subr.bf16.mxu0 0
  %347 = vmatpush1.bf16.msra.mxu0 %v328
  %348 = vmatprep.subr.bf16.mxu0 0
  %349 = vmatpush1.bf16.msra.mxu0 %v329
  %350 = vmatprep.subr.bf16.mxu0 0
  %351 = vmatpush1.bf16.msra.mxu0 %v330
  %352 = vmatprep.subr.bf16.mxu0 0
  %353 = vmatpush1.bf16.msra.mxu0 %v331
  %354 = vmatprep.subr.bf16.mxu0 0
  %355 = vmatpush1.bf16.msra.mxu0 %v332
  %356 = vmatprep.subr.bf16.mxu0 0
  %357 = vmatpush1.bf16.msra.mxu0 %v333
  %358 = vmatprep.subr.bf16.mxu0 0
  %359 = vmatpush1.bf16.msra.mxu0 0
  %360 = vmatprep.subr.bf16.mxu0 0
  %361 = vmatpush1.bf16.msra.mxu0 0
  %362 = vmatprep.subr.bf16.mxu0 0
  %363 = vmatpush1.bf16.msra.mxu0 0
  %364 = vmatprep.subr.bf16.mxu0 0
  %365 = vmatpush1.bf16.msra.mxu0 0
  %366 = vmatprep.subr.bf16.mxu0 0
  %367 = vmatpush1.bf16.msra.mxu0 0
  %368 = vmatprep.subr.bf16.mxu0 0
  %369 = vmatpush1.bf16.msra.mxu0 0
  %370 = vmatprep.subr.bf16.mxu0 0
  %371 = vmatpush1.bf16.msra.mxu0 0
  %372 = vmatprep.subr.bf16.mxu0 0
  %373 = vmatpush1.bf16.msra.mxu0 0
  %374 = vmatprep.mubr.bf16.mxu0 0
  %375 = vmatmul.mubr.bf16.gmra.mrb[0].mxu0 %v250
  %v376 = vpop.f32.mrb[0].mxu0
  %v377 = vadd.f32 0.0, %v376
  %v378 = vpop.f32.mrb[0].mxu0
  %v379 = vpop.f32.mrb[0].mxu0
  %v380 = vadd.f32 0.0, %v379
  %v381 = vpop.f32.mrb[0].mxu0
  %382 = vmatprep.mubr.bf16.mxu0 0
  %383 = vmatmul.mubr.bf16.gmra.mrb[0].mxu0 %v251
  %v384 = vpop.f32.mrb[0].mxu0
  %v385 = vadd.f32 0.0, %v384
  %v386 = vpop.f32.mrb[0].mxu0
  %v387 = vpop.f32.mrb[0].mxu0
  %v388 = vadd.f32 0.0, %v387
  %v389 = vpop.f32.mrb[0].mxu0
  %390 = vmatprep.mubr.bf16.mxu0 0
  %391 = vmatmul.mubr.bf16.gmra.mrb[0].mxu0 %v252
  %v392 = vpop.f32.mrb[0].mxu0
  %v393 = vadd.f32 0.0, %v392
  %v394 = vpop.f32.mrb[0].mxu0
  %v395 = vpop.f32.mrb[0].mxu0
  %v396 = vadd.f32 0.0, %v395
  %v397 = vpop.f32.mrb[0].mxu0
  %398 = vmatprep.mubr.bf16.mxu0 0
  %399 = vmatmul.mubr.bf16.gmra.mrb[0].mxu0 %v253
  %v400 = vpop.f32.mrb[0].mxu0
  %v401 = vadd.f32 0.0, %v400
  %v402 = vpop.f32.mrb[0].mxu0
  %v403 = vpop.f32.mrb[0].mxu0
  %v404 = vadd.f32 0.0, %v403
  %v405 = vpop.f32.mrb[0].mxu0
  %406 = vmatprep.mubr.bf16.mxu0 0
  %407 = vmatmul.mubr.bf16.gmra.mrb[0].mxu0 %v254
  %v408 = vpop.f32.mrb[0].mxu0
  %v409 = vadd.f32 0.0, %v408
  %v410 = vpop.f32.mrb[0].mxu0
  %v411 = vpop.f32.mrb[0].mxu0
  %v412 = vadd.f32 0.0, %v411
  %v413 = vpop.f32.mrb[0].mxu0
  %414 = vmatprep.mubr.bf16.mxu0 0
  %415 = vmatmul.mubr.bf16.gmra.mrb[0].mxu0 %v255
  %v416 = vpop.f32.mrb[0].mxu0
  %v417 = vadd.f32 0.0, %v416
  %v418 = vpop.f32.mrb[0].mxu0
  %v419 = vpop.f32.mrb[0].mxu0
  %v420 = vadd.f32 0.0, %v419
  %v421 = vpop.f32.mrb[0].mxu0
  %422 = vmatprep.mubr.bf16.mxu0 0
  %423 = vmatmul.mubr.bf16.gmra.mrb[0].mxu0 %v256
  %v424 = vpop.f32.mrb[0].mxu0
  %v425 = vadd.f32 0.0, %v424
  %v426 = vpop.f32.mrb[0].mxu0
  %v427 = vpop.f32.mrb[0].mxu0
  %v428 = vadd.f32 0.0, %v427
  %v429 = vpop.f32.mrb[0].mxu0
  %430 = vmatprep.mubr.bf16.mxu0 0
  %431 = vmatmul.mubr.bf16.gmra.mrb[0].mxu0 %v257
  %v432 = vpop.f32.mrb[0].mxu0
  %v433 = vadd.f32 0.0, %v432
  %v434 = vpop.f32.mrb[0].mxu0
  %v435 = vpop.f32.mrb[0].mxu0
  %v436 = vadd.f32 0.0, %v435
  %v437 = vpop.f32.mrb[0].mxu0
  %438 = vmatprep.mubr.bf16.mxu0 0
  %439 = vmatmul.mubr.bf16.gmra.mrb[0].mxu0 %v258
  %v440 = vpop.f32.mrb[0].mxu0
  %v441 = vadd.f32 0.0, %v440
  %v442 = vpop.f32.mrb[0].mxu0
  %v443 = vpop.f32.mrb[0].mxu0
  %v444 = vadd.f32 0.0, %v443
  %v445 = vpop.f32.mrb[0].mxu0
  %446 = vmatprep.mubr.bf16.mxu0 0
  %447 = vmatmul.mubr.bf16.gmra.mrb[0].mxu0 %v259
  %v448 = vpop.f32.mrb[0].mxu0
  %v449 = vadd.f32 0.0, %v448
  %v450 = vpop.f32.mrb[0].mxu0
  %v451 = vpop.f32.mrb[0].mxu0
  %v452 = vadd.f32 0.0, %v451
  %v453 = vpop.f32.mrb[0].mxu0
  %454 = vmatprep.mubr.bf16.mxu0 0
  %455 = vmatmul.mubr.bf16.gmra.mrb[0].mxu0 %v260
  %v456 = vpop.f32.mrb[0].mxu0
  %v457 = vadd.f32 0.0, %v456
  %v458 = vpop.f32.mrb[0].mxu0
  %v459 = vpop.f32.mrb[0].mxu0
  %v460 = vadd.f32 0.0, %v459
  %v461 = vpop.f32.mrb[0].mxu0
  %462 = vmatprep.mubr.bf16.mxu0 0
  %463 = vmatmul.mubr.bf16.gmra.mrb[0].mxu0 %v261
  %v464 = vpop.f32.mrb[0].mxu0
  %v465 = vadd.f32 0.0, %v464
  %v466 = vpop.f32.mrb[0].mxu0
  %v467 = vpop.f32.mrb[0].mxu0
  %v468 = vadd.f32 0.0, %v467
  %v469 = vpop.f32.mrb[0].mxu0
  %470 = vmatprep.mubr.bf16.mxu0 0
  %471 = vmatmul.mubr.bf16.gmra.mrb[0].mxu0 %v262
  %v472 = vpop.f32.mrb[0].mxu0
  %v473 = vadd.f32 0.0, %v472
  %v474 = vpop.f32.mrb[0].mxu0
  %v475 = vpop.f32.mrb[0].mxu0
  %v476 = vadd.f32 0.0, %v475
  %v477 = vpop.f32.mrb[0].mxu0
  %478 = vmatprep.mubr.bf16.mxu0 0
  %479 = vmatmul.mubr.bf16.gmra.mrb[0].mxu0 %v263
  %v480 = vpop.f32.mrb[0].mxu0
  %v481 = vadd.f32 0.0, %v480
  %v482 = vpop.f32.mrb[0].mxu0
  %v483 = vpop.f32.mrb[0].mxu0
  %v484 = vadd.f32 0.0, %v483
  %v485 = vpop.f32.mrb[0].mxu0
  %486 = vmatprep.mubr.bf16.mxu0 0
  %487 = vmatmul.mubr.bf16.gmra.mrb[0].mxu0 %v264
  %v488 = vpop.f32.mrb[0].mxu0
  %v489 = vadd.f32 0.0, %v488
  %v490 = vpop.f32.mrb[0].mxu0
  %v491 = vpop.f32.mrb[0].mxu0
  %v492 = vadd.f32 0.0, %v491
  %v493 = vpop.f32.mrb[0].mxu0
  %494 = vmatprep.mubr.bf16.mxu0 0
  %495 = vmatmul.mubr.bf16.gmra.mrb[0].mxu0 %v265
  %v496 = vpop.f32.mrb[0].mxu0
  %v497 = vadd.f32 0.0, %v496
  %v498 = vpop.f32.mrb[0].mxu0
  %v499 = vpop.f32.mrb[0].mxu0
  %v500 = vadd.f32 0.0, %v499
  %v501 = vpop.f32.mrb[0].mxu0
  %502 = vmatprep.mubr.bf16.mxu0 0
  %503 = vmatmul.mubr.bf16.gmra.mrb[0].mxu0 %v266
  %v504 = vpop.f32.mrb[0].mxu0
  %v505 = vadd.f32 0.0, %v504
  %v506 = vpop.f32.mrb[0].mxu0
  %v507 = vpop.f32.mrb[0].mxu0
  %v508 = vadd.f32 0.0, %v507
  %v509 = vpop.f32.mrb[0].mxu0
  %510 = vmatprep.mubr.bf16.mxu0 0
  %511 = vmatmul.mubr.bf16.gmra.mrb[0].mxu0 %v267
  %v512 = vpop.f32.mrb[0].mxu0
  %v513 = vadd.f32 0.0, %v512
  %v514 = vpop.f32.mrb[0].mxu0
  %v515 = vpop.f32.mrb[0].mxu0
  %v516 = vadd.f32 0.0, %v515
  %v517 = vpop.f32.mrb[0].mxu0
  %518 = vmatprep.mubr.bf16.mxu0 0
  %519 = vmatmul.mubr.bf16.gmra.mrb[0].mxu0 %v268
  %v520 = vpop.f32.mrb[0].mxu0
  %v521 = vadd.f32 0.0, %v520
  %v522 = vpop.f32.mrb[0].mxu0
  %v523 = vpop.f32.mrb[0].mxu0
  %v524 = vadd.f32 0.0, %v523
  %v525 = vpop.f32.mrb[0].mxu0
  %526 = vmatprep.mubr.bf16.mxu0 0
  %527 = vmatmul.mubr.bf16.gmra.mrb[0].mxu0 %v269
  %v528 = vpop.f32.mrb[0].mxu0
  %v529 = vadd.f32 0.0, %v528
  %v530 = vpop.f32.mrb[0].mxu0
  %v531 = vpop.f32.mrb[0].mxu0
  %v532 = vadd.f32 0.0, %v531
  %v533 = vpop.f32.mrb[0].mxu0
  %534 = vmatprep.mubr.bf16.mxu0 0
  %535 = vmatmul.mubr.bf16.gmra.mrb[0].mxu0 %v270
  %v536 = vpop.f32.mrb[0].mxu0
  %v537 = vadd.f32 0.0, %v536
  %v538 = vpop.f32.mrb[0].mxu0
  %v539 = vpop.f32.mrb[0].mxu0
  %v540 = vadd.f32 0.0, %v539
  %v541 = vpop.f32.mrb[0].mxu0
  %542 = vmatprep.mubr.bf16.mxu0 0
  %543 = vmatmul.mubr.bf16.gmra.mrb[0].mxu0 %v271
  %v544 = vpop.f32.mrb[0].mxu0
  %v545 = vadd.f32 0.0, %v544
  %v546 = vpop.f32.mrb[0].mxu0
  %v547 = vpop.f32.mrb[0].mxu0
  %v548 = vpop.f32.mrb[0].mxu0
  %549 = vdwg.mxu0
  %v550 = vadd.f32 %v62, %v377
  %v551 = vadd.f32 %v63, %v380
  %v552 = vadd.f32 %v64, %v385
  %v553 = vadd.f32 %v65, %v388
  %v554 = vadd.f32 %v66, %v393
  %v555 = vadd.f32 %v67, %v396
  %v556 = vadd.f32 %v68, %v401
  %v557 = vadd.f32 %v69, %v404
  %v558 = vadd.f32 %v70, %v409
  %v559 = vadd.f32 %v71, %v412
  %v560 = vadd.f32 %v72, %v417
  %v561 = vadd.f32 %v73, %v420
  %v562 = vadd.f32 %v74, %v425
  %v563 = vadd.f32 %v75, %v428
  %v564 = vadd.f32 %v76, %v433
  %v565 = vadd.f32 %v77, %v436
  %v566 = vadd.f32 %v78, %v441
  %v567 = vadd.f32 %v79, %v444
  %v568 = vadd.f32 %v80, %v449
  %v569 = vadd.f32 %v81, %v452
  %v570 = vadd.f32 %v82, %v457
  %v571 = vadd.f32 %v83, %v460
  %v572 = vadd.f32 %v84, %v465
  %v573 = vadd.f32 %v85, %v468
  %v574 = vadd.f32 %v86, %v473
  %v575 = vadd.f32 %v87, %v476
  %v576 = vadd.f32 %v88, %v481
  %v577 = vadd.f32 %v89, %v484
  %v578 = vadd.f32 %v90, %v489
  %v579 = vadd.f32 %v91, %v492
  %v580 = vadd.f32 %v92, %v497
  %v581 = vadd.f32 %v93, %v500
  %v582 = vadd.f32 %v94, %v505
  %v583 = vadd.f32 %v95, %v508
  %v584 = vadd.f32 %v96, %v513
  %v585 = vadd.f32 %v97, %v516
  %v586 = vadd.f32 %v98, %v521
  %v587 = vadd.f32 %v99, %v524
  %v588 = vadd.f32 %v100, %v529
  %v589 = vadd.f32 %v101, %v532
  %v590 = vadd.f32 %v102, %v537
  %v591 = vadd.f32 %v103, %v540
  %v592 = vadd.f32 %v104, %v545
  %593 = vst [vmem:[%s3] sm:$0xff] %v550
  %594 = vst [vmem:[%s3 + $0x8] sm:$0xff] %v551
  %595 = vst [vmem:[%s3 + $0x10] sm:$0xff] %v552
  %596 = vst [vmem:[%s3 + $0x18] sm:$0xff] %v553
  %597 = vst [vmem:[%s3 + $0x20] sm:$0xff] %v554
  %598 = vst [vmem:[%s3 + $0x28] sm:$0xff] %v555
  %599 = vst [vmem:[%s3 + $0x30] sm:$0xff] %v556
  %600 = vst [vmem:[%s3 + $0x38] sm:$0xff] %v557
  %601 = vst [vmem:[%s3 + $0x40] sm:$0xff] %v558
  %602 = vst [vmem:[%s3 + $0x48] sm:$0xff] %v559
  %603 = vst [vmem:[%s3 + $0x50] sm:$0xff] %v560
  %604 = vst [vmem:[%s3 + $0x58] sm:$0xff] %v561
  %605 = vst [vmem:[%s3 + $0x60] sm:$0xff] %v562
  %606 = vst [vmem:[%s3 + $0x68] sm:$0xff] %v563
  %607 = vst [vmem:[%s3 + $0x70] sm:$0xff] %v564
  %608 = vst [vmem:[%s3 + $0x78] sm:$0xff] %v565
  %609 = vst [vmem:[%s3 + $0x80] sm:$0xff] %v566
  %610 = vst [vmem:[%s3 + $0x88] sm:$0xff] %v567
  %611 = vst [vmem:[%s3 + $0x90] sm:$0xff] %v568
  %612 = vst [vmem:[%s3 + $0x98] sm:$0xff] %v569
  %613 = vst [vmem:[%s3 + $0xa0] sm:$0xff] %v570
  %614 = vst [vmem:[%s3 + $0xa8] sm:$0xff] %v571
  %615 = vst [vmem:[%s3 + $0xb0] sm:$0xff] %v572
  %616 = vst [vmem:[%s3 + $0xb8] sm:$0xff] %v573
  %617 = vst [vmem:[%s3 + $0xc0] sm:$0xff] %v574
  %618 = vst [vmem:[%s3 + $0xc8] sm:$0xff] %v575
  %619 = vst [vmem:[%s3 + $0xd0] sm:$0xff] %v576
  %620 = vst [vmem:[%s3 + $0xd8] sm:$0xff] %v577
  %621 = vst [vmem:[%s3 + $0xe0] sm:$0xff] %v578
  %622 = vst [vmem:[%s3 + $0xe8] sm:$0xff] %v579
  %623 = vst [vmem:[%s3 + $0xf0] sm:$0xff] %v580
  %624 = vst [vmem:[%s3 + $0xf8] sm:$0xff] %v581
  %625 = vst [vmem:[%s3 + $0x100] sm:$0xff] %v582
  %626 = vst [vmem:[%s3 + $0x108] sm:$0xff] %v583
  %627 = vst [vmem:[%s3 + $0x110] sm:$0xff] %v584
  %628 = vst [vmem:[%s3 + $0x118] sm:$0xff] %v585
  %629 = vst [vmem:[%s3 + $0x120] sm:$0xff] %v586
  %630 = vst [vmem:[%s3 + $0x128] sm:$0xff] %v587
  %631 = vst [vmem:[%s3 + $0x130] sm:$0xff] %v588
  %632 = vst [vmem:[%s3 + $0x138] sm:$0xff] %v589
  %633 = vst [vmem:[%s3 + $0x140] sm:$0xff] %v590
  %634 = vst [vmem:[%s3 + $0x148] sm:$0xff] %v591
  %635 = vst [vmem:[%s3 + $0x150] sm:$0xff] %v592
  // Predicated region
  $region18: #{branchnet_forward.4} parent=0 // pred_check
    %p636 = pneg %p15
  $region19: #{branchnet_forward.4} parent=0 // pred_check_branch
    %638 = sbr.rel (%p636) target = $region21
  $region20: #{branchnet_forward.4} parent=0 // pred_region
    %v639 = vld [vmem:[%s3] sm:$0xff]
    %v640 = vld [vmem:[%s3 + $0x8] sm:$0xff]
    %v641 = vld [vmem:[%s3 + $0x10] sm:$0xff]
    %v642 = vld [vmem:[%s3 + $0x18] sm:$0xff]
    %v643 = vld [vmem:[%s3 + $0x20] sm:$0xff]
    %v644 = vld [vmem:[%s3 + $0x28] sm:$0xff]
    %v645 = vld [vmem:[%s3 + $0x30] sm:$0xff]
    %v646 = vld [vmem:[%s3 + $0x38] sm:$0xff]
    %v647 = vld [vmem:[%s3 + $0x40] sm:$0xff]
    %v648 = vld [vmem:[%s3 + $0x48] sm:$0xff]
    %v649 = vld [vmem:[%s3 + $0x50] sm:$0xff]
    %v650 = vld [vmem:[%s3 + $0x58] sm:$0xff]
    %v651 = vld [vmem:[%s3 + $0x60] sm:$0xff]
    %v652 = vld [vmem:[%s3 + $0x68] sm:$0xff]
    %v653 = vld [vmem:[%s3 + $0x70] sm:$0xff]
    %v654 = vld [vmem:[%s3 + $0x78] sm:$0xff]
    %v655 = vld [vmem:[%s3 + $0x80] sm:$0xff]
    %v656 = vld [vmem:[%s3 + $0x88] sm:$0xff]
    %v657 = vld [vmem:[%s3 + $0x90] sm:$0xff]
    %v658 = vld [vmem:[%s3 + $0x98] sm:$0xff]
    %v659 = vld [vmem:[%s3 + $0xa0] sm:$0xff]
    %v660 = vld [vmem:[%s3 + $0xa8] sm:$0xff]
    %v661 = vld [vmem:[%s3 + $0xb0] sm:$0xff]
    %v662 = vld [vmem:[%s3 + $0xb8] sm:$0xff]
    %v663 = vld [vmem:[%s3 + $0xc0] sm:$0xff]
    %v664 = vld [vmem:[%s3 + $0xc8] sm:$0xff]
    %v665 = vld [vmem:[%s3 + $0xd0] sm:$0xff]
    %v666 = vld [vmem:[%s3 + $0xd8] sm:$0xff]
    %v667 = vld [vmem:[%s3 + $0xe0] sm:$0xff]
    %v668 = vld [vmem:[%s3 + $0xe8] sm:$0xff]
    %v669 = vld [vmem:[%s3 + $0xf0] sm:$0xff]
    %v670 = vld [vmem:[%s3 + $0xf8] sm:$0xff]
    %v671 = vld [vmem:[%s3 + $0x100] sm:$0xff]
    %v672 = vld [vmem:[%s3 + $0x108] sm:$0xff]
    %v673 = vld [vmem:[%s3 + $0x110] sm:$0xff]
    %v674 = vld [vmem:[%s3 + $0x118] sm:$0xff]
    %v675 = vld [vmem:[%s3 + $0x120] sm:$0xff]
    %v676 = vld [vmem:[%s3 + $0x128] sm:$0xff]
    %v677 = vld [vmem:[%s3 + $0x130] sm:$0xff]
    %v678 = vld [vmem:[%s3 + $0x138] sm:$0xff]
    %v679 = vld [vmem:[%s3 + $0x140] sm:$0xff]
    %v680 = vld [vmem:[%s3 + $0x148] sm:$0xff]
    %v681 = vld [vmem:[%s3 + $0x150] sm:$0xff]
    %v682 = vld [vmem:[%s2] sm:$0x1]
    %v684 = vlaneseq
    %v685 = vshrl.u32 %v684, 7
    %v686 = vsub.s32 0, %v685
    %v687 = vrot.slane %v682, %v686
    %v689 = vadd.f32 %v639, %v687
    %v690 = vadd.f32 %v640, %v687
    %v691 = vadd.f32 %v641, %v687
    %v692 = vadd.f32 %v642, %v687
    %v693 = vadd.f32 %v643, %v687
    %v694 = vadd.f32 %v644, %v687
    %v695 = vadd.f32 %v645, %v687
    %v696 = vadd.f32 %v646, %v687
    %v697 = vadd.f32 %v647, %v687
    %v698 = vadd.f32 %v648, %v687
    %v699 = vadd.f32 %v649, %v687
    %v700 = vadd.f32 %v650, %v687
    %v701 = vadd.f32 %v651, %v687
    %v702 = vadd.f32 %v652, %v687
    %v703 = vadd.f32 %v653, %v687
    %v704 = vadd.f32 %v654, %v687
    %v705 = vadd.f32 %v655, %v687
    %v706 = vadd.f32 %v656, %v687
    %v707 = vadd.f32 %v657, %v687
    %v708 = vadd.f32 %v658, %v687
    %v709 = vadd.f32 %v659, %v687
    %v710 = vadd.f32 %v660, %v687
    %v711 = vadd.f32 %v661, %v687
    %v712 = vadd.f32 %v662, %v687
    %v713 = vadd.f32 %v663, %v687
    %v714 = vadd.f32 %v664, %v687
    %v715 = vadd.f32 %v665, %v687
    %v716 = vadd.f32 %v666, %v687
    %v717 = vadd.f32 %v667, %v687
    %v718 = vadd.f32 %v668, %v687
    %v719 = vadd.f32 %v669, %v687
    %v720 = vadd.f32 %v670, %v687
    %v721 = vadd.f32 %v671, %v687
    %v722 = vadd.f32 %v672, %v687
    %v723 = vadd.f32 %v673, %v687
    %v724 = vadd.f32 %v674, %v687
    %v725 = vadd.f32 %v675, %v687
    %v726 = vadd.f32 %v676, %v687
    %v727 = vadd.f32 %v677, %v687
    %v728 = vadd.f32 %v678, %v687
    %v729 = vadd.f32 %v679, %v687
    %v730 = vadd.f32 %v680, %v687
    %v731 = vadd.f32 %v681, %v687
    %v732 = vmax.f32 %v689, 0.0
    %v733 = vmax.f32 %v690, 0.0
    %v734 = vmax.f32 %v691, 0.0
    %v735 = vmax.f32 %v692, 0.0
    %v736 = vmax.f32 %v693, 0.0
    %v737 = vmax.f32 %v694, 0.0
    %v738 = vmax.f32 %v695, 0.0
    %v739 = vmax.f32 %v696, 0.0
    %v740 = vmax.f32 %v697, 0.0
    %v741 = vmax.f32 %v698, 0.0
    %v742 = vmax.f32 %v699, 0.0
    %v743 = vmax.f32 %v700, 0.0
    %v744 = vmax.f32 %v701, 0.0
    %v745 = vmax.f32 %v702, 0.0
    %v746 = vmax.f32 %v703, 0.0
    %v747 = vmax.f32 %v704, 0.0
    %v748 = vmax.f32 %v705, 0.0
    %v749 = vmax.f32 %v706, 0.0
    %v750 = vmax.f32 %v707, 0.0
    %v751 = vmax.f32 %v708, 0.0
    %v752 = vmax.f32 %v709, 0.0
    %v753 = vmax.f32 %v710, 0.0
    %v754 = vmax.f32 %v711, 0.0
    %v755 = vmax.f32 %v712, 0.0
    %v756 = vmax.f32 %v713, 0.0
    %v757 = vmax.f32 %v714, 0.0
    %v758 = vmax.f32 %v715, 0.0
    %v759 = vmax.f32 %v716, 0.0
    %v760 = vmax.f32 %v717, 0.0
    %v761 = vmax.f32 %v718, 0.0
    %v762 = vmax.f32 %v719, 0.0
    %v763 = vmax.f32 %v720, 0.0
    %v764 = vmax.f32 %v721, 0.0
    %v765 = vmax.f32 %v722, 0.0
    %v766 = vmax.f32 %v723, 0.0
    %v767 = vmax.f32 %v724, 0.0
    %v768 = vmax.f32 %v725, 0.0
    %v769 = vmax.f32 %v726, 0.0
    %v770 = vmax.f32 %v727, 0.0
    %v771 = vmax.f32 %v728, 0.0
    %v772 = vmax.f32 %v729, 0.0
    %v773 = vmax.f32 %v730, 0.0
    %v774 = vmax.f32 %v731, 0.0
    %775 = vst [vmem:[%s3] sm:$0xff] %v732
    %776 = vst [vmem:[%s3 + $0x8] sm:$0xff] %v733
    %777 = vst [vmem:[%s3 + $0x10] sm:$0xff] %v734
    %778 = vst [vmem:[%s3 + $0x18] sm:$0xff] %v735
    %779 = vst [vmem:[%s3 + $0x20] sm:$0xff] %v736
    %780 = vst [vmem:[%s3 + $0x28] sm:$0xff] %v737
    %781 = vst [vmem:[%s3 + $0x30] sm:$0xff] %v738
    %782 = vst [vmem:[%s3 + $0x38] sm:$0xff] %v739
    %783 = vst [vmem:[%s3 + $0x40] sm:$0xff] %v740
    %784 = vst [vmem:[%s3 + $0x48] sm:$0xff] %v741
    %785 = vst [vmem:[%s3 + $0x50] sm:$0xff] %v742
    %786 = vst [vmem:[%s3 + $0x58] sm:$0xff] %v743
    %787 = vst [vmem:[%s3 + $0x60] sm:$0xff] %v744
    %788 = vst [vmem:[%s3 + $0x68] sm:$0xff] %v745
    %789 = vst [vmem:[%s3 + $0x70] sm:$0xff] %v746
    %790 = vst [vmem:[%s3 + $0x78] sm:$0xff] %v747
    %791 = vst [vmem:[%s3 + $0x80] sm:$0xff] %v748
    %792 = vst [vmem:[%s3 + $0x88] sm:$0xff] %v749
    %793 = vst [vmem:[%s3 + $0x90] sm:$0xff] %v750
    %794 = vst [vmem:[%s3 + $0x98] sm:$0xff] %v751
    %795 = vst [vmem:[%s3 + $0xa0] sm:$0xff] %v752
    %796 = vst [vmem:[%s3 + $0xa8] sm:$0xff] %v753
    %797 = vst [vmem:[%s3 + $0xb0] sm:$0xff] %v754
    %798 = vst [vmem:[%s3 + $0xb8] sm:$0xff] %v755
    %799 = vst [vmem:[%s3 + $0xc0] sm:$0xff] %v756
    %800 = vst [vmem:[%s3 + $0xc8] sm:$0xff] %v757
    %801 = vst [vmem:[%s3 + $0xd0] sm:$0xff] %v758
    %802 = vst [vmem:[%s3 + $0xd8] sm:$0xff] %v759
    %803 = vst [vmem:[%s3 + $0xe0] sm:$0xff] %v760
    %804 = vst [vmem:[%s3 + $0xe8] sm:$0xff] %v761
    %805 = vst [vmem:[%s3 + $0xf0] sm:$0xff] %v762
    %806 = vst [vmem:[%s3 + $0xf8] sm:$0xff] %v763
    %807 = vst [vmem:[%s3 + $0x100] sm:$0xff] %v764
    %808 = vst [vmem:[%s3 + $0x108] sm:$0xff] %v765
    %809 = vst [vmem:[%s3 + $0x110] sm:$0xff] %v766
    %810 = vst [vmem:[%s3 + $0x118] sm:$0xff] %v767
    %811 = vst [vmem:[%s3 + $0x120] sm:$0xff] %v768
    %812 = vst [vmem:[%s3 + $0x128] sm:$0xff] %v769
    %813 = vst [vmem:[%s3 + $0x130] sm:$0xff] %v770
    %814 = vst [vmem:[%s3 + $0x138] sm:$0xff] %v771
    %815 = vst [vmem:[%s3 + $0x140] sm:$0xff] %v772
    %816 = vst [vmem:[%s3 + $0x148] sm:$0xff] %v773
    %817 = vst [vmem:[%s3 + $0x150] sm:$0xff] %v774
  $region21: #{branchnet_forward.4} parent=0 // pred_fallthru
    _
  // Predicated region
  $region22: #{branchnet_forward.4} parent=0 // pred_check
    _
  $region23: #{branchnet_forward.4} parent=0 // pred_check_branch
    %819 = sbr.rel (0) target = $region25
  $region24: #{branchnet_forward.4} parent=0 // pred_region
    _
  $region25: #{branchnet_forward.4} parent=0 // pred_fallthru
    _
  // Predicated region
  $region26: #{branchnet_forward.4} parent=0 // pred_check
    _
  $region27: #{branchnet_forward.4} parent=0 // pred_check_branch
    %821 = sbr.rel (0) target = $region29
  $region28: #{branchnet_forward.4} parent=0 // pred_region
    _
  $region29: #{branchnet_forward.4} parent=0 // pred_fallthru
    _

// kernel: branchnet_forward.5
$region0: #{branchnet_forward.5}
  #allocation0 [shape = 'u32[]', space=smem, size = 0x4, offset = 0x4, fixed_abs, tag = 'smem constant byte address 0x4 - core index']
  #allocation1 [shape = 'u32[144,128]{1,0:T(1,128)}', space=vmem, size = 0x12000, scoped, tag = 'internal scratch']
  %s0 = inlined_call_operand.vmem [shape: bf16[56,512], index: 0, kind: input, shape index: {}]
  %s1 = inlined_call_operand.vmem [shape: bf16[512,128], index: 1, kind: input, shape index: {}]
  %s2 = inlined_call_operand.vmem [shape: f32[1,128], index: 2, kind: input, shape index: {}]
  %s3 = inlined_call_operand.vmem [shape: f32[56,128], index: 3, kind: output, shape index: {}]
  %s4 = sld [smem:[#allocation0]]
  $region30: #{branchnet_forward.5} parent=0
    _
  %s6 = ssub.s32 1, %s4
  %s7 = scalar_select 0, %s6, %s4
  // Predicated region
  $region2: #{branchnet_forward.5} parent=0 // pred_check
    _
  $region3: #{branchnet_forward.5} parent=0 // pred_check_branch
    %9 = sbr.rel (0) target = $region5
  $region4: #{branchnet_forward.5} parent=0 // pred_region
    _
  $region5: #{branchnet_forward.5} parent=0 // pred_fallthru
    _
  // Predicated region
  $region6: #{branchnet_forward.5} parent=0 // pred_check
    _
  $region7: #{branchnet_forward.5} parent=0 // pred_check_branch
    %11 = sbr.rel (0) target = $region9
  $region8: #{branchnet_forward.5} parent=0 // pred_region
    _
  $region9: #{branchnet_forward.5} parent=0 // pred_fallthru
    _
  // Predicated region
  $region10: #{branchnet_forward.5} parent=0 // pred_check
    _
  $region11: #{branchnet_forward.5} parent=0 // pred_check_branch
    %13 = sbr.rel (0) target = $region13
  $region12: #{branchnet_forward.5} parent=0 // pred_region
    _
  $region13: #{branchnet_forward.5} parent=0 // pred_fallthru
    _
  %p15 = scmp.eq.s32.totalorder 0, 0
  // Predicated region
  $region14: #{branchnet_forward.5} parent=0 // pred_check
    %p16 = pneg %p15
  $region15: #{branchnet_forward.5} parent=0 // pred_check_branch
    %18 = sbr.rel (%p16) target = $region17
  $region16: #{branchnet_forward.5} parent=0 // pred_region
    %19 = vst [vmem:[%s3] sm:$0xff] 0.0
    %20 = vst [vmem:[%s3 + $0x8] sm:$0xff] 0.0
    %21 = vst [vmem:[%s3 + $0x10] sm:$0xff] 0.0
    %22 = vst [vmem:[%s3 + $0x18] sm:$0xff] 0.0
    %23 = vst [vmem:[%s3 + $0x20] sm:$0xff] 0.0
    %24 = vst [vmem:[%s3 + $0x28] sm:$0xff] 0.0
    %25 = vst [vmem:[%s3 + $0x30] sm:$0xff] 0.0
  $region17: #{branchnet_forward.5} parent=0 // pred_fallthru
    _
  %v26 = vld [vmem:[%s3] sm:$0xff]
  %v27 = vld [vmem:[%s3 + $0x8] sm:$0xff]
  %v28 = vld [vmem:[%s3 + $0x10] sm:$0xff]
  %v29 = vld [vmem:[%s3 + $0x18] sm:$0xff]
  %v30 = vld [vmem:[%s3 + $0x20] sm:$0xff]
  %v31 = vld [vmem:[%s3 + $0x28] sm:$0xff]
  %v32 = vld [vmem:[%s3 + $0x30] sm:$0xff]
  %v33 = vld [vmem:[%s0] sm:$0xff]
  %v34 = vld [vmem:[%s0 + $0x8] sm:$0xff]
  %v35 = vld [vmem:[%s0 + $0x10] sm:$0xff]
  %v36 = vld [vmem:[%s0 + $0x18] sm:$0xff]
  %v37 = vld [vmem:[%s0 + $0x20] sm:$0xff]
  %v38 = vld [vmem:[%s0 + $0x28] sm:$0xff]
  %v39 = vld [vmem:[%s0 + $0x30] sm:$0xff]
  %v40 = vld [vmem:[%s0 + $0x38] sm:$0xff]
  %v41 = vld [vmem:[%s0 + $0x40] sm:$0xff]
  %v42 = vld [vmem:[%s0 + $0x48] sm:$0xff]
  %v43 = vld [vmem:[%s0 + $0x50] sm:$0xff]
  %v44 = vld [vmem:[%s0 + $0x58] sm:$0xff]
  %v45 = vld [vmem:[%s0 + $0x60] sm:$0xff]
  %v46 = vld [vmem:[%s0 + $0x68] sm:$0xff]
  %v47 = vld [vmem:[%s1] sm:$0xf]
  %v48 = vld [vmem:[%s1 + $0x4] sm:$0xf]
  %v49 = vld [vmem:[%s1 + $0x8] sm:$0xf]
  %v50 = vld [vmem:[%s1 + $0xc] sm:$0xf]
  %v51 = vld [vmem:[%s1 + $0x10] sm:$0xf]
  %v52 = vld [vmem:[%s1 + $0x14] sm:$0xf]
  %v53 = vld [vmem:[%s1 + $0x18] sm:$0xf]
  %v54 = vld [vmem:[%s1 + $0x1c] sm:$0xf]
  %v55 = vld [vmem:[%s1 + $0x20] sm:$0xf]
  %v56 = vld [vmem:[%s1 + $0x24] sm:$0xf]
  %v57 = vld [vmem:[%s1 + $0x28] sm:$0xf]
  %v58 = vld [vmem:[%s1 + $0x2c] sm:$0xf]
  %v59 = vld [vmem:[%s1 + $0x30] sm:$0xf]
  %v60 = vld [vmem:[%s1 + $0x34] sm:$0xf]
  %v61 = vld [vmem:[%s1 + $0x38] sm:$0xf]
  %v62 = vld [vmem:[%s1 + $0x3c] sm:$0xf]
  %v63 = vld [vmem:[%s1 + $0x40] sm:$0xf]
  %v64 = vld [vmem:[%s1 + $0x44] sm:$0xf]
  %v65 = vld [vmem:[%s1 + $0x48] sm:$0xf]
  %v66 = vld [vmem:[%s1 + $0x4c] sm:$0xf]
  %v67 = vld [vmem:[%s1 + $0x50] sm:$0xf]
  %v68 = vld [vmem:[%s1 + $0x54] sm:$0xf]
  %v69 = vld [vmem:[%s1 + $0x58] sm:$0xf]
  %v70 = vld [vmem:[%s1 + $0x5c] sm:$0xf]
  %v71 = vld [vmem:[%s1 + $0x60] sm:$0xf]
  %v72 = vld [vmem:[%s1 + $0x64] sm:$0xf]
  %v73 = vld [vmem:[%s1 + $0x68] sm:$0xf]
  %v74 = vld [vmem:[%s1 + $0x6c] sm:$0xf]
  %v75 = vld [vmem:[%s1 + $0x70] sm:$0xf]
  %v76 = vld [vmem:[%s1 + $0x74] sm:$0xf]
  %v77 = vld [vmem:[%s1 + $0x78] sm:$0xf]
  %v78 = vld [vmem:[%s1 + $0x7c] sm:$0xf]
  %v79 = vld [vmem:[%s1 + $0x80] sm:$0xf]
  %v80 = vld [vmem:[%s1 + $0x84] sm:$0xf]
  %v81 = vld [vmem:[%s1 + $0x88] sm:$0xf]
  %v82 = vld [vmem:[%s1 + $0x8c] sm:$0xf]
  %v83 = vld [vmem:[%s1 + $0x90] sm:$0xf]
  %v84 = vld [vmem:[%s1 + $0x94] sm:$0xf]
  %v85 = vld [vmem:[%s1 + $0x98] sm:$0xf]
  %v86 = vld [vmem:[%s1 + $0x9c] sm:$0xf]
  %v87 = vld [vmem:[%s1 + $0xa0] sm:$0xf]
  %v88 = vld [vmem:[%s1 + $0xa4] sm:$0xf]
  %v89 = vld [vmem:[%s1 + $0xa8] sm:$0xf]
  %v90 = vld [vmem:[%s1 + $0xac] sm:$0xf]
  %v91 = vld [vmem:[%s1 + $0xb0] sm:$0xf]
  %v92 = vld [vmem:[%s1 + $0xb4] sm:$0xf]
  %v93 = vld [vmem:[%s1 + $0xb8] sm:$0xf]
  %v94 = vld [vmem:[%s1 + $0xbc] sm:$0xf]
  %v95 = vld [vmem:[%s1 + $0xc0] sm:$0xf]
  %v96 = vld [vmem:[%s1 + $0xc4] sm:$0xf]
  %v97 = vld [vmem:[%s1 + $0xc8] sm:$0xf]
  %v98 = vld [vmem:[%s1 + $0xcc] sm:$0xf]
  %v99 = vld [vmem:[%s1 + $0xd0] sm:$0xf]
  %v100 = vld [vmem:[%s1 + $0xd4] sm:$0xf]
  %v101 = vld [vmem:[%s1 + $0xd8] sm:$0xf]
  %v102 = vld [vmem:[%s1 + $0xdc] sm:$0xf]
  %v103 = vld [vmem:[%s1 + $0xe0] sm:$0xf]
  %v104 = vld [vmem:[%s1 + $0xe4] sm:$0xf]
  %v105 = vld [vmem:[%s1 + $0xe8] sm:$0xf]
  %v106 = vld [vmem:[%s1 + $0xec] sm:$0xf]
  %v107 = vld [vmem:[%s1 + $0xf0] sm:$0xf]
  %v108 = vld [vmem:[%s1 + $0xf4] sm:$0xf]
  %v109 = vld [vmem:[%s1 + $0xf8] sm:$0xf]
  %v110 = vld [vmem:[%s1 + $0xfc] sm:$0xf]
  %v125 = vunpack.c.l.b16 %v33
  %v126 = vunpack.c.h.b16 %v33
  %v127 = vunpack.c.l.b16 %v34
  %v128 = vunpack.c.h.b16 %v34
  %v129 = vunpack.c.l.b16 %v35
  %v130 = vunpack.c.h.b16 %v35
  %v131 = vunpack.c.l.b16 %v36
  %v132 = vunpack.c.h.b16 %v36
  %v133 = vunpack.c.l.b16 %v37
  %v134 = vunpack.c.h.b16 %v37
  %v135 = vunpack.c.l.b16 %v38
  %v136 = vunpack.c.h.b16 %v38
  %v137 = vunpack.c.l.b16 %v39
  %v138 = vunpack.c.h.b16 %v39
  %v139 = vunpack.c.l.b16 %v40
  %v140 = vunpack.c.h.b16 %v40
  %v141 = vunpack.c.l.b16 %v41
  %v142 = vunpack.c.h.b16 %v41
  %v143 = vunpack.c.l.b16 %v42
  %v144 = vunpack.c.h.b16 %v42
  %v145 = vunpack.c.l.b16 %v43
  %v146 = vunpack.c.h.b16 %v43
  %v147 = vunpack.c.l.b16 %v44
  %v148 = vunpack.c.h.b16 %v44
  %v149 = vunpack.c.l.b16 %v45
  %v150 = vunpack.c.h.b16 %v45
  %v151 = vunpack.c.l.b16 %v46
  %v152 = vunpack.c.h.b16 %v46
  %v153 = vpack.c.b16 %v129, %v125
  %v154 = vpack.c.b16 %v130, %v126
  %v155 = vpack.c.b16 %v131, %v127
  %v156 = vpack.c.b16 %v132, %v128
  %v157 = vpack.c.b16 %v137, %v133
  %v158 = vpack.c.b16 %v138, %v134
  %v159 = vpack.c.b16 %v139, %v135
  %v160 = vpack.c.b16 %v140, %v136
  %v161 = vpack.c.b16 %v145, %v141
  %v162 = vpack.c.b16 %v146, %v142
  %v163 = vpack.c.b16 %v147, %v143
  %v164 = vpack.c.b16 %v148, %v144
  %v165 = vpack.c.b16 %v149, %v149
  %v166 = vpack.c.b16 %v150, %v150
  %v167 = vpack.c.b16 %v151, %v151
  %v168 = vpack.c.b16 %v152, %v152
  %v249 = vunpack.c.l.b16 %v47
  %v250 = vunpack.c.l.b16 %v48
  %v251 = vunpack.c.l.b16 %v49
  %v252 = vunpack.c.l.b16 %v50
  %v253 = vunpack.c.l.b16 %v51
  %v254 = vunpack.c.l.b16 %v52
  %v255 = vunpack.c.l.b16 %v53
  %v256 = vunpack.c.l.b16 %v54
  %v257 = vunpack.c.l.b16 %v55
  %v258 = vunpack.c.l.b16 %v56
  %v259 = vunpack.c.l.b16 %v57
  %v260 = vunpack.c.l.b16 %v58
  %v261 = vunpack.c.l.b16 %v59
  %v262 = vunpack.c.l.b16 %v60
  %v263 = vunpack.c.l.b16 %v61
  %v264 = vunpack.c.l.b16 %v62
  %v265 = vunpack.c.l.b16 %v63
  %v266 = vunpack.c.l.b16 %v64
  %v267 = vunpack.c.l.b16 %v65
  %v268 = vunpack.c.l.b16 %v66
  %v269 = vunpack.c.l.b16 %v67
  %v270 = vunpack.c.l.b16 %v68
  %v271 = vunpack.c.l.b16 %v69
  %v272 = vunpack.c.l.b16 %v70
  %v273 = vunpack.c.l.b16 %v71
  %v274 = vunpack.c.l.b16 %v72
  %v275 = vunpack.c.l.b16 %v73
  %v276 = vunpack.c.l.b16 %v74
  %v277 = vunpack.c.l.b16 %v75
  %v278 = vunpack.c.l.b16 %v76
  %v279 = vunpack.c.l.b16 %v77
  %v280 = vunpack.c.l.b16 %v78
  %v281 = vunpack.c.l.b16 %v79
  %v282 = vunpack.c.l.b16 %v80
  %v283 = vunpack.c.l.b16 %v81
  %v284 = vunpack.c.l.b16 %v82
  %v285 = vunpack.c.l.b16 %v83
  %v286 = vunpack.c.l.b16 %v84
  %v287 = vunpack.c.l.b16 %v85
  %v288 = vunpack.c.l.b16 %v86
  %v289 = vunpack.c.l.b16 %v87
  %v290 = vunpack.c.l.b16 %v88
  %v291 = vunpack.c.l.b16 %v89
  %v292 = vunpack.c.l.b16 %v90
  %v293 = vunpack.c.l.b16 %v91
  %v294 = vunpack.c.l.b16 %v92
  %v295 = vunpack.c.l.b16 %v93
  %v296 = vunpack.c.l.b16 %v94
  %v297 = vunpack.c.l.b16 %v95
  %v298 = vunpack.c.l.b16 %v96
  %v299 = vunpack.c.l.b16 %v97
  %v300 = vunpack.c.l.b16 %v98
  %v301 = vunpack.c.l.b16 %v99
  %v302 = vunpack.c.l.b16 %v100
  %v303 = vunpack.c.l.b16 %v101
  %v304 = vunpack.c.l.b16 %v102
  %v305 = vunpack.c.l.b16 %v103
  %v306 = vunpack.c.l.b16 %v104
  %v307 = vunpack.c.l.b16 %v105
  %v308 = vunpack.c.l.b16 %v106
  %v309 = vunpack.c.l.b16 %v107
  %v310 = vunpack.c.l.b16 %v108
  %v311 = vunpack.c.l.b16 %v109
  %v312 = vunpack.c.l.b16 %v110
  %v313 = vpack.c.b16 %v250, %v249
  %v314 = vpack.c.b16 %v252, %v251
  %v315 = vpack.c.b16 %v254, %v253
  %v316 = vpack.c.b16 %v256, %v255
  %v317 = vpack.c.b16 %v258, %v257
  %v318 = vpack.c.b16 %v260, %v259
  %v319 = vpack.c.b16 %v262, %v261
  %v320 = vpack.c.b16 %v264, %v263
  %v321 = vpack.c.b16 %v266, %v265
  %v322 = vpack.c.b16 %v268, %v267
  %v323 = vpack.c.b16 %v270, %v269
  %v324 = vpack.c.b16 %v272, %v271
  %v325 = vpack.c.b16 %v274, %v273
  %v326 = vpack.c.b16 %v276, %v275
  %v327 = vpack.c.b16 %v278, %v277
  %v328 = vpack.c.b16 %v280, %v279
  %v329 = vpack.c.b16 %v282, %v281
  %v330 = vpack.c.b16 %v284, %v283
  %v331 = vpack.c.b16 %v286, %v285
  %v332 = vpack.c.b16 %v288, %v287
  %v333 = vpack.c.b16 %v290, %v289
  %v334 = vpack.c.b16 %v292, %v291
  %v335 = vpack.c.b16 %v294, %v293
  %v336 = vpack.c.b16 %v296, %v295
  %v337 = vpack.c.b16 %v298, %v297
  %v338 = vpack.c.b16 %v300, %v299
  %v339 = vpack.c.b16 %v302, %v301
  %v340 = vpack.c.b16 %v304, %v303
  %v341 = vpack.c.b16 %v306, %v305
  %v342 = vpack.c.b16 %v308, %v307
  %v343 = vpack.c.b16 %v310, %v309
  %v344 = vpack.c.b16 %v312, %v311
  %377 = vmatprep.subr.bf16.mxu0 0
  %378 = vmatpush1.bf16.msra.mxu0 %v313
  %379 = vmatprep.subr.bf16.mxu0 0
  %380 = vmatpush1.bf16.msra.mxu0 %v314
  %381 = vmatprep.subr.bf16.mxu0 0
  %382 = vmatpush1.bf16.msra.mxu0 %v315
  %383 = vmatprep.subr.bf16.mxu0 0
  %384 = vmatpush1.bf16.msra.mxu0 %v316
  %385 = vmatprep.subr.bf16.mxu0 0
  %386 = vmatpush1.bf16.msra.mxu0 %v317
  %387 = vmatprep.subr.bf16.mxu0 0
  %388 = vmatpush1.bf16.msra.mxu0 %v318
  %389 = vmatprep.subr.bf16.mxu0 0
  %390 = vmatpush1.bf16.msra.mxu0 %v319
  %391 = vmatprep.subr.bf16.mxu0 0
  %392 = vmatpush1.bf16.msra.mxu0 %v320
  %393 = vmatprep.subr.bf16.mxu0 0
  %394 = vmatpush1.bf16.msra.mxu0 %v321
  %395 = vmatprep.subr.bf16.mxu0 0
  %396 = vmatpush1.bf16.msra.mxu0 %v322
  %397 = vmatprep.subr.bf16.mxu0 0
  %398 = vmatpush1.bf16.msra.mxu0 %v323
  %399 = vmatprep.subr.bf16.mxu0 0
  %400 = vmatpush1.bf16.msra.mxu0 %v324
  %401 = vmatprep.subr.bf16.mxu0 0
  %402 = vmatpush1.bf16.msra.mxu0 %v325
  %403 = vmatprep.subr.bf16.mxu0 0
  %404 = vmatpush1.bf16.msra.mxu0 %v326
  %405 = vmatprep.subr.bf16.mxu0 0
  %406 = vmatpush1.bf16.msra.mxu0 %v327
  %407 = vmatprep.subr.bf16.mxu0 0
  %408 = vmatpush1.bf16.msra.mxu0 %v328
  %409 = vmatprep.mubr.bf16.mxu0 %v154
  %410 = vmatmul.mubr.bf16.gmra.mrb[0].mxu0 %v153
  %v411 = vpop.f32.mrb[0].mxu0
  %v412 = vadd.f32 0.0, %v411
  %v413 = vpop.f32.mrb[0].mxu0
  %v414 = vpop.f32.mrb[0].mxu0
  %v415 = vadd.f32 0.0, %v414
  %v416 = vpop.f32.mrb[0].mxu0
  %417 = vmatprep.mubr.bf16.mxu0 %v158
  %418 = vmatmul.mubr.bf16.gmra.mrb[0].mxu0 %v157
  %v419 = vpop.f32.mrb[0].mxu0
  %v420 = vadd.f32 0.0, %v419
  %v421 = vpop.f32.mrb[0].mxu0
  %v422 = vpop.f32.mrb[0].mxu0
  %v423 = vadd.f32 0.0, %v422
  %v424 = vpop.f32.mrb[0].mxu0
  %425 = vmatprep.mubr.bf16.mxu0 %v162
  %426 = vmatmul.mubr.bf16.gmra.mrb[0].mxu0 %v161
  %v427 = vpop.f32.mrb[0].mxu0
  %v428 = vadd.f32 0.0, %v427
  %v429 = vpop.f32.mrb[0].mxu0
  %v430 = vpop.f32.mrb[0].mxu0
  %v431 = vadd.f32 0.0, %v430
  %v432 = vpop.f32.mrb[0].mxu0
  %433 = vmatprep.mubr.bf16.mxu0 %v166
  %434 = vmatmul.mubr.bf16.gmra.mrb[0].mxu0 %v165
  %v435 = vpop.f32.mrb[0].mxu0
  %v436 = vadd.f32 0.0, %v435
  %v437 = vpop.f32.mrb[0].mxu0
  %v438 = vpop.f32.mrb[0].mxu0
  %v439 = vpop.f32.mrb[0].mxu0
  %440 = vdwg.mxu0
  %441 = vmatprep.subr.bf16.mxu0 0
  %442 = vmatpush1.bf16.msra.mxu0 %v329
  %443 = vmatprep.subr.bf16.mxu0 0
  %444 = vmatpush1.bf16.msra.mxu0 %v330
  %445 = vmatprep.subr.bf16.mxu0 0
  %446 = vmatpush1.bf16.msra.mxu0 %v331
  %447 = vmatprep.subr.bf16.mxu0 0
  %448 = vmatpush1.bf16.msra.mxu0 %v332
  %449 = vmatprep.subr.bf16.mxu0 0
  %450 = vmatpush1.bf16.msra.mxu0 %v333
  %451 = vmatprep.subr.bf16.mxu0 0
  %452 = vmatpush1.bf16.msra.mxu0 %v334
  %453 = vmatprep.subr.bf16.mxu0 0
  %454 = vmatpush1.bf16.msra.mxu0 %v335
  %455 = vmatprep.subr.bf16.mxu0 0
  %456 = vmatpush1.bf16.msra.mxu0 %v336
  %457 = vmatprep.subr.bf16.mxu0 0
  %458 = vmatpush1.bf16.msra.mxu0 %v337
  %459 = vmatprep.subr.bf16.mxu0 0
  %460 = vmatpush1.bf16.msra.mxu0 %v338
  %461 = vmatprep.subr.bf16.mxu0 0
  %462 = vmatpush1.bf16.msra.mxu0 %v339
  %463 = vmatprep.subr.bf16.mxu0 0
  %464 = vmatpush1.bf16.msra.mxu0 %v340
  %465 = vmatprep.subr.bf16.mxu0 0
  %466 = vmatpush1.bf16.msra.mxu0 %v341
  %467 = vmatprep.subr.bf16.mxu0 0
  %468 = vmatpush1.bf16.msra.mxu0 %v342
  %469 = vmatprep.subr.bf16.mxu0 0
  %470 = vmatpush1.bf16.msra.mxu0 %v343
  %471 = vmatprep.subr.bf16.mxu0 0
  %472 = vmatpush1.bf16.msra.mxu0 %v344
  %473 = vmatprep.mubr.bf16.mxu0 %v156
  %474 = vmatmul.mubr.bf16.gmra.mrb[0].mxu0 %v155
  %v475 = vpop.f32.mrb[0].mxu0
  %v476 = vadd.f32 %v412, %v475
  %v477 = vpop.f32.mrb[0].mxu0
  %v478 = vpop.f32.mrb[0].mxu0
  %v479 = vadd.f32 %v415, %v478
  %v480 = vpop.f32.mrb[0].mxu0
  %481 = vmatprep.mubr.bf16.mxu0 %v160
  %482 = vmatmul.mubr.bf16.gmra.mrb[0].mxu0 %v159
  %v483 = vpop.f32.mrb[0].mxu0
  %v484 = vadd.f32 %v420, %v483
  %v485 = vpop.f32.mrb[0].mxu0
  %v486 = vpop.f32.mrb[0].mxu0
  %v487 = vadd.f32 %v423, %v486
  %v488 = vpop.f32.mrb[0].mxu0
  %489 = vmatprep.mubr.bf16.mxu0 %v164
  %490 = vmatmul.mubr.bf16.gmra.mrb[0].mxu0 %v163
  %v491 = vpop.f32.mrb[0].mxu0
  %v492 = vadd.f32 %v428, %v491
  %v493 = vpop.f32.mrb[0].mxu0
  %v494 = vpop.f32.mrb[0].mxu0
  %v495 = vadd.f32 %v431, %v494
  %v496 = vpop.f32.mrb[0].mxu0
  %497 = vmatprep.mubr.bf16.mxu0 %v168
  %498 = vmatmul.mubr.bf16.gmra.mrb[0].mxu0 %v167
  %v499 = vpop.f32.mrb[0].mxu0
  %v500 = vadd.f32 %v436, %v499
  %v501 = vpop.f32.mrb[0].mxu0
  %v502 = vpop.f32.mrb[0].mxu0
  %v503 = vpop.f32.mrb[0].mxu0
  %504 = vdwg.mxu0
  %v505 = vadd.f32 %v26, %v476
  %v506 = vadd.f32 %v27, %v479
  %v507 = vadd.f32 %v28, %v484
  %v508 = vadd.f32 %v29, %v487
  %v509 = vadd.f32 %v30, %v492
  %v510 = vadd.f32 %v31, %v495
  %v511 = vadd.f32 %v32, %v500
  %512 = vst [vmem:[%s3] sm:$0xff] %v505
  %513 = vst [vmem:[%s3 + $0x8] sm:$0xff] %v506
  %514 = vst [vmem:[%s3 + $0x10] sm:$0xff] %v507
  %515 = vst [vmem:[%s3 + $0x18] sm:$0xff] %v508
  %516 = vst [vmem:[%s3 + $0x20] sm:$0xff] %v509
  %517 = vst [vmem:[%s3 + $0x28] sm:$0xff] %v510
  %518 = vst [vmem:[%s3 + $0x30] sm:$0xff] %v511
  // Predicated region
  $region18: #{branchnet_forward.5} parent=0 // pred_check
    %p519 = pneg %p15
  $region19: #{branchnet_forward.5} parent=0 // pred_check_branch
    %521 = sbr.rel (%p519) target = $region21
  $region20: #{branchnet_forward.5} parent=0 // pred_region
    %v522 = vld [vmem:[%s3] sm:$0xff]
    %v523 = vld [vmem:[%s3 + $0x8] sm:$0xff]
    %v524 = vld [vmem:[%s3 + $0x10] sm:$0xff]
    %v525 = vld [vmem:[%s3 + $0x18] sm:$0xff]
    %v526 = vld [vmem:[%s3 + $0x20] sm:$0xff]
    %v527 = vld [vmem:[%s3 + $0x28] sm:$0xff]
    %v528 = vld [vmem:[%s3 + $0x30] sm:$0xff]
    %v529 = vld [vmem:[%s2] sm:$0x1]
    %v531 = vlaneseq
    %v532 = vshrl.u32 %v531, 7
    %v533 = vsub.s32 0, %v532
    %v534 = vrot.slane %v529, %v533
    %v536 = vadd.f32 %v522, %v534
    %v537 = vadd.f32 %v523, %v534
    %v538 = vadd.f32 %v524, %v534
    %v539 = vadd.f32 %v525, %v534
    %v540 = vadd.f32 %v526, %v534
    %v541 = vadd.f32 %v527, %v534
    %v542 = vadd.f32 %v528, %v534
    %v543 = vmax.f32 %v536, 0.0
    %v544 = vmax.f32 %v537, 0.0
    %v545 = vmax.f32 %v538, 0.0
    %v546 = vmax.f32 %v539, 0.0
    %v547 = vmax.f32 %v540, 0.0
    %v548 = vmax.f32 %v541, 0.0
    %v549 = vmax.f32 %v542, 0.0
    %550 = vst [vmem:[%s3] sm:$0xff] %v543
    %551 = vst [vmem:[%s3 + $0x8] sm:$0xff] %v544
    %552 = vst [vmem:[%s3 + $0x10] sm:$0xff] %v545
    %553 = vst [vmem:[%s3 + $0x18] sm:$0xff] %v546
    %554 = vst [vmem:[%s3 + $0x20] sm:$0xff] %v547
    %555 = vst [vmem:[%s3 + $0x28] sm:$0xff] %v548
    %556 = vst [vmem:[%s3 + $0x30] sm:$0xff] %v549
  $region21: #{branchnet_forward.5} parent=0 // pred_fallthru
    _
  // Predicated region
  $region22: #{branchnet_forward.5} parent=0 // pred_check
    _
  $region23: #{branchnet_forward.5} parent=0 // pred_check_branch
    %558 = sbr.rel (0) target = $region25
  $region24: #{branchnet_forward.5} parent=0 // pred_region
    _
  $region25: #{branchnet_forward.5} parent=0 // pred_fallthru
    _
  // Predicated region
  $region26: #{branchnet_forward.5} parent=0 // pred_check
    _
  $region27: #{branchnet_forward.5} parent=0 // pred_check_branch
    %560 = sbr.rel (0) target = $region29
  $region28: #{branchnet_forward.5} parent=0 // pred_region
    _
  $region29: #{branchnet_forward.5} parent=0 // pred_fallthru
    _

// kernel: branchnet_forward.7
$region0: #{branchnet_forward.7}
  #allocation0 [shape = 'u32[]', space=smem, size = 0x4, offset = 0x4, fixed_abs, tag = 'smem constant byte address 0x4 - core index']
  #allocation1 [shape = 'u32[144,128]{1,0:T(1,128)}', space=vmem, size = 0x12000, scoped, tag = 'internal scratch']
  %s0 = inlined_call_operand.vmem [shape: bf16[8,1152], index: 0, kind: input, shape index: {}]
  %s1 = inlined_call_operand.vmem [shape: bf16[1152,256], index: 1, kind: input, shape index: {}]
  %s2 = inlined_call_operand.vmem [shape: f32[1,256], index: 2, kind: input, shape index: {}]
  %s3 = inlined_call_operand.vmem [shape: f32[8,256], index: 3, kind: output, shape index: {}]
  %s4 = sld [smem:[#allocation0]]
  $region30: #{branchnet_forward.7} parent=0
    _
  %s6 = ssub.s32 1, %s4
  %s7 = scalar_select 0, %s6, %s4
  // Predicated region
  $region2: #{branchnet_forward.7} parent=0 // pred_check
    _
  $region3: #{branchnet_forward.7} parent=0 // pred_check_branch
    %9 = sbr.rel (0) target = $region5
  $region4: #{branchnet_forward.7} parent=0 // pred_region
    _
  $region5: #{branchnet_forward.7} parent=0 // pred_fallthru
    _
  // Predicated region
  $region6: #{branchnet_forward.7} parent=0 // pred_check
    _
  $region7: #{branchnet_forward.7} parent=0 // pred_check_branch
    %11 = sbr.rel (0) target = $region9
  $region8: #{branchnet_forward.7} parent=0 // pred_region
    _
  $region9: #{branchnet_forward.7} parent=0 // pred_fallthru
    _
  // Predicated region
  $region10: #{branchnet_forward.7} parent=0 // pred_check
    _
  $region11: #{branchnet_forward.7} parent=0 // pred_check_branch
    %13 = sbr.rel (0) target = $region13
  $region12: #{branchnet_forward.7} parent=0 // pred_region
    _
  $region13: #{branchnet_forward.7} parent=0 // pred_fallthru
    _
  %p15 = scmp.eq.s32.totalorder 0, 0
  // Predicated region
  $region14: #{branchnet_forward.7} parent=0 // pred_check
    %p16 = pneg %p15
  $region15: #{branchnet_forward.7} parent=0 // pred_check_branch
    %18 = sbr.rel (%p16) target = $region17
  $region16: #{branchnet_forward.7} parent=0 // pred_region
    %19 = vst [vmem:[%s3] sm:$0xff] 0.0
    %20 = vst [vmem:[%s3 + $0x8] sm:$0xff] 0.0
  $region17: #{branchnet_forward.7} parent=0 // pred_fallthru
    _
  %v21 = vld [vmem:[%s3] sm:$0xff]
  %v22 = vld [vmem:[%s3 + $0x8] sm:$0xff]
  %v23 = vld [vmem:[%s0] sm:$0xff]
  %v24 = vld [vmem:[%s0 + $0x8] sm:$0xff]
  %v25 = vld [vmem:[%s0 + $0x10] sm:$0xff]
  %v26 = vld [vmem:[%s0 + $0x18] sm:$0xff]
  %v27 = vld [vmem:[%s0 + $0x20] sm:$0xf]
  %v28 = vld [vmem:[%s1] sm:$0xff]
  %v29 = vld [vmem:[%s1 + $0x8] sm:$0xff]
  %v30 = vld [vmem:[%s1 + $0x10] sm:$0xff]
  %v31 = vld [vmem:[%s1 + $0x18] sm:$0xff]
  %v32 = vld [vmem:[%s1 + $0x20] sm:$0xff]
  %v33 = vld [vmem:[%s1 + $0x28] sm:$0xff]
  %v34 = vld [vmem:[%s1 + $0x30] sm:$0xff]
  %v35 = vld [vmem:[%s1 + $0x38] sm:$0xff]
  %v36 = vld [vmem:[%s1 + $0x40] sm:$0xff]
  %v37 = vld [vmem:[%s1 + $0x48] sm:$0xff]
  %v38 = vld [vmem:[%s1 + $0x50] sm:$0xff]
  %v39 = vld [vmem:[%s1 + $0x58] sm:$0xff]
  %v40 = vld [vmem:[%s1 + $0x60] sm:$0xff]
  %v41 = vld [vmem:[%s1 + $0x68] sm:$0xff]
  %v42 = vld [vmem:[%s1 + $0x70] sm:$0xff]
  %v43 = vld [vmem:[%s1 + $0x78] sm:$0xff]
  %v44 = vld [vmem:[%s1 + $0x80] sm:$0xff]
  %v45 = vld [vmem:[%s1 + $0x88] sm:$0xff]
  %v46 = vld [vmem:[%s1 + $0x90] sm:$0xff]
  %v47 = vld [vmem:[%s1 + $0x98] sm:$0xff]
  %v48 = vld [vmem:[%s1 + $0xa0] sm:$0xff]
  %v49 = vld [vmem:[%s1 + $0xa8] sm:$0xff]
  %v50 = vld [vmem:[%s1 + $0xb0] sm:$0xff]
  %v51 = vld [vmem:[%s1 + $0xb8] sm:$0xff]
  %v52 = vld [vmem:[%s1 + $0xc0] sm:$0xff]
  %v53 = vld [vmem:[%s1 + $0xc8] sm:$0xff]
  %v54 = vld [vmem:[%s1 + $0xd0] sm:$0xff]
  %v55 = vld [vmem:[%s1 + $0xd8] sm:$0xff]
  %v56 = vld [vmem:[%s1 + $0xe0] sm:$0xff]
  %v57 = vld [vmem:[%s1 + $0xe8] sm:$0xff]
  %v58 = vld [vmem:[%s1 + $0xf0] sm:$0xff]
  %v59 = vld [vmem:[%s1 + $0xf8] sm:$0xff]
  %v60 = vld [vmem:[%s1 + $0x100] sm:$0xff]
  %v61 = vld [vmem:[%s1 + $0x108] sm:$0xff]
  %v62 = vld [vmem:[%s1 + $0x110] sm:$0xff]
  %v63 = vld [vmem:[%s1 + $0x118] sm:$0xff]
  %v64 = vld [vmem:[%s1 + $0x120] sm:$0xff]
  %v65 = vld [vmem:[%s1 + $0x128] sm:$0xff]
  %v66 = vld [vmem:[%s1 + $0x130] sm:$0xff]
  %v67 = vld [vmem:[%s1 + $0x138] sm:$0xff]
  %v68 = vld [vmem:[%s1 + $0x140] sm:$0xff]
  %v69 = vld [vmem:[%s1 + $0x148] sm:$0xff]
  %v70 = vld [vmem:[%s1 + $0x150] sm:$0xff]
  %v71 = vld [vmem:[%s1 + $0x158] sm:$0xff]
  %v72 = vld [vmem:[%s1 + $0x160] sm:$0xff]
  %v73 = vld [vmem:[%s1 + $0x168] sm:$0xff]
  %v74 = vld [vmem:[%s1 + $0x170] sm:$0xff]
  %v75 = vld [vmem:[%s1 + $0x178] sm:$0xff]
  %v76 = vld [vmem:[%s1 + $0x180] sm:$0xff]
  %v77 = vld [vmem:[%s1 + $0x188] sm:$0xff]
  %v78 = vld [vmem:[%s1 + $0x190] sm:$0xff]
  %v79 = vld [vmem:[%s1 + $0x198] sm:$0xff]
  %v80 = vld [vmem:[%s1 + $0x1a0] sm:$0xff]
  %v81 = vld [vmem:[%s1 + $0x1a8] sm:$0xff]
  %v82 = vld [vmem:[%s1 + $0x1b0] sm:$0xff]
  %v83 = vld [vmem:[%s1 + $0x1b8] sm:$0xff]
  %v84 = vld [vmem:[%s1 + $0x1c0] sm:$0xff]
  %v85 = vld [vmem:[%s1 + $0x1c8] sm:$0xff]
  %v86 = vld [vmem:[%s1 + $0x1d0] sm:$0xff]
  %v87 = vld [vmem:[%s1 + $0x1d8] sm:$0xff]
  %v88 = vld [vmem:[%s1 + $0x1e0] sm:$0xff]
  %v89 = vld [vmem:[%s1 + $0x1e8] sm:$0xff]
  %v90 = vld [vmem:[%s1 + $0x1f0] sm:$0xff]
  %v91 = vld [vmem:[%s1 + $0x1f8] sm:$0xff]
  %v92 = vld [vmem:[%s1 + $0x200] sm:$0xff]
  %v93 = vld [vmem:[%s1 + $0x208] sm:$0xff]
  %v94 = vld [vmem:[%s1 + $0x210] sm:$0xff]
  %v95 = vld [vmem:[%s1 + $0x218] sm:$0xff]
  %v96 = vld [vmem:[%s1 + $0x220] sm:$0xff]
  %v97 = vld [vmem:[%s1 + $0x228] sm:$0xff]
  %v98 = vld [vmem:[%s1 + $0x230] sm:$0xff]
  %v99 = vld [vmem:[%s1 + $0x238] sm:$0xff]
  %v100 = vld [vmem:[%s1 + $0x240] sm:$0xff]
  %v101 = vld [vmem:[%s1 + $0x248] sm:$0xff]
  %v102 = vld [vmem:[%s1 + $0x250] sm:$0xff]
  %v103 = vld [vmem:[%s1 + $0x258] sm:$0xff]
  %v104 = vld [vmem:[%s1 + $0x260] sm:$0xff]
  %v105 = vld [vmem:[%s1 + $0x268] sm:$0xff]
  %v106 = vld [vmem:[%s1 + $0x270] sm:$0xff]
  %v107 = vld [vmem:[%s1 + $0x278] sm:$0xff]
  %v108 = vld [vmem:[%s1 + $0x280] sm:$0xff]
  %v109 = vld [vmem:[%s1 + $0x288] sm:$0xff]
  %v110 = vld [vmem:[%s1 + $0x290] sm:$0xff]
  %v111 = vld [vmem:[%s1 + $0x298] sm:$0xff]
  %v112 = vld [vmem:[%s1 + $0x2a0] sm:$0xff]
  %v113 = vld [vmem:[%s1 + $0x2a8] sm:$0xff]
  %v114 = vld [vmem:[%s1 + $0x2b0] sm:$0xff]
  %v115 = vld [vmem:[%s1 + $0x2b8] sm:$0xff]
  %v116 = vld [vmem:[%s1 + $0x2c0] sm:$0xff]
  %v117 = vld [vmem:[%s1 + $0x2c8] sm:$0xff]
  %v118 = vld [vmem:[%s1 + $0x2d0] sm:$0xff]
  %v119 = vld [vmem:[%s1 + $0x2d8] sm:$0xff]
  %v120 = vld [vmem:[%s1 + $0x2e0] sm:$0xff]
  %v121 = vld [vmem:[%s1 + $0x2e8] sm:$0xff]
  %v122 = vld [vmem:[%s1 + $0x2f0] sm:$0xff]
  %v123 = vld [vmem:[%s1 + $0x2f8] sm:$0xff]
  %v124 = vld [vmem:[%s1 + $0x300] sm:$0xff]
  %v125 = vld [vmem:[%s1 + $0x308] sm:$0xff]
  %v126 = vld [vmem:[%s1 + $0x310] sm:$0xff]
  %v127 = vld [vmem:[%s1 + $0x318] sm:$0xff]
  %v128 = vld [vmem:[%s1 + $0x320] sm:$0xff]
  %v129 = vld [vmem:[%s1 + $0x328] sm:$0xff]
  %v130 = vld [vmem:[%s1 + $0x330] sm:$0xff]
  %v131 = vld [vmem:[%s1 + $0x338] sm:$0xff]
  %v132 = vld [vmem:[%s1 + $0x340] sm:$0xff]
  %v133 = vld [vmem:[%s1 + $0x348] sm:$0xff]
  %v134 = vld [vmem:[%s1 + $0x350] sm:$0xff]
  %v135 = vld [vmem:[%s1 + $0x358] sm:$0xff]
  %v136 = vld [vmem:[%s1 + $0x360] sm:$0xff]
  %v137 = vld [vmem:[%s1 + $0x368] sm:$0xff]
  %v138 = vld [vmem:[%s1 + $0x370] sm:$0xff]
  %v139 = vld [vmem:[%s1 + $0x378] sm:$0xff]
  %v140 = vld [vmem:[%s1 + $0x380] sm:$0xff]
  %v141 = vld [vmem:[%s1 + $0x388] sm:$0xff]
  %v142 = vld [vmem:[%s1 + $0x390] sm:$0xff]
  %v143 = vld [vmem:[%s1 + $0x398] sm:$0xff]
  %v144 = vld [vmem:[%s1 + $0x3a0] sm:$0xff]
  %v145 = vld [vmem:[%s1 + $0x3a8] sm:$0xff]
  %v146 = vld [vmem:[%s1 + $0x3b0] sm:$0xff]
  %v147 = vld [vmem:[%s1 + $0x3b8] sm:$0xff]
  %v148 = vld [vmem:[%s1 + $0x3c0] sm:$0xff]
  %v149 = vld [vmem:[%s1 + $0x3c8] sm:$0xff]
  %v150 = vld [vmem:[%s1 + $0x3d0] sm:$0xff]
  %v151 = vld [vmem:[%s1 + $0x3d8] sm:$0xff]
  %v152 = vld [vmem:[%s1 + $0x3e0] sm:$0xff]
  %v153 = vld [vmem:[%s1 + $0x3e8] sm:$0xff]
  %v154 = vld [vmem:[%s1 + $0x3f0] sm:$0xff]
  %v155 = vld [vmem:[%s1 + $0x3f8] sm:$0xff]
  %v156 = vld [vmem:[%s1 + $0x400] sm:$0xff]
  %v157 = vld [vmem:[%s1 + $0x408] sm:$0xff]
  %v158 = vld [vmem:[%s1 + $0x410] sm:$0xff]
  %v159 = vld [vmem:[%s1 + $0x418] sm:$0xff]
  %v160 = vld [vmem:[%s1 + $0x420] sm:$0xff]
  %v161 = vld [vmem:[%s1 + $0x428] sm:$0xff]
  %v162 = vld [vmem:[%s1 + $0x430] sm:$0xff]
  %v163 = vld [vmem:[%s1 + $0x438] sm:$0xff]
  %v164 = vld [vmem:[%s1 + $0x440] sm:$0xff]
  %v165 = vld [vmem:[%s1 + $0x448] sm:$0xff]
  %v166 = vld [vmem:[%s1 + $0x450] sm:$0xff]
  %v167 = vld [vmem:[%s1 + $0x458] sm:$0xff]
  %v168 = vld [vmem:[%s1 + $0x460] sm:$0xff]
  %v169 = vld [vmem:[%s1 + $0x468] sm:$0xff]
  %v170 = vld [vmem:[%s1 + $0x470] sm:$0xff]
  %v171 = vld [vmem:[%s1 + $0x478] sm:$0xff]
  %v177 = vunpack.c.l.b16 %v23
  %v178 = vunpack.c.h.b16 %v23
  %v179 = vunpack.c.l.b16 %v24
  %v180 = vunpack.c.h.b16 %v24
  %v181 = vunpack.c.l.b16 %v25
  %v182 = vunpack.c.h.b16 %v25
  %v183 = vunpack.c.l.b16 %v26
  %v184 = vunpack.c.h.b16 %v26
  %v185 = vunpack.c.l.b16 %v27
  %v186 = vpack.c.b16 %v177, %v177
  %v187 = vpack.c.b16 %v178, %v178
  %v188 = vpack.c.b16 %v179, %v179
  %v189 = vpack.c.b16 %v180, %v180
  %v190 = vpack.c.b16 %v181, %v181
  %v191 = vpack.c.b16 %v182, %v182
  %v192 = vpack.c.b16 %v183, %v183
  %v193 = vpack.c.b16 %v184, %v184
  %v194 = vpack.c.b16 %v185, %v185
  %v348 = vunpack.c.l.b16 %v28
  %v349 = vunpack.c.h.b16 %v28
  %v350 = vunpack.c.l.b16 %v29
  %v351 = vunpack.c.h.b16 %v29
  %v352 = vunpack.c.l.b16 %v30
  %v353 = vunpack.c.h.b16 %v30
  %v354 = vunpack.c.l.b16 %v31
  %v355 = vunpack.c.h.b16 %v31
  %v356 = vunpack.c.l.b16 %v32
  %v357 = vunpack.c.h.b16 %v32
  %v358 = vunpack.c.l.b16 %v33
  %v359 = vunpack.c.h.b16 %v33
  %v360 = vunpack.c.l.b16 %v34
  %v361 = vunpack.c.h.b16 %v34
  %v362 = vunpack.c.l.b16 %v35
  %v363 = vunpack.c.h.b16 %v35
  %v364 = vunpack.c.l.b16 %v36
  %v365 = vunpack.c.h.b16 %v36
  %v366 = vunpack.c.l.b16 %v37
  %v367 = vunpack.c.h.b16 %v37
  %v368 = vunpack.c.l.b16 %v38
  %v369 = vunpack.c.h.b16 %v38
  %v370 = vunpack.c.l.b16 %v39
  %v371 = vunpack.c.h.b16 %v39
  %v372 = vunpack.c.l.b16 %v40
  %v373 = vunpack.c.h.b16 %v40
  %v374 = vunpack.c.l.b16 %v41
  %v375 = vunpack.c.h.b16 %v41
  %v376 = vunpack.c.l.b16 %v42
  %v377 = vunpack.c.h.b16 %v42
  %v378 = vunpack.c.l.b16 %v43
  %v379 = vunpack.c.h.b16 %v43
  %v380 = vunpack.c.l.b16 %v44
  %v381 = vunpack.c.h.b16 %v44
  %v382 = vunpack.c.l.b16 %v45
  %v383 = vunpack.c.h.b16 %v45
  %v384 = vunpack.c.l.b16 %v46
  %v385 = vunpack.c.h.b16 %v46
  %v386 = vunpack.c.l.b16 %v47
  %v387 = vunpack.c.h.b16 %v47
  %v388 = vunpack.c.l.b16 %v48
  %v389 = vunpack.c.h.b16 %v48
  %v390 = vunpack.c.l.b16 %v49
  %v391 = vunpack.c.h.b16 %v49
  %v392 = vunpack.c.l.b16 %v50
  %v393 = vunpack.c.h.b16 %v50
  %v394 = vunpack.c.l.b16 %v51
  %v395 = vunpack.c.h.b16 %v51
  %v396 = vunpack.c.l.b16 %v52
  %v397 = vunpack.c.h.b16 %v52
  %v398 = vunpack.c.l.b16 %v53
  %v399 = vunpack.c.h.b16 %v53
  %v400 = vunpack.c.l.b16 %v54
  %v401 = vunpack.c.h.b16 %v54
  %v402 = vunpack.c.l.b16 %v55
  %v403 = vunpack.c.h.b16 %v55
  %v404 = vunpack.c.l.b16 %v56
  %v405 = vunpack.c.h.b16 %v56
  %v406 = vunpack.c.l.b16 %v57
  %v407 = vunpack.c.h.b16 %v57
  %v408 = vunpack.c.l.b16 %v58
  %v409 = vunpack.c.h.b16 %v58
  %v410 = vunpack.c.l.b16 %v59
  %v411 = vunpack.c.h.b16 %v59
  %v412 = vunpack.c.l.b16 %v60
  %v413 = vunpack.c.h.b16 %v60
  %v414 = vunpack.c.l.b16 %v61
  %v415 = vunpack.c.h.b16 %v61
  %v416 = vunpack.c.l.b16 %v62
  %v417 = vunpack.c.h.b16 %v62
  %v418 = vunpack.c.l.b16 %v63
  %v419 = vunpack.c.h.b16 %v63
  %v420 = vunpack.c.l.b16 %v64
  %v421 = vunpack.c.h.b16 %v64
  %v422 = vunpack.c.l.b16 %v65
  %v423 = vunpack.c.h.b16 %v65
  %v424 = vunpack.c.l.b16 %v66
  %v425 = vunpack.c.h.b16 %v66
  %v426 = vunpack.c.l.b16 %v67
  %v427 = vunpack.c.h.b16 %v67
  %v428 = vunpack.c.l.b16 %v68
  %v429 = vunpack.c.h.b16 %v68
  %v430 = vunpack.c.l.b16 %v69
  %v431 = vunpack.c.h.b16 %v69
  %v432 = vunpack.c.l.b16 %v70
  %v433 = vunpack.c.h.b16 %v70
  %v434 = vunpack.c.l.b16 %v71
  %v435 = vunpack.c.h.b16 %v71
  %v436 = vunpack.c.l.b16 %v72
  %v437 = vunpack.c.h.b16 %v72
  %v438 = vunpack.c.l.b16 %v73
  %v439 = vunpack.c.h.b16 %v73
  %v440 = vunpack.c.l.b16 %v74
  %v441 = vunpack.c.h.b16 %v74
  %v442 = vunpack.c.l.b16 %v75
  %v443 = vunpack.c.h.b16 %v75
  %v444 = vunpack.c.l.b16 %v76
  %v445 = vunpack.c.h.b16 %v76
  %v446 = vunpack.c.l.b16 %v77
  %v447 = vunpack.c.h.b16 %v77
  %v448 = vunpack.c.l.b16 %v78
  %v449 = vunpack.c.h.b16 %v78
  %v450 = vunpack.c.l.b16 %v79
  %v451 = vunpack.c.h.b16 %v79
  %v452 = vunpack.c.l.b16 %v80
  %v453 = vunpack.c.h.b16 %v80
  %v454 = vunpack.c.l.b16 %v81
  %v455 = vunpack.c.h.b16 %v81
  %v456 = vunpack.c.l.b16 %v82
  %v457 = vunpack.c.h.b16 %v82
  %v458 = vunpack.c.l.b16 %v83
  %v459 = vunpack.c.h.b16 %v83
  %v460 = vunpack.c.l.b16 %v84
  %v461 = vunpack.c.h.b16 %v84
  %v462 = vunpack.c.l.b16 %v85
  %v463 = vunpack.c.h.b16 %v85
  %v464 = vunpack.c.l.b16 %v86
  %v465 = vunpack.c.h.b16 %v86
  %v466 = vunpack.c.l.b16 %v87
  %v467 = vunpack.c.h.b16 %v87
  %v468 = vunpack.c.l.b16 %v88
  %v469 = vunpack.c.h.b16 %v88
  %v470 = vunpack.c.l.b16 %v89
  %v471 = vunpack.c.h.b16 %v89
  %v472 = vunpack.c.l.b16 %v90
  %v473 = vunpack.c.h.b16 %v90
  %v474 = vunpack.c.l.b16 %v91
  %v475 = vunpack.c.h.b16 %v91
  %v476 = vunpack.c.l.b16 %v92
  %v477 = vunpack.c.h.b16 %v92
  %v478 = vunpack.c.l.b16 %v93
  %v479 = vunpack.c.h.b16 %v93
  %v480 = vunpack.c.l.b16 %v94
  %v481 = vunpack.c.h.b16 %v94
  %v482 = vunpack.c.l.b16 %v95
  %v483 = vunpack.c.h.b16 %v95
  %v484 = vunpack.c.l.b16 %v96
  %v485 = vunpack.c.h.b16 %v96
  %v486 = vunpack.c.l.b16 %v97
  %v487 = vunpack.c.h.b16 %v97
  %v488 = vunpack.c.l.b16 %v98
  %v489 = vunpack.c.h.b16 %v98
  %v490 = vunpack.c.l.b16 %v99
  %v491 = vunpack.c.h.b16 %v99
  %v492 = vunpack.c.l.b16 %v100
  %v493 = vunpack.c.h.b16 %v100
  %v494 = vunpack.c.l.b16 %v101
  %v495 = vunpack.c.h.b16 %v101
  %v496 = vunpack.c.l.b16 %v102
  %v497 = vunpack.c.h.b16 %v102
  %v498 = vunpack.c.l.b16 %v103
  %v499 = vunpack.c.h.b16 %v103
  %v500 = vunpack.c.l.b16 %v104
  %v501 = vunpack.c.h.b16 %v104
  %v502 = vunpack.c.l.b16 %v105
  %v503 = vunpack.c.h.b16 %v105
  %v504 = vunpack.c.l.b16 %v106
  %v505 = vunpack.c.h.b16 %v106
  %v506 = vunpack.c.l.b16 %v107
  %v507 = vunpack.c.h.b16 %v107
  %v508 = vunpack.c.l.b16 %v108
  %v509 = vunpack.c.h.b16 %v108
  %v510 = vunpack.c.l.b16 %v109
  %v511 = vunpack.c.h.b16 %v109
  %v512 = vunpack.c.l.b16 %v110
  %v513 = vunpack.c.h.b16 %v110
  %v514 = vunpack.c.l.b16 %v111
  %v515 = vunpack.c.h.b16 %v111
  %v516 = vunpack.c.l.b16 %v112
  %v517 = vunpack.c.h.b16 %v112
  %v518 = vunpack.c.l.b16 %v113
  %v519 = vunpack.c.h.b16 %v113
  %v520 = vunpack.c.l.b16 %v114
  %v521 = vunpack.c.h.b16 %v114
  %v522 = vunpack.c.l.b16 %v115
  %v523 = vunpack.c.h.b16 %v115
  %v524 = vunpack.c.l.b16 %v116
  %v525 = vunpack.c.h.b16 %v116
  %v526 = vunpack.c.l.b16 %v117
  %v527 = vunpack.c.h.b16 %v117
  %v528 = vunpack.c.l.b16 %v118
  %v529 = vunpack.c.h.b16 %v118
  %v530 = vunpack.c.l.b16 %v119
  %v531 = vunpack.c.h.b16 %v119
  %v532 = vunpack.c.l.b16 %v120
  %v533 = vunpack.c.h.b16 %v120
  %v534 = vunpack.c.l.b16 %v121
  %v535 = vunpack.c.h.b16 %v121
  %v536 = vunpack.c.l.b16 %v122
  %v537 = vunpack.c.h.b16 %v122
  %v538 = vunpack.c.l.b16 %v123
  %v539 = vunpack.c.h.b16 %v123
  %v540 = vunpack.c.l.b16 %v124
  %v541 = vunpack.c.h.b16 %v124
  %v542 = vunpack.c.l.b16 %v125
  %v543 = vunpack.c.h.b16 %v125
  %v544 = vunpack.c.l.b16 %v126
  %v545 = vunpack.c.h.b16 %v126
  %v546 = vunpack.c.l.b16 %v127
  %v547 = vunpack.c.h.b16 %v127
  %v548 = vunpack.c.l.b16 %v128
  %v549 = vunpack.c.h.b16 %v128
  %v550 = vunpack.c.l.b16 %v129
  %v551 = vunpack.c.h.b16 %v129
  %v552 = vunpack.c.l.b16 %v130
  %v553 = vunpack.c.h.b16 %v130
  %v554 = vunpack.c.l.b16 %v131
  %v555 = vunpack.c.h.b16 %v131
  %v556 = vunpack.c.l.b16 %v132
  %v557 = vunpack.c.h.b16 %v132
  %v558 = vunpack.c.l.b16 %v133
  %v559 = vunpack.c.h.b16 %v133
  %v560 = vunpack.c.l.b16 %v134
  %v561 = vunpack.c.h.b16 %v134
  %v562 = vunpack.c.l.b16 %v135
  %v563 = vunpack.c.h.b16 %v135
  %v564 = vunpack.c.l.b16 %v136
  %v565 = vunpack.c.h.b16 %v136
  %v566 = vunpack.c.l.b16 %v137
  %v567 = vunpack.c.h.b16 %v137
  %v568 = vunpack.c.l.b16 %v138
  %v569 = vunpack.c.h.b16 %v138
  %v570 = vunpack.c.l.b16 %v139
  %v571 = vunpack.c.h.b16 %v139
  %v572 = vunpack.c.l.b16 %v140
  %v573 = vunpack.c.h.b16 %v140
  %v574 = vunpack.c.l.b16 %v141
  %v575 = vunpack.c.h.b16 %v141
  %v576 = vunpack.c.l.b16 %v142
  %v577 = vunpack.c.h.b16 %v142
  %v578 = vunpack.c.l.b16 %v143
  %v579 = vunpack.c.h.b16 %v143
  %v580 = vunpack.c.l.b16 %v144
  %v581 = vunpack.c.h.b16 %v144
  %v582 = vunpack.c.l.b16 %v145
  %v583 = vunpack.c.h.b16 %v145
  %v584 = vunpack.c.l.b16 %v146
  %v585 = vunpack.c.h.b16 %v146
  %v586 = vunpack.c.l.b16 %v147
  %v587 = vunpack.c.h.b16 %v147
  %v588 = vunpack.c.l.b16 %v148
  %v589 = vunpack.c.h.b16 %v148
  %v590 = vunpack.c.l.b16 %v149
  %v591 = vunpack.c.h.b16 %v149
  %v592 = vunpack.c.l.b16 %v150
  %v593 = vunpack.c.h.b16 %v150
  %v594 = vunpack.c.l.b16 %v151
  %v595 = vunpack.c.h.b16 %v151
  %v596 = vunpack.c.l.b16 %v152
  %v597 = vunpack.c.h.b16 %v152
  %v598 = vunpack.c.l.b16 %v153
  %v599 = vunpack.c.h.b16 %v153
  %v600 = vunpack.c.l.b16 %v154
  %v601 = vunpack.c.h.b16 %v154
  %v602 = vunpack.c.l.b16 %v155
  %v603 = vunpack.c.h.b16 %v155
  %v604 = vunpack.c.l.b16 %v156
  %v605 = vunpack.c.h.b16 %v156
  %v606 = vunpack.c.l.b16 %v157
  %v607 = vunpack.c.h.b16 %v157
  %v608 = vunpack.c.l.b16 %v158
  %v609 = vunpack.c.h.b16 %v158
  %v610 = vunpack.c.l.b16 %v159
  %v611 = vunpack.c.h.b16 %v159
  %v612 = vunpack.c.l.b16 %v160
  %v613 = vunpack.c.h.b16 %v160
  %v614 = vunpack.c.l.b16 %v161
  %v615 = vunpack.c.h.b16 %v161
  %v616 = vunpack.c.l.b16 %v162
  %v617 = vunpack.c.h.b16 %v162
  %v618 = vunpack.c.l.b16 %v163
  %v619 = vunpack.c.h.b16 %v163
  %v620 = vunpack.c.l.b16 %v164
  %v621 = vunpack.c.h.b16 %v164
  %v622 = vunpack.c.l.b16 %v165
  %v623 = vunpack.c.h.b16 %v165
  %v624 = vunpack.c.l.b16 %v166
  %v625 = vunpack.c.h.b16 %v166
  %v626 = vunpack.c.l.b16 %v167
  %v627 = vunpack.c.h.b16 %v167
  %v628 = vunpack.c.l.b16 %v168
  %v629 = vunpack.c.h.b16 %v168
  %v630 = vunpack.c.l.b16 %v169
  %v631 = vunpack.c.h.b16 %v169
  %v632 = vunpack.c.l.b16 %v170
  %v633 = vunpack.c.h.b16 %v170
  %v634 = vunpack.c.l.b16 %v171
  %v635 = vunpack.c.h.b16 %v171
  %v636 = vpack.c.b16 %v350, %v348
  %v637 = vpack.c.b16 %v351, %v349
  %v638 = vpack.c.b16 %v354, %v352
  %v639 = vpack.c.b16 %v355, %v353
  %v640 = vpack.c.b16 %v358, %v356
  %v641 = vpack.c.b16 %v359, %v357
  %v642 = vpack.c.b16 %v362, %v360
  %v643 = vpack.c.b16 %v363, %v361
  %v644 = vpack.c.b16 %v366, %v364
  %v645 = vpack.c.b16 %v367, %v365
  %v646 = vpack.c.b16 %v370, %v368
  %v647 = vpack.c.b16 %v371, %v369
  %v648 = vpack.c.b16 %v374, %v372
  %v649 = vpack.c.b16 %v375, %v373
  %v650 = vpack.c.b16 %v378, %v376
  %v651 = vpack.c.b16 %v379, %v377
  %v652 = vpack.c.b16 %v382, %v380
  %v653 = vpack.c.b16 %v383, %v381
  %v654 = vpack.c.b16 %v386, %v384
  %v655 = vpack.c.b16 %v387, %v385
  %v656 = vpack.c.b16 %v390, %v388
  %v657 = vpack.c.b16 %v391, %v389
  %v658 = vpack.c.b16 %v394, %v392
  %v659 = vpack.c.b16 %v395, %v393
  %v660 = vpack.c.b16 %v398, %v396
  %v661 = vpack.c.b16 %v399, %v397
  %v662 = vpack.c.b16 %v402, %v400
  %v663 = vpack.c.b16 %v403, %v401
  %v664 = vpack.c.b16 %v406, %v404
  %v665 = vpack.c.b16 %v407, %v405
  %v666 = vpack.c.b16 %v410, %v408
  %v667 = vpack.c.b16 %v411, %v409
  %v668 = vpack.c.b16 %v414, %v412
  %v669 = vpack.c.b16 %v415, %v413
  %v670 = vpack.c.b16 %v418, %v416
  %v671 = vpack.c.b16 %v419, %v417
  %v672 = vpack.c.b16 %v422, %v420
  %v673 = vpack.c.b16 %v423, %v421
  %v674 = vpack.c.b16 %v426, %v424
  %v675 = vpack.c.b16 %v427, %v425
  %v676 = vpack.c.b16 %v430, %v428
  %v677 = vpack.c.b16 %v431, %v429
  %v678 = vpack.c.b16 %v434, %v432
  %v679 = vpack.c.b16 %v435, %v433
  %v680 = vpack.c.b16 %v438, %v436
  %v681 = vpack.c.b16 %v439, %v437
  %v682 = vpack.c.b16 %v442, %v440
  %v683 = vpack.c.b16 %v443, %v441
  %v684 = vpack.c.b16 %v446, %v444
  %v685 = vpack.c.b16 %v447, %v445
  %v686 = vpack.c.b16 %v450, %v448
  %v687 = vpack.c.b16 %v451, %v449
  %v688 = vpack.c.b16 %v454, %v452
  %v689 = vpack.c.b16 %v455, %v453
  %v690 = vpack.c.b16 %v458, %v456
  %v691 = vpack.c.b16 %v459, %v457
  %v692 = vpack.c.b16 %v462, %v460
  %v693 = vpack.c.b16 %v463, %v461
  %v694 = vpack.c.b16 %v466, %v464
  %v695 = vpack.c.b16 %v467, %v465
  %v696 = vpack.c.b16 %v470, %v468
  %v697 = vpack.c.b16 %v471, %v469
  %v698 = vpack.c.b16 %v474, %v472
  %v699 = vpack.c.b16 %v475, %v473
  %v700 = vpack.c.b16 %v478, %v476
  %v701 = vpack.c.b16 %v479, %v477
  %v702 = vpack.c.b16 %v482, %v480
  %v703 = vpack.c.b16 %v483, %v481
  %v704 = vpack.c.b16 %v486, %v484
  %v705 = vpack.c.b16 %v487, %v485
  %v706 = vpack.c.b16 %v490, %v488
  %v707 = vpack.c.b16 %v491, %v489
  %v708 = vpack.c.b16 %v494, %v492
  %v709 = vpack.c.b16 %v495, %v493
  %v710 = vpack.c.b16 %v498, %v496
  %v711 = vpack.c.b16 %v499, %v497
  %v712 = vpack.c.b16 %v502, %v500
  %v713 = vpack.c.b16 %v503, %v501
  %v714 = vpack.c.b16 %v506, %v504
  %v715 = vpack.c.b16 %v507, %v505
  %v716 = vpack.c.b16 %v510, %v508
  %v717 = vpack.c.b16 %v511, %v509
  %v718 = vpack.c.b16 %v514, %v512
  %v719 = vpack.c.b16 %v515, %v513
  %v720 = vpack.c.b16 %v518, %v516
  %v721 = vpack.c.b16 %v519, %v517
  %v722 = vpack.c.b16 %v522, %v520
  %v723 = vpack.c.b16 %v523, %v521
  %v724 = vpack.c.b16 %v526, %v524
  %v725 = vpack.c.b16 %v527, %v525
  %v726 = vpack.c.b16 %v530, %v528
  %v727 = vpack.c.b16 %v531, %v529
  %v728 = vpack.c.b16 %v534, %v532
  %v729 = vpack.c.b16 %v535, %v533
  %v730 = vpack.c.b16 %v538, %v536
  %v731 = vpack.c.b16 %v539, %v537
  %v732 = vpack.c.b16 %v542, %v540
  %v733 = vpack.c.b16 %v543, %v541
  %v734 = vpack.c.b16 %v546, %v544
  %v735 = vpack.c.b16 %v547, %v545
  %v736 = vpack.c.b16 %v550, %v548
  %v737 = vpack.c.b16 %v551, %v549
  %v738 = vpack.c.b16 %v554, %v552
  %v739 = vpack.c.b16 %v555, %v553
  %v740 = vpack.c.b16 %v558, %v556
  %v741 = vpack.c.b16 %v559, %v557
  %v742 = vpack.c.b16 %v562, %v560
  %v743 = vpack.c.b16 %v563, %v561
  %v744 = vpack.c.b16 %v566, %v564
  %v745 = vpack.c.b16 %v567, %v565
  %v746 = vpack.c.b16 %v570, %v568
  %v747 = vpack.c.b16 %v571, %v569
  %v748 = vpack.c.b16 %v574, %v572
  %v749 = vpack.c.b16 %v575, %v573
  %v750 = vpack.c.b16 %v578, %v576
  %v751 = vpack.c.b16 %v579, %v577
  %v752 = vpack.c.b16 %v582, %v580
  %v753 = vpack.c.b16 %v583, %v581
  %v754 = vpack.c.b16 %v586, %v584
  %v755 = vpack.c.b16 %v587, %v585
  %v756 = vpack.c.b16 %v590, %v588
  %v757 = vpack.c.b16 %v591, %v589
  %v758 = vpack.c.b16 %v594, %v592
  %v759 = vpack.c.b16 %v595, %v593
  %v760 = vpack.c.b16 %v598, %v596
  %v761 = vpack.c.b16 %v599, %v597
  %v762 = vpack.c.b16 %v602, %v600
  %v763 = vpack.c.b16 %v603, %v601
  %v764 = vpack.c.b16 %v606, %v604
  %v765 = vpack.c.b16 %v607, %v605
  %v766 = vpack.c.b16 %v610, %v608
  %v767 = vpack.c.b16 %v611, %v609
  %v768 = vpack.c.b16 %v614, %v612
  %v769 = vpack.c.b16 %v615, %v613
  %v770 = vpack.c.b16 %v618, %v616
  %v771 = vpack.c.b16 %v619, %v617
  %v772 = vpack.c.b16 %v622, %v620
  %v773 = vpack.c.b16 %v623, %v621
  %v774 = vpack.c.b16 %v626, %v624
  %v775 = vpack.c.b16 %v627, %v625
  %v776 = vpack.c.b16 %v630, %v628
  %v777 = vpack.c.b16 %v631, %v629
  %v778 = vpack.c.b16 %v634, %v632
  %v779 = vpack.c.b16 %v635, %v633
  %924 = vmatprep.subr.bf16.mxu0 %v637
  %925 = vmatpush1.bf16.msra.mxu0 %v636
  %926 = vmatprep.subr.bf16.mxu0 %v639
  %927 = vmatpush1.bf16.msra.mxu0 %v638
  %928 = vmatprep.subr.bf16.mxu0 %v641
  %929 = vmatpush1.bf16.msra.mxu0 %v640
  %930 = vmatprep.subr.bf16.mxu0 %v643
  %931 = vmatpush1.bf16.msra.mxu0 %v642
  %932 = vmatprep.subr.bf16.mxu0 %v645
  %933 = vmatpush1.bf16.msra.mxu0 %v644
  %934 = vmatprep.subr.bf16.mxu0 %v647
  %935 = vmatpush1.bf16.msra.mxu0 %v646
  %936 = vmatprep.subr.bf16.mxu0 %v649
  %937 = vmatpush1.bf16.msra.mxu0 %v648
  %938 = vmatprep.subr.bf16.mxu0 %v651
  %939 = vmatpush1.bf16.msra.mxu0 %v650
  %940 = vmatprep.subr.bf16.mxu0 %v653
  %941 = vmatpush1.bf16.msra.mxu0 %v652
  %942 = vmatprep.subr.bf16.mxu0 %v655
  %943 = vmatpush1.bf16.msra.mxu0 %v654
  %944 = vmatprep.subr.bf16.mxu0 %v657
  %945 = vmatpush1.bf16.msra.mxu0 %v656
  %946 = vmatprep.subr.bf16.mxu0 %v659
  %947 = vmatpush1.bf16.msra.mxu0 %v658
  %948 = vmatprep.subr.bf16.mxu0 %v661
  %949 = vmatpush1.bf16.msra.mxu0 %v660
  %950 = vmatprep.subr.bf16.mxu0 %v663
  %951 = vmatpush1.bf16.msra.mxu0 %v662
  %952 = vmatprep.subr.bf16.mxu0 %v665
  %953 = vmatpush1.bf16.msra.mxu0 %v664
  %954 = vmatprep.subr.bf16.mxu0 %v667
  %955 = vmatpush1.bf16.msra.mxu0 %v666
  %956 = vmatprep.mubr.bf16.mxu0 %v187
  %957 = vmatmul.mubr.bf16.gmra.mrb[0].mxu0 %v186
  %v958 = vpop.f32.mrb[0].mxu0
  %v959 = vadd.f32 0.0, %v958
  %v960 = vpop.f32.mrb[0].mxu0
  %v961 = vadd.f32 0.0, %v960
  %v962 = vpop.f32.mrb[0].mxu0
  %v963 = vpop.f32.mrb[0].mxu0
  %964 = vdwg.mxu0
  %965 = vmatprep.subr.bf16.mxu0 %v669
  %966 = vmatpush1.bf16.msra.mxu0 %v668
  %967 = vmatprep.subr.bf16.mxu0 %v671
  %968 = vmatpush1.bf16.msra.mxu0 %v670
  %969 = vmatprep.subr.bf16.mxu0 %v673
  %970 = vmatpush1.bf16.msra.mxu0 %v672
  %971 = vmatprep.subr.bf16.mxu0 %v675
  %972 = vmatpush1.bf16.msra.mxu0 %v674
  %973 = vmatprep.subr.bf16.mxu0 %v677
  %974 = vmatpush1.bf16.msra.mxu0 %v676
  %975 = vmatprep.subr.bf16.mxu0 %v679
  %976 = vmatpush1.bf16.msra.mxu0 %v678
  %977 = vmatprep.subr.bf16.mxu0 %v681
  %978 = vmatpush1.bf16.msra.mxu0 %v680
  %979 = vmatprep.subr.bf16.mxu0 %v683
  %980 = vmatpush1.bf16.msra.mxu0 %v682
  %981 = vmatprep.subr.bf16.mxu0 %v685
  %982 = vmatpush1.bf16.msra.mxu0 %v684
  %983 = vmatprep.subr.bf16.mxu0 %v687
  %984 = vmatpush1.bf16.msra.mxu0 %v686
  %985 = vmatprep.subr.bf16.mxu0 %v689
  %986 = vmatpush1.bf16.msra.mxu0 %v688
  %987 = vmatprep.subr.bf16.mxu0 %v691
  %988 = vmatpush1.bf16.msra.mxu0 %v690
  %989 = vmatprep.subr.bf16.mxu0 %v693
  %990 = vmatpush1.bf16.msra.mxu0 %v692
  %991 = vmatprep.subr.bf16.mxu0 %v695
  %992 = vmatpush1.bf16.msra.mxu0 %v694
  %993 = vmatprep.subr.bf16.mxu0 %v697
  %994 = vmatpush1.bf16.msra.mxu0 %v696
  %995 = vmatprep.subr.bf16.mxu0 %v699
  %996 = vmatpush1.bf16.msra.mxu0 %v698
  %997 = vmatprep.mubr.bf16.mxu0 %v189
  %998 = vmatmul.mubr.bf16.gmra.mrb[0].mxu0 %v188
  %v999 = vpop.f32.mrb[0].mxu0
  %v1000 = vadd.f32 %v959, %v999
  %v1001 = vpop.f32.mrb[0].mxu0
  %v1002 = vadd.f32 %v961, %v1001
  %v1003 = vpop.f32.mrb[0].mxu0
  %v1004 = vpop.f32.mrb[0].mxu0
  %1005 = vdwg.mxu0
  %1006 = vmatprep.subr.bf16.mxu0 %v701
  %1007 = vmatpush1.bf16.msra.mxu0 %v700
  %1008 = vmatprep.subr.bf16.mxu0 %v703
  %1009 = vmatpush1.bf16.msra.mxu0 %v702
  %1010 = vmatprep.subr.bf16.mxu0 %v705
  %1011 = vmatpush1.bf16.msra.mxu0 %v704
  %1012 = vmatprep.subr.bf16.mxu0 %v707
  %1013 = vmatpush1.bf16.msra.mxu0 %v706
  %1014 = vmatprep.subr.bf16.mxu0 %v709
  %1015 = vmatpush1.bf16.msra.mxu0 %v708
  %1016 = vmatprep.subr.bf16.mxu0 %v711
  %1017 = vmatpush1.bf16.msra.mxu0 %v710
  %1018 = vmatprep.subr.bf16.mxu0 %v713
  %1019 = vmatpush1.bf16.msra.mxu0 %v712
  %1020 = vmatprep.subr.bf16.mxu0 %v715
  %1021 = vmatpush1.bf16.msra.mxu0 %v714
  %1022 = vmatprep.subr.bf16.mxu0 %v717
  %1023 = vmatpush1.bf16.msra.mxu0 %v716
  %1024 = vmatprep.subr.bf16.mxu0 %v719
  %1025 = vmatpush1.bf16.msra.mxu0 %v718
  %1026 = vmatprep.subr.bf16.mxu0 %v721
  %1027 = vmatpush1.bf16.msra.mxu0 %v720
  %1028 = vmatprep.subr.bf16.mxu0 %v723
  %1029 = vmatpush1.bf16.msra.mxu0 %v722
  %1030 = vmatprep.subr.bf16.mxu0 %v725
  %1031 = vmatpush1.bf16.msra.mxu0 %v724
  %1032 = vmatprep.subr.bf16.mxu0 %v727
  %1033 = vmatpush1.bf16.msra.mxu0 %v726
  %1034 = vmatprep.subr.bf16.mxu0 %v729
  %1035 = vmatpush1.bf16.msra.mxu0 %v728
  %1036 = vmatprep.subr.bf16.mxu0 %v731
  %1037 = vmatpush1.bf16.msra.mxu0 %v730
  %1038 = vmatprep.mubr.bf16.mxu0 %v191
  %1039 = vmatmul.mubr.bf16.gmra.mrb[0].mxu0 %v190
  %v1040 = vpop.f32.mrb[0].mxu0
  %v1041 = vadd.f32 %v1000, %v1040
  %v1042 = vpop.f32.mrb[0].mxu0
  %v1043 = vadd.f32 %v1002, %v1042
  %v1044 = vpop.f32.mrb[0].mxu0
  %v1045 = vpop.f32.mrb[0].mxu0
  %1046 = vdwg.mxu0
  %1047 = vmatprep.subr.bf16.mxu0 %v733
  %1048 = vmatpush1.bf16.msra.mxu0 %v732
  %1049 = vmatprep.subr.bf16.mxu0 %v735
  %1050 = vmatpush1.bf16.msra.mxu0 %v734
  %1051 = vmatprep.subr.bf16.mxu0 %v737
  %1052 = vmatpush1.bf16.msra.mxu0 %v736
  %1053 = vmatprep.subr.bf16.mxu0 %v739
  %1054 = vmatpush1.bf16.msra.mxu0 %v738
  %1055 = vmatprep.subr.bf16.mxu0 %v741
  %1056 = vmatpush1.bf16.msra.mxu0 %v740
  %1057 = vmatprep.subr.bf16.mxu0 %v743
  %1058 = vmatpush1.bf16.msra.mxu0 %v742
  %1059 = vmatprep.subr.bf16.mxu0 %v745
  %1060 = vmatpush1.bf16.msra.mxu0 %v744
  %1061 = vmatprep.subr.bf16.mxu0 %v747
  %1062 = vmatpush1.bf16.msra.mxu0 %v746
  %1063 = vmatprep.subr.bf16.mxu0 %v749
  %1064 = vmatpush1.bf16.msra.mxu0 %v748
  %1065 = vmatprep.subr.bf16.mxu0 %v751
  %1066 = vmatpush1.bf16.msra.mxu0 %v750
  %1067 = vmatprep.subr.bf16.mxu0 %v753
  %1068 = vmatpush1.bf16.msra.mxu0 %v752
  %1069 = vmatprep.subr.bf16.mxu0 %v755
  %1070 = vmatpush1.bf16.msra.mxu0 %v754
  %1071 = vmatprep.subr.bf16.mxu0 %v757
  %1072 = vmatpush1.bf16.msra.mxu0 %v756
  %1073 = vmatprep.subr.bf16.mxu0 %v759
  %1074 = vmatpush1.bf16.msra.mxu0 %v758
  %1075 = vmatprep.subr.bf16.mxu0 %v761
  %1076 = vmatpush1.bf16.msra.mxu0 %v760
  %1077 = vmatprep.subr.bf16.mxu0 %v763
  %1078 = vmatpush1.bf16.msra.mxu0 %v762
  %1079 = vmatprep.mubr.bf16.mxu0 %v193
  %1080 = vmatmul.mubr.bf16.gmra.mrb[0].mxu0 %v192
  %v1081 = vpop.f32.mrb[0].mxu0
  %v1082 = vadd.f32 %v1041, %v1081
  %v1083 = vpop.f32.mrb[0].mxu0
  %v1084 = vadd.f32 %v1043, %v1083
  %v1085 = vpop.f32.mrb[0].mxu0
  %v1086 = vpop.f32.mrb[0].mxu0
  %1087 = vdwg.mxu0
  %1088 = vmatprep.subr.bf16.mxu0 %v765
  %1089 = vmatpush1.bf16.msra.mxu0 %v764
  %1090 = vmatprep.subr.bf16.mxu0 %v767
  %1091 = vmatpush1.bf16.msra.mxu0 %v766
  %1092 = vmatprep.subr.bf16.mxu0 %v769
  %1093 = vmatpush1.bf16.msra.mxu0 %v768
  %1094 = vmatprep.subr.bf16.mxu0 %v771
  %1095 = vmatpush1.bf16.msra.mxu0 %v770
  %1096 = vmatprep.subr.bf16.mxu0 %v773
  %1097 = vmatpush1.bf16.msra.mxu0 %v772
  %1098 = vmatprep.subr.bf16.mxu0 %v775
  %1099 = vmatpush1.bf16.msra.mxu0 %v774
  %1100 = vmatprep.subr.bf16.mxu0 %v777
  %1101 = vmatpush1.bf16.msra.mxu0 %v776
  %1102 = vmatprep.subr.bf16.mxu0 %v779
  %1103 = vmatpush1.bf16.msra.mxu0 %v778
  %1104 = vmatprep.subr.bf16.mxu0 0
  %1105 = vmatpush1.bf16.msra.mxu0 0
  %1106 = vmatprep.subr.bf16.mxu0 0
  %1107 = vmatpush1.bf16.msra.mxu0 0
  %1108 = vmatprep.subr.bf16.mxu0 0
  %1109 = vmatpush1.bf16.msra.mxu0 0
  %1110 = vmatprep.subr.bf16.mxu0 0
  %1111 = vmatpush1.bf16.msra.mxu0 0
  %1112 = vmatprep.subr.bf16.mxu0 0
  %1113 = vmatpush1.bf16.msra.mxu0 0
  %1114 = vmatprep.subr.bf16.mxu0 0
  %1115 = vmatpush1.bf16.msra.mxu0 0
  %1116 = vmatprep.subr.bf16.mxu0 0
  %1117 = vmatpush1.bf16.msra.mxu0 0
  %1118 = vmatprep.subr.bf16.mxu0 0
  %1119 = vmatpush1.bf16.msra.mxu0 0
  %1120 = vmatprep.mubr.bf16.mxu0 0
  %1121 = vmatmul.mubr.bf16.gmra.mrb[0].mxu0 %v194
  %v1122 = vpop.f32.mrb[0].mxu0
  %v1123 = vadd.f32 %v1082, %v1122
  %v1124 = vpop.f32.mrb[0].mxu0
  %v1125 = vadd.f32 %v1084, %v1124
  %v1126 = vpop.f32.mrb[0].mxu0
  %v1127 = vpop.f32.mrb[0].mxu0
  %1128 = vdwg.mxu0
  %v1129 = vadd.f32 %v21, %v1123
  %v1130 = vadd.f32 %v22, %v1125
  %1131 = vst [vmem:[%s3] sm:$0xff] %v1129
  %1132 = vst [vmem:[%s3 + $0x8] sm:$0xff] %v1130
  // Predicated region
  $region18: #{branchnet_forward.7} parent=0 // pred_check
    %p1133 = pneg %p15
  $region19: #{branchnet_forward.7} parent=0 // pred_check_branch
    %1135 = sbr.rel (%p1133) target = $region21
  $region20: #{branchnet_forward.7} parent=0 // pred_region
    %v1136 = vld [vmem:[%s3] sm:$0xff]
    %v1137 = vld [vmem:[%s3 + $0x8] sm:$0xff]
    %v1138 = vld [vmem:[%s2] sm:$0x3]
    %v1140 = vlaneseq
    %v1141 = vshrl.u32 %v1140, 7
    %v1142 = vsub.s32 0, %v1141
    %v1143 = vrot.slane %v1138, %v1142
    %v1144 = vlaneseq
    %v1145 = vshrl.u32 %v1144, 7
    %v1146 = vsub.s32 1, %v1145
    %v1147 = vrot.slane %v1138, %v1146
    %v1150 = vadd.f32 %v1136, %v1143
    %v1151 = vadd.f32 %v1137, %v1147
    %1152 = vst [vmem:[%s3] sm:$0xff] %v1150
    %1153 = vst [vmem:[%s3 + $0x8] sm:$0xff] %v1151
  $region21: #{branchnet_forward.7} parent=0 // pred_fallthru
    _
  // Predicated region
  $region22: #{branchnet_forward.7} parent=0 // pred_check
    _
  $region23: #{branchnet_forward.7} parent=0 // pred_check_branch
    %1155 = sbr.rel (0) target = $region25
  $region24: #{branchnet_forward.7} parent=0 // pred_region
    _
  $region25: #{branchnet_forward.7} parent=0 // pred_fallthru
    _
  // Predicated region
  $region26: #{branchnet_forward.7} parent=0 // pred_check
    _
  $region27: #{branchnet_forward.7} parent=0 // pred_check_branch
    %1157 = sbr.rel (0) target = $region29
  $region28: #{branchnet_forward.7} parent=0 // pred_region
    _
  $region29: #{branchnet_forward.7} parent=0 // pred_fallthru
    _

// kernel: branchnet_forward.6
$region0: #{branchnet_forward.6}
  #allocation0 [shape = 'u32[]', space=smem, size = 0x4, offset = 0x4, fixed_abs, tag = 'smem constant byte address 0x4 - core index']
  #allocation1 [shape = 'u32[144,128]{1,0:T(1,128)}', space=vmem, size = 0x12000, scoped, tag = 'internal scratch']
  %s0 = inlined_call_operand.vmem [shape: bf16[8,896], index: 0, kind: input, shape index: {}]
  %s1 = inlined_call_operand.vmem [shape: bf16[896,1152], index: 1, kind: input, shape index: {}]
  %s2 = inlined_call_operand.vmem [shape: f32[1,1152], index: 2, kind: input, shape index: {}]
  %s3 = inlined_call_operand.vmem [shape: f32[8,1152], index: 3, kind: output, shape index: {}]
  %s4 = sld [smem:[#allocation0]]
  $region79: #{branchnet_forward.6} parent=0
    _
  %s6 = ssub.s32 1, %s4
  %s7 = scalar_select 0, %s6, %s4
  $region1: #{branchnet_forward.6} parent=0
    #allocation2 [shape = 'u8[1376256]{0}', space=vmem, size = 0x150000, scoped, tag = 'input window, operand 1']
    loop: start=0, step=1, limit=5
    $region2: #{branchnet_forward.6} parent=1 // loop_pre_header
      _
    $region3: #{branchnet_forward.6} parent=1 // loop_header
      %s9 = sphi 0, %s13
      %p10 = scmp.ge.s32.totalorder %s9, 5
      %s16 = sphi 0, %s35
      %s17 = sphi 0, %s31
      %s18 = sphi 0, %s27
      %s19 = sphi 0, %s16
      %s20 = sphi 0, %s17
      %s21 = sphi 0, %s18
      %s22 = sphi 0, %s19
      %s23 = sphi 0, %s20
      %s24 = sphi 0, %s21
      %s40 = sphi 0, %s42
      %s43 = sphi 0, %s40
      %s44 = sphi 0, %s43
      %s60 = sphi 0, %s44
      %s68 = sphi 0, %s70
      %s71 = sphi 0, %s68
      %s72 = sphi 0, %s71
      %s88 = sphi 0, %s72
      %s94 = sphi 0, %s96
      %s97 = sphi 0, %s94
      %s98 = sphi 0, %s97
      %s114 = sphi 0, %s98
      %s122 = sphi 0, %s124
      %s125 = sphi 0, %s122
      %s126 = sphi 0, %s125
      %s142 = sphi 0, %s126
    $region4: #{branchnet_forward.6} parent=1 // loop_header_branch
      %12 = sbr.rel (%p10) target = $region8
    $region5: #{branchnet_forward.6} parent=1 // loop_body
      %s14 = ssub.s32 %s9, 1
      %s15 = ssub.s32 %s9, 2
      %s25 = sadd.s32 1, %s18
      %p26 = scmp.ge.s32.totalorder %s25, 1
      %s27 = scalar_select %p26, 0, %s25
      %s28 = sadd.s32 1, %s17
      %s29 = scalar_select %p26, %s28, %s17
      %p30 = scmp.ge.s32.totalorder %s29, 3
      %s31 = scalar_select %p30, 0, %s29
      %s32 = sadd.s32 1, %s16
      %s33 = scalar_select %p30, %s32, %s16
      %p34 = scmp.ge.s32.totalorder %s33, 1
      %s35 = scalar_select %p34, 0, %s33
      %s36 = ssub.s32 %s16, %s35
      %s37 = ssub.s32 %s18, %s27
      %s38 = sor.u32 %s36, %s37
      %p39 = scmp.eq.s32.totalorder %s38, 0
      %s41 = sadd.s32 %s40, 1
      %s42 = scalar_select %p39, %s40, %s41
      %p45 = pneg %p39
      %p46 = scmp.eq.s32.totalorder %s9, 2
      %p47 = por %p45, %p46
      %p48 = scmp.ne.s32.totalorder %s40, %s43
      %p49 = scmp.eq.s32.totalorder %s9, 0
      %p50 = por %p48, %p49
      %p51 = scmp.ne.s32.totalorder %s40, %s43
      %p52 = scmp.eq.s32.totalorder %s14, 2
      %p53 = por %p51, %p52
      %p54 = scmp.ne.s32.totalorder %s43, %s44
      %p55 = scmp.eq.s32.totalorder %s14, 0
      %p56 = por %p54, %p55
      %p57 = scmp.ne.s32.totalorder %s43, %s44
      %p58 = scmp.eq.s32.totalorder %s15, 2
      %p59 = por %p57, %p58
      %p61 = scmp.ne.s32.totalorder %s44, %s60
      %p62 = scmp.eq.s32.totalorder %s15, 0
      %p63 = por %p61, %p62
      %s64 = ssub.s32 %s18, %s27
      %s65 = ssub.s32 %s17, %s31
      %s66 = sor.u32 %s64, %s65
      %p67 = scmp.eq.s32.totalorder %s66, 0
      %s69 = sadd.s32 %s68, 1
      %s70 = scalar_select %p67, %s68, %s69
      %p73 = pneg %p67
      %p74 = scmp.eq.s32.totalorder %s9, 2
      %p75 = por %p73, %p74
      %p76 = scmp.ne.s32.totalorder %s68, %s71
      %p77 = scmp.eq.s32.totalorder %s9, 0
      %p78 = por %p76, %p77
      %p79 = scmp.ne.s32.totalorder %s68, %s71
      %p80 = scmp.eq.s32.totalorder %s14, 2
      %p81 = por %p79, %p80
      %p82 = scmp.ne.s32.totalorder %s71, %s72
      %p83 = scmp.eq.s32.totalorder %s14, 0
      %p84 = por %p82, %p83
      %p85 = scmp.ne.s32.totalorder %s71, %s72
      %p86 = scmp.eq.s32.totalorder %s15, 2
      %p87 = por %p85, %p86
      %p89 = scmp.ne.s32.totalorder %s72, %s88
      %p90 = scmp.eq.s32.totalorder %s15, 0
      %p91 = por %p89, %p90
      %s92 = ssub.s32 %s17, %s31
      %p93 = scmp.eq.s32.totalorder %s92, 0
      %s95 = sadd.s32 %s94, 1
      %s96 = scalar_select %p93, %s94, %s95
      %p99 = pneg %p93
      %p100 = scmp.eq.s32.totalorder %s9, 2
      %p101 = por %p99, %p100
      %p102 = scmp.ne.s32.totalorder %s94, %s97
      %p103 = scmp.eq.s32.totalorder %s9, 0
      %p104 = por %p102, %p103
      %p105 = scmp.ne.s32.totalorder %s94, %s97
      %p106 = scmp.eq.s32.totalorder %s14, 2
      %p107 = por %p105, %p106
      %p108 = scmp.ne.s32.totalorder %s97, %s98
      %p109 = scmp.eq.s32.totalorder %s14, 0
      %p110 = por %p108, %p109
      %p111 = scmp.ne.s32.totalorder %s97, %s98
      %p112 = scmp.eq.s32.totalorder %s15, 2
      %p113 = por %p111, %p112
      %p115 = scmp.ne.s32.totalorder %s98, %s114
      %p116 = scmp.eq.s32.totalorder %s15, 0
      %p117 = por %p115, %p116
      %s118 = ssub.s32 %s16, %s35
      %s119 = ssub.s32 %s17, %s31
      %s120 = sor.u32 %s118, %s119
      %p121 = scmp.eq.s32.totalorder %s120, 0
      %s123 = sadd.s32 %s122, 1
      %s124 = scalar_select %p121, %s122, %s123
      %p127 = pneg %p121
      %p128 = scmp.eq.s32.totalorder %s9, 2
      %p129 = por %p127, %p128
      %p130 = scmp.ne.s32.totalorder %s122, %s125
      %p131 = scmp.eq.s32.totalorder %s9, 0
      %p132 = por %p130, %p131
      %p133 = scmp.ne.s32.totalorder %s122, %s125
      %p134 = scmp.eq.s32.totalorder %s14, 2
      %p135 = por %p133, %p134
      %p136 = scmp.ne.s32.totalorder %s125, %s126
      %p137 = scmp.eq.s32.totalorder %s14, 0
      %p138 = por %p136, %p137
      %p139 = scmp.ne.s32.totalorder %s125, %s126
      %p140 = scmp.eq.s32.totalorder %s15, 2
      %p141 = por %p139, %p140
      %p143 = scmp.ne.s32.totalorder %s126, %s142
      %p144 = scmp.eq.s32.totalorder %s15, 0
      %p145 = por %p143, %p144
      %p146 = scmp.le.s32.totalorder 1, %s9
      %p147 = scmp.lt.s32.totalorder %s9, 4
      %p148 = pnand %p146, %p147
      %p149 = pneg %p148
      // Predicated region
      $region9: #{branchnet_forward.6} parent=5 // pred_check
        _
      $region10: #{branchnet_forward.6} parent=5 // pred_check_branch
        %151 = sbr.rel (%p148) target = $region12
      $region11: #{branchnet_forward.6} parent=5 // pred_region
        %s152 = ssub.s32 %s9, 1
        // Predicated region
        $region13: #{branchnet_forward.6} parent=11 // pred_check
          %p153 = pneg %p56
        $region14: #{branchnet_forward.6} parent=11 // pred_check_branch
          %155 = sbr.rel (%p153) target = $region16
        $region15: #{branchnet_forward.6} parent=11 // pred_region
          %s156 = smul.u32 7, %s21
          %p157 = scmp.lt.s32.totalorder %s19, 0
          %s158 = scalar_select %p157, %s19, 0
          %p159 = scmp.lt.s32.totalorder %s156, 6
          %s160 = scalar_select %p159, %s156, 6
          %s161 = smul.addr %s158, 7
          %s162 = sadd.s32 %s160, %s161
          %s163 = smul.addr %s162, 4
          %s164 = scalar_lea.vmem %s0, %s163
          %s165 = smul.u32 7, %s21
        $region16: #{branchnet_forward.6} parent=11 // pred_fallthru
          _
      $region12: #{branchnet_forward.6} parent=5 // pred_fallthru
        _
      %p166 = scmp.lt.s32.totalorder %s9, 3
      // Predicated region
      $region17: #{branchnet_forward.6} parent=5 // pred_check
        %p167 = pneg %p166
      $region18: #{branchnet_forward.6} parent=5 // pred_check_branch
        %169 = sbr.rel (%p167) target = $region20
      $region19: #{branchnet_forward.6} parent=5 // pred_region
        // Predicated region
        $region21: #{branchnet_forward.6} parent=19 // pred_check
          %p170 = pneg %p78
        $region22: #{branchnet_forward.6} parent=19 // pred_check_branch
          %172 = sbr.rel (%p170) target = $region24
        $region23: #{branchnet_forward.6} parent=19 // pred_region
          %s173 = sand.u32 %s68, 1
          %s174 = sand.u32 %s68, 1
          %s175 = smul.addr %s174, 1344
          %s176 = scalar_lea.vmem [#allocation2], %s175
          %s177 = smul.u32 112, %s18
          %s178 = smul.u32 3, %s17
          %s179 = smul.addr %s177, 9
          %s180 = sadd.s32 %s178, %s179
          %s181 = smul.addr %s180, 4
          %s182 = scalar_lea.vmem %s1, %s181
          // Predicated region
          $region25: #{branchnet_forward.6} parent=23 // pred_check
            _
          $region26: #{branchnet_forward.6} parent=23 // pred_check_branch
            %184 = sbr.rel (0) target = $region28
          $region27: #{branchnet_forward.6} parent=23 // pred_region
            // Predicated region
            $region29: #{branchnet_forward.6} parent=27 // pred_check
              _
            $region30: #{branchnet_forward.6} parent=27 // pred_check_branch
              %186 = sbr.rel (0) target = $region32
            $region31: #{branchnet_forward.6} parent=27 // pred_region
              %s187 = scalar_lea.vmem %s182, 8
              %s188 = scalar_lea.vmem %s176, 8 [#allocation2]
              loop: start=0, step=1, limit=1
              $region33: #{branchnet_forward.6} parent=31 // loop_pre_header
                _
              $region34: #{branchnet_forward.6} parent=31 // loop_header
                %s190 = sphi 0, %s194
                %p191 = scmp.ge.s32.totalorder %s190, 1
                %s195 = sphi %s182, %s182
                %s196 = sphi %s176, %s176
              $region35: #{branchnet_forward.6} parent=31 // loop_header_branch
                %193 = sbr.rel (%p191) target = $region39
              $region36: #{branchnet_forward.6} parent=31 // loop_body
                %v197 = vld [vmem:[%s195] sm:$0xff]
                %198 = vst [vmem:[%s196] sm:$0xff] %v197
                %v199 = vld [vmem:[%s195 + $0x24] sm:$0xff]
                %200 = vst [vmem:[%s196 + $0xc] sm:$0xff] %v199
                %v201 = vld [vmem:[%s195 + $0x48] sm:$0xff]
                %202 = vst [vmem:[%s196 + $0x18] sm:$0xff] %v201
                %v203 = vld [vmem:[%s195 + $0x6c] sm:$0xff]
                %204 = vst [vmem:[%s196 + $0x24] sm:$0xff] %v203
                %v205 = vld [vmem:[%s195 + $0x90] sm:$0xff]
                %206 = vst [vmem:[%s196 + $0x30] sm:$0xff] %v205
                %v207 = vld [vmem:[%s195 + $0xb4] sm:$0xff]
                %208 = vst [vmem:[%s196 + $0x3c] sm:$0xff] %v207
                %v209 = vld [vmem:[%s195 + $0xd8] sm:$0xff]
                %210 = vst [vmem:[%s196 + $0x48] sm:$0xff] %v209
                %v211 = vld [vmem:[%s195 + $0xfc] sm:$0xff]
                %212 = vst [vmem:[%s196 + $0x54] sm:$0xff] %v211
                %v213 = vld [vmem:[%s195 + $0x120] sm:$0xff]
                %214 = vst [vmem:[%s196 + $0x60] sm:$0xff] %v213
                %v215 = vld [vmem:[%s195 + $0x144] sm:$0xff]
                %216 = vst [vmem:[%s196 + $0x6c] sm:$0xff] %v215
                %v217 = vld [vmem:[%s195 + $0x168] sm:$0xff]
                %218 = vst [vmem:[%s196 + $0x78] sm:$0xff] %v217
                %v219 = vld [vmem:[%s195 + $0x18c] sm:$0xff]
                %220 = vst [vmem:[%s196 + $0x84] sm:$0xff] %v219
                %v221 = vld [vmem:[%s195 + $0x1b0] sm:$0xff]
                %222 = vst [vmem:[%s196 + $0x90] sm:$0xff] %v221
                %v223 = vld [vmem:[%s195 + $0x1d4] sm:$0xff]
                %224 = vst [vmem:[%s196 + $0x9c] sm:$0xff] %v223
                %v225 = vld [vmem:[%s195 + $0x1f8] sm:$0xff]
                %226 = vst [vmem:[%s196 + $0xa8] sm:$0xff] %v225
                %v227 = vld [vmem:[%s195 + $0x21c] sm:$0xff]
                %228 = vst [vmem:[%s196 + $0xb4] sm:$0xff] %v227
                %v229 = vld [vmem:[%s195 + $0x240] sm:$0xff]
                %230 = vst [vmem:[%s196 + $0xc0] sm:$0xff] %v229
                %v231 = vld [vmem:[%s195 + $0x264] sm:$0xff]
                %232 = vst [vmem:[%s196 + $0xcc] sm:$0xff] %v231
                %v233 = vld [vmem:[%s195 + $0x288] sm:$0xff]
                %234 = vst [vmem:[%s196 + $0xd8] sm:$0xff] %v233
                %v235 = vld [vmem:[%s195 + $0x2ac] sm:$0xff]
                %236 = vst [vmem:[%s196 + $0xe4] sm:$0xff] %v235
                %v237 = vld [vmem:[%s195 + $0x2d0] sm:$0xff]
                %238 = vst [vmem:[%s196 + $0xf0] sm:$0xff] %v237
                %v239 = vld [vmem:[%s195 + $0x2f4] sm:$0xff]
                %240 = vst [vmem:[%s196 + $0xfc] sm:$0xff] %v239
                %v241 = vld [vmem:[%s195 + $0x318] sm:$0xff]
                %242 = vst [vmem:[%s196 + $0x108] sm:$0xff] %v241
                %v243 = vld [vmem:[%s195 + $0x33c] sm:$0xff]
                %244 = vst [vmem:[%s196 + $0x114] sm:$0xff] %v243
                %v245 = vld [vmem:[%s195 + $0x360] sm:$0xff]
                %246 = vst [vmem:[%s196 + $0x120] sm:$0xff] %v245
                %v247 = vld [vmem:[%s195 + $0x384] sm:$0xff]
                %248 = vst [vmem:[%s196 + $0x12c] sm:$0xff] %v247
                %v249 = vld [vmem:[%s195 + $0x3a8] sm:$0xff]
                %250 = vst [vmem:[%s196 + $0x138] sm:$0xff] %v249
                %v251 = vld [vmem:[%s195 + $0x3cc] sm:$0xff]
                %252 = vst [vmem:[%s196 + $0x144] sm:$0xff] %v251
                %v253 = vld [vmem:[%s195 + $0x3f0] sm:$0xff]
                %254 = vst [vmem:[%s196 + $0x150] sm:$0xff] %v253
                %v255 = vld [vmem:[%s195 + $0x414] sm:$0xff]
                %256 = vst [vmem:[%s196 + $0x15c] sm:$0xff] %v255
                %v257 = vld [vmem:[%s195 + $0x438] sm:$0xff]
                %258 = vst [vmem:[%s196 + $0x168] sm:$0xff] %v257
                %v259 = vld [vmem:[%s195 + $0x45c] sm:$0xff]
                %260 = vst [vmem:[%s196 + $0x174] sm:$0xff] %v259
                %v261 = vld [vmem:[%s195 + $0x480] sm:$0xff]
                %262 = vst [vmem:[%s196 + $0x180] sm:$0xff] %v261
                %v263 = vld [vmem:[%s195 + $0x4a4] sm:$0xff]
                %264 = vst [vmem:[%s196 + $0x18c] sm:$0xff] %v263
                %v265 = vld [vmem:[%s195 + $0x4c8] sm:$0xff]
                %266 = vst [vmem:[%s196 + $0x198] sm:$0xff] %v265
                %v267 = vld [vmem:[%s195 + $0x4ec] sm:$0xff]
                %268 = vst [vmem:[%s196 + $0x1a4] sm:$0xff] %v267
                %v269 = vld [vmem:[%s195 + $0x510] sm:$0xff]
                %270 = vst [vmem:[%s196 + $0x1b0] sm:$0xff] %v269
                %v271 = vld [vmem:[%s195 + $0x534] sm:$0xff]
                %272 = vst [vmem:[%s196 + $0x1bc] sm:$0xff] %v271
                %v273 = vld [vmem:[%s195 + $0x558] sm:$0xff]
                %274 = vst [vmem:[%s196 + $0x1c8] sm:$0xff] %v273
                %v275 = vld [vmem:[%s195 + $0x57c] sm:$0xff]
                %276 = vst [vmem:[%s196 + $0x1d4] sm:$0xff] %v275
                %v277 = vld [vmem:[%s195 + $0x5a0] sm:$0xff]
                %278 = vst [vmem:[%s196 + $0x1e0] sm:$0xff] %v277
                %v279 = vld [vmem:[%s195 + $0x5c4] sm:$0xff]
                %280 = vst [vmem:[%s196 + $0x1ec] sm:$0xff] %v279
                %v281 = vld [vmem:[%s195 + $0x5e8] sm:$0xff]
                %282 = vst [vmem:[%s196 + $0x1f8] sm:$0xff] %v281
                %v283 = vld [vmem:[%s195 + $0x60c] sm:$0xff]
                %284 = vst [vmem:[%s196 + $0x204] sm:$0xff] %v283
                %v285 = vld [vmem:[%s195 + $0x630] sm:$0xff]
                %286 = vst [vmem:[%s196 + $0x210] sm:$0xff] %v285
                %v287 = vld [vmem:[%s195 + $0x654] sm:$0xff]
                %288 = vst [vmem:[%s196 + $0x21c] sm:$0xff] %v287
                %v289 = vld [vmem:[%s195 + $0x678] sm:$0xff]
                %290 = vst [vmem:[%s196 + $0x228] sm:$0xff] %v289
                %v291 = vld [vmem:[%s195 + $0x69c] sm:$0xff]
                %292 = vst [vmem:[%s196 + $0x234] sm:$0xff] %v291
                %v293 = vld [vmem:[%s195 + $0x6c0] sm:$0xff]
                %294 = vst [vmem:[%s196 + $0x240] sm:$0xff] %v293
                %v295 = vld [vmem:[%s195 + $0x6e4] sm:$0xff]
                %296 = vst [vmem:[%s196 + $0x24c] sm:$0xff] %v295
                %v297 = vld [vmem:[%s195 + $0x708] sm:$0xff]
                %298 = vst [vmem:[%s196 + $0x258] sm:$0xff] %v297
                %v299 = vld [vmem:[%s195 + $0x72c] sm:$0xff]
                %300 = vst [vmem:[%s196 + $0x264] sm:$0xff] %v299
                %v301 = vld [vmem:[%s195 + $0x750] sm:$0xff]
                %302 = vst [vmem:[%s196 + $0x270] sm:$0xff] %v301
                %v303 = vld [vmem:[%s195 + $0x774] sm:$0xff]
                %304 = vst [vmem:[%s196 + $0x27c] sm:$0xff] %v303
                %v305 = vld [vmem:[%s195 + $0x798] sm:$0xff]
                %306 = vst [vmem:[%s196 + $0x288] sm:$0xff] %v305
                %v307 = vld [vmem:[%s195 + $0x7bc] sm:$0xff]
                %308 = vst [vmem:[%s196 + $0x294] sm:$0xff] %v307
                %v309 = vld [vmem:[%s195 + $0x7e0] sm:$0xff]
                %310 = vst [vmem:[%s196 + $0x2a0] sm:$0xff] %v309
                %v311 = vld [vmem:[%s195 + $0x804] sm:$0xff]
                %312 = vst [vmem:[%s196 + $0x2ac] sm:$0xff] %v311
                %v313 = vld [vmem:[%s195 + $0x828] sm:$0xff]
                %314 = vst [vmem:[%s196 + $0x2b8] sm:$0xff] %v313
                %v315 = vld [vmem:[%s195 + $0x84c] sm:$0xff]
                %316 = vst [vmem:[%s196 + $0x2c4] sm:$0xff] %v315
                %v317 = vld [vmem:[%s195 + $0x870] sm:$0xff]
                %318 = vst [vmem:[%s196 + $0x2d0] sm:$0xff] %v317
                %v319 = vld [vmem:[%s195 + $0x894] sm:$0xff]
                %320 = vst [vmem:[%s196 + $0x2dc] sm:$0xff] %v319
                %v321 = vld [vmem:[%s195 + $0x8b8] sm:$0xff]
                %322 = vst [vmem:[%s196 + $0x2e8] sm:$0xff] %v321
                %v323 = vld [vmem:[%s195 + $0x8dc] sm:$0xff]
                %324 = vst [vmem:[%s196 + $0x2f4] sm:$0xff] %v323
                %v325 = vld [vmem:[%s195 + $0x900] sm:$0xff]
                %326 = vst [vmem:[%s196 + $0x300] sm:$0xff] %v325
                %v327 = vld [vmem:[%s195 + $0x924] sm:$0xff]
                %328 = vst [vmem:[%s196 + $0x30c] sm:$0xff] %v327
                %v329 = vld [vmem:[%s195 + $0x948] sm:$0xff]
                %330 = vst [vmem:[%s196 + $0x318] sm:$0xff] %v329
                %v331 = vld [vmem:[%s195 + $0x96c] sm:$0xff]
                %332 = vst [vmem:[%s196 + $0x324] sm:$0xff] %v331
                %v333 = vld [vmem:[%s195 + $0x990] sm:$0xff]
                %334 = vst [vmem:[%s196 + $0x330] sm:$0xff] %v333
                %v335 = vld [vmem:[%s195 + $0x9b4] sm:$0xff]
                %336 = vst [vmem:[%s196 + $0x33c] sm:$0xff] %v335
                %v337 = vld [vmem:[%s195 + $0x9d8] sm:$0xff]
                %338 = vst [vmem:[%s196 + $0x348] sm:$0xff] %v337
                %v339 = vld [vmem:[%s195 + $0x9fc] sm:$0xff]
                %340 = vst [vmem:[%s196 + $0x354] sm:$0xff] %v339
                %v341 = vld [vmem:[%s195 + $0xa20] sm:$0xff]
                %342 = vst [vmem:[%s196 + $0x360] sm:$0xff] %v341
                %v343 = vld [vmem:[%s195 + $0xa44] sm:$0xff]
                %344 = vst [vmem:[%s196 + $0x36c] sm:$0xff] %v343
                %v345 = vld [vmem:[%s195 + $0xa68] sm:$0xff]
                %346 = vst [vmem:[%s196 + $0x378] sm:$0xff] %v345
                %v347 = vld [vmem:[%s195 + $0xa8c] sm:$0xff]
                %348 = vst [vmem:[%s196 + $0x384] sm:$0xff] %v347
                %v349 = vld [vmem:[%s195 + $0xab0] sm:$0xff]
                %350 = vst [vmem:[%s196 + $0x390] sm:$0xff] %v349
                %v351 = vld [vmem:[%s195 + $0xad4] sm:$0xff]
                %352 = vst [vmem:[%s196 + $0x39c] sm:$0xff] %v351
                %v353 = vld [vmem:[%s195 + $0xaf8] sm:$0xff]
                %354 = vst [vmem:[%s196 + $0x3a8] sm:$0xff] %v353
                %v355 = vld [vmem:[%s195 + $0xb1c] sm:$0xff]
                %356 = vst [vmem:[%s196 + $0x3b4] sm:$0xff] %v355
                %v357 = vld [vmem:[%s195 + $0xb40] sm:$0xff]
                %358 = vst [vmem:[%s196 + $0x3c0] sm:$0xff] %v357
                %v359 = vld [vmem:[%s195 + $0xb64] sm:$0xff]
                %360 = vst [vmem:[%s196 + $0x3cc] sm:$0xff] %v359
                %v361 = vld [vmem:[%s195 + $0xb88] sm:$0xff]
                %362 = vst [vmem:[%s196 + $0x3d8] sm:$0xff] %v361
                %v363 = vld [vmem:[%s195 + $0xbac] sm:$0xff]
                %364 = vst [vmem:[%s196 + $0x3e4] sm:$0xff] %v363
                %v365 = vld [vmem:[%s195 + $0xbd0] sm:$0xff]
                %366 = vst [vmem:[%s196 + $0x3f0] sm:$0xff] %v365
                %v367 = vld [vmem:[%s195 + $0xbf4] sm:$0xff]
                %368 = vst [vmem:[%s196 + $0x3fc] sm:$0xff] %v367
                %v369 = vld [vmem:[%s195 + $0xc18] sm:$0xff]
                %370 = vst [vmem:[%s196 + $0x408] sm:$0xff] %v369
                %v371 = vld [vmem:[%s195 + $0xc3c] sm:$0xff]
                %372 = vst [vmem:[%s196 + $0x414] sm:$0xff] %v371
                %v373 = vld [vmem:[%s195 + $0xc60] sm:$0xff]
                %374 = vst [vmem:[%s196 + $0x420] sm:$0xff] %v373
                %v375 = vld [vmem:[%s195 + $0xc84] sm:$0xff]
                %376 = vst [vmem:[%s196 + $0x42c] sm:$0xff] %v375
                %v377 = vld [vmem:[%s195 + $0xca8] sm:$0xff]
                %378 = vst [vmem:[%s196 + $0x438] sm:$0xff] %v377
                %v379 = vld [vmem:[%s195 + $0xccc] sm:$0xff]
                %380 = vst [vmem:[%s196 + $0x444] sm:$0xff] %v379
                %v381 = vld [vmem:[%s195 + $0xcf0] sm:$0xff]
                %382 = vst [vmem:[%s196 + $0x450] sm:$0xff] %v381
                %v383 = vld [vmem:[%s195 + $0xd14] sm:$0xff]
                %384 = vst [vmem:[%s196 + $0x45c] sm:$0xff] %v383
                %v385 = vld [vmem:[%s195 + $0xd38] sm:$0xff]
                %386 = vst [vmem:[%s196 + $0x468] sm:$0xff] %v385
                %v387 = vld [vmem:[%s195 + $0xd5c] sm:$0xff]
                %388 = vst [vmem:[%s196 + $0x474] sm:$0xff] %v387
                %v389 = vld [vmem:[%s195 + $0xd80] sm:$0xff]
                %390 = vst [vmem:[%s196 + $0x480] sm:$0xff] %v389
                %v391 = vld [vmem:[%s195 + $0xda4] sm:$0xff]
                %392 = vst [vmem:[%s196 + $0x48c] sm:$0xff] %v391
                %v393 = vld [vmem:[%s195 + $0xdc8] sm:$0xff]
                %394 = vst [vmem:[%s196 + $0x498] sm:$0xff] %v393
                %v395 = vld [vmem:[%s195 + $0xdec] sm:$0xff]
                %396 = vst [vmem:[%s196 + $0x4a4] sm:$0xff] %v395
                %v397 = vld [vmem:[%s195 + $0xe10] sm:$0xff]
                %398 = vst [vmem:[%s196 + $0x4b0] sm:$0xff] %v397
                %v399 = vld [vmem:[%s195 + $0xe34] sm:$0xff]
                %400 = vst [vmem:[%s196 + $0x4bc] sm:$0xff] %v399
                %v401 = vld [vmem:[%s195 + $0xe58] sm:$0xff]
                %402 = vst [vmem:[%s196 + $0x4c8] sm:$0xff] %v401
                %v403 = vld [vmem:[%s195 + $0xe7c] sm:$0xff]
                %404 = vst [vmem:[%s196 + $0x4d4] sm:$0xff] %v403
                %v405 = vld [vmem:[%s195 + $0xea0] sm:$0xff]
                %406 = vst [vmem:[%s196 + $0x4e0] sm:$0xff] %v405
                %v407 = vld [vmem:[%s195 + $0xec4] sm:$0xff]
                %408 = vst [vmem:[%s196 + $0x4ec] sm:$0xff] %v407
                %v409 = vld [vmem:[%s195 + $0xee8] sm:$0xff]
                %410 = vst [vmem:[%s196 + $0x4f8] sm:$0xff] %v409
                %v411 = vld [vmem:[%s195 + $0xf0c] sm:$0xff]
                %412 = vst [vmem:[%s196 + $0x504] sm:$0xff] %v411
                %v413 = vld [vmem:[%s195 + $0xf30] sm:$0xff]
                %414 = vst [vmem:[%s196 + $0x510] sm:$0xff] %v413
                %v415 = vld [vmem:[%s195 + $0xf54] sm:$0xff]
                %416 = vst [vmem:[%s196 + $0x51c] sm:$0xff] %v415
                %v417 = vld [vmem:[%s195 + $0xf78] sm:$0xff]
                %418 = vst [vmem:[%s196 + $0x528] sm:$0xff] %v417
                %v419 = vld [vmem:[%s195 + $0xf9c] sm:$0xff]
                %420 = vst [vmem:[%s196 + $0x534] sm:$0xff] %v419
              $region37: #{branchnet_forward.6} parent=31 // loop_footer
                %s194 = sadd.s32 1, %s190
              $region38: #{branchnet_forward.6} parent=31 // loop_footer_branch
                %189 = sbr.rel target = $region34
              $region39: #{branchnet_forward.6} parent=31 // loop_exit
                _
              loop: start=0, step=1, limit=1
              $region40: #{branchnet_forward.6} parent=31 // loop_pre_header
                _
              $region41: #{branchnet_forward.6} parent=31 // loop_header
                %s423 = sphi 0, %s427
                %p424 = scmp.ge.s32.totalorder %s423, 1
                %s428 = sphi %s187, %s187
                %s429 = sphi %s188, %s188
              $region42: #{branchnet_forward.6} parent=31 // loop_header_branch
                %426 = sbr.rel (%p424) target = $region46
              $region43: #{branchnet_forward.6} parent=31 // loop_body
                %v430 = vld [vmem:[%s428] sm:$0xf]
                %431 = vst [vmem:[%s429] sm:$0xf] %v430
                %v432 = vld [vmem:[%s428 + $0x24] sm:$0xf]
                %433 = vst [vmem:[%s429 + $0xc] sm:$0xf] %v432
                %v434 = vld [vmem:[%s428 + $0x48] sm:$0xf]
                %435 = vst [vmem:[%s429 + $0x18] sm:$0xf] %v434
                %v436 = vld [vmem:[%s428 + $0x6c] sm:$0xf]
                %437 = vst [vmem:[%s429 + $0x24] sm:$0xf] %v436
                %v438 = vld [vmem:[%s428 + $0x90] sm:$0xf]
                %439 = vst [vmem:[%s429 + $0x30] sm:$0xf] %v438
                %v440 = vld [vmem:[%s428 + $0xb4] sm:$0xf]
                %441 = vst [vmem:[%s429 + $0x3c] sm:$0xf] %v440
                %v442 = vld [vmem:[%s428 + $0xd8] sm:$0xf]
                %443 = vst [vmem:[%s429 + $0x48] sm:$0xf] %v442
                %v444 = vld [vmem:[%s428 + $0xfc] sm:$0xf]
                %445 = vst [vmem:[%s429 + $0x54] sm:$0xf] %v444
                %v446 = vld [vmem:[%s428 + $0x120] sm:$0xf]
                %447 = vst [vmem:[%s429 + $0x60] sm:$0xf] %v446
                %v448 = vld [vmem:[%s428 + $0x144] sm:$0xf]
                %449 = vst [vmem:[%s429 + $0x6c] sm:$0xf] %v448
                %v450 = vld [vmem:[%s428 + $0x168] sm:$0xf]
                %451 = vst [vmem:[%s429 + $0x78] sm:$0xf] %v450
                %v452 = vld [vmem:[%s428 + $0x18c] sm:$0xf]
                %453 = vst [vmem:[%s429 + $0x84] sm:$0xf] %v452
                %v454 = vld [vmem:[%s428 + $0x1b0] sm:$0xf]
                %455 = vst [vmem:[%s429 + $0x90] sm:$0xf] %v454
                %v456 = vld [vmem:[%s428 + $0x1d4] sm:$0xf]
                %457 = vst [vmem:[%s429 + $0x9c] sm:$0xf] %v456
                %v458 = vld [vmem:[%s428 + $0x1f8] sm:$0xf]
                %459 = vst [vmem:[%s429 + $0xa8] sm:$0xf] %v458
                %v460 = vld [vmem:[%s428 + $0x21c] sm:$0xf]
                %461 = vst [vmem:[%s429 + $0xb4] sm:$0xf] %v460
                %v462 = vld [vmem:[%s428 + $0x240] sm:$0xf]
                %463 = vst [vmem:[%s429 + $0xc0] sm:$0xf] %v462
                %v464 = vld [vmem:[%s428 + $0x264] sm:$0xf]
                %465 = vst [vmem:[%s429 + $0xcc] sm:$0xf] %v464
                %v466 = vld [vmem:[%s428 + $0x288] sm:$0xf]
                %467 = vst [vmem:[%s429 + $0xd8] sm:$0xf] %v466
                %v468 = vld [vmem:[%s428 + $0x2ac] sm:$0xf]
                %469 = vst [vmem:[%s429 + $0xe4] sm:$0xf] %v468
                %v470 = vld [vmem:[%s428 + $0x2d0] sm:$0xf]
                %471 = vst [vmem:[%s429 + $0xf0] sm:$0xf] %v470
                %v472 = vld [vmem:[%s428 + $0x2f4] sm:$0xf]
                %473 = vst [vmem:[%s429 + $0xfc] sm:$0xf] %v472
                %v474 = vld [vmem:[%s428 + $0x318] sm:$0xf]
                %475 = vst [vmem:[%s429 + $0x108] sm:$0xf] %v474
                %v476 = vld [vmem:[%s428 + $0x33c] sm:$0xf]
                %477 = vst [vmem:[%s429 + $0x114] sm:$0xf] %v476
                %v478 = vld [vmem:[%s428 + $0x360] sm:$0xf]
                %479 = vst [vmem:[%s429 + $0x120] sm:$0xf] %v478
                %v480 = vld [vmem:[%s428 + $0x384] sm:$0xf]
                %481 = vst [vmem:[%s429 + $0x12c] sm:$0xf] %v480
                %v482 = vld [vmem:[%s428 + $0x3a8] sm:$0xf]
                %483 = vst [vmem:[%s429 + $0x138] sm:$0xf] %v482
                %v484 = vld [vmem:[%s428 + $0x3cc] sm:$0xf]
                %485 = vst [vmem:[%s429 + $0x144] sm:$0xf] %v484
                %v486 = vld [vmem:[%s428 + $0x3f0] sm:$0xf]
                %487 = vst [vmem:[%s429 + $0x150] sm:$0xf] %v486
                %v488 = vld [vmem:[%s428 + $0x414] sm:$0xf]
                %489 = vst [vmem:[%s429 + $0x15c] sm:$0xf] %v488
                %v490 = vld [vmem:[%s428 + $0x438] sm:$0xf]
                %491 = vst [vmem:[%s429 + $0x168] sm:$0xf] %v490
                %v492 = vld [vmem:[%s428 + $0x45c] sm:$0xf]
                %493 = vst [vmem:[%s429 + $0x174] sm:$0xf] %v492
                %v494 = vld [vmem:[%s428 + $0x480] sm:$0xf]
                %495 = vst [vmem:[%s429 + $0x180] sm:$0xf] %v494
                %v496 = vld [vmem:[%s428 + $0x4a4] sm:$0xf]
                %497 = vst [vmem:[%s429 + $0x18c] sm:$0xf] %v496
                %v498 = vld [vmem:[%s428 + $0x4c8] sm:$0xf]
                %499 = vst [vmem:[%s429 + $0x198] sm:$0xf] %v498
                %v500 = vld [vmem:[%s428 + $0x4ec] sm:$0xf]
                %501 = vst [vmem:[%s429 + $0x1a4] sm:$0xf] %v500
                %v502 = vld [vmem:[%s428 + $0x510] sm:$0xf]
                %503 = vst [vmem:[%s429 + $0x1b0] sm:$0xf] %v502
                %v504 = vld [vmem:[%s428 + $0x534] sm:$0xf]
                %505 = vst [vmem:[%s429 + $0x1bc] sm:$0xf] %v504
                %v506 = vld [vmem:[%s428 + $0x558] sm:$0xf]
                %507 = vst [vmem:[%s429 + $0x1c8] sm:$0xf] %v506
                %v508 = vld [vmem:[%s428 + $0x57c] sm:$0xf]
                %509 = vst [vmem:[%s429 + $0x1d4] sm:$0xf] %v508
                %v510 = vld [vmem:[%s428 + $0x5a0] sm:$0xf]
                %511 = vst [vmem:[%s429 + $0x1e0] sm:$0xf] %v510
                %v512 = vld [vmem:[%s428 + $0x5c4] sm:$0xf]
                %513 = vst [vmem:[%s429 + $0x1ec] sm:$0xf] %v512
                %v514 = vld [vmem:[%s428 + $0x5e8] sm:$0xf]
                %515 = vst [vmem:[%s429 + $0x1f8] sm:$0xf] %v514
                %v516 = vld [vmem:[%s428 + $0x60c] sm:$0xf]
                %517 = vst [vmem:[%s429 + $0x204] sm:$0xf] %v516
                %v518 = vld [vmem:[%s428 + $0x630] sm:$0xf]
                %519 = vst [vmem:[%s429 + $0x210] sm:$0xf] %v518
                %v520 = vld [vmem:[%s428 + $0x654] sm:$0xf]
                %521 = vst [vmem:[%s429 + $0x21c] sm:$0xf] %v520
                %v522 = vld [vmem:[%s428 + $0x678] sm:$0xf]
                %523 = vst [vmem:[%s429 + $0x228] sm:$0xf] %v522
                %v524 = vld [vmem:[%s428 + $0x69c] sm:$0xf]
                %525 = vst [vmem:[%s429 + $0x234] sm:$0xf] %v524
                %v526 = vld [vmem:[%s428 + $0x6c0] sm:$0xf]
                %527 = vst [vmem:[%s429 + $0x240] sm:$0xf] %v526
                %v528 = vld [vmem:[%s428 + $0x6e4] sm:$0xf]
                %529 = vst [vmem:[%s429 + $0x24c] sm:$0xf] %v528
                %v530 = vld [vmem:[%s428 + $0x708] sm:$0xf]
                %531 = vst [vmem:[%s429 + $0x258] sm:$0xf] %v530
                %v532 = vld [vmem:[%s428 + $0x72c] sm:$0xf]
                %533 = vst [vmem:[%s429 + $0x264] sm:$0xf] %v532
                %v534 = vld [vmem:[%s428 + $0x750] sm:$0xf]
                %535 = vst [vmem:[%s429 + $0x270] sm:$0xf] %v534
                %v536 = vld [vmem:[%s428 + $0x774] sm:$0xf]
                %537 = vst [vmem:[%s429 + $0x27c] sm:$0xf] %v536
                %v538 = vld [vmem:[%s428 + $0x798] sm:$0xf]
                %539 = vst [vmem:[%s429 + $0x288] sm:$0xf] %v538
                %v540 = vld [vmem:[%s428 + $0x7bc] sm:$0xf]
                %541 = vst [vmem:[%s429 + $0x294] sm:$0xf] %v540
                %v542 = vld [vmem:[%s428 + $0x7e0] sm:$0xf]
                %543 = vst [vmem:[%s429 + $0x2a0] sm:$0xf] %v542
                %v544 = vld [vmem:[%s428 + $0x804] sm:$0xf]
                %545 = vst [vmem:[%s429 + $0x2ac] sm:$0xf] %v544
                %v546 = vld [vmem:[%s428 + $0x828] sm:$0xf]
                %547 = vst [vmem:[%s429 + $0x2b8] sm:$0xf] %v546
                %v548 = vld [vmem:[%s428 + $0x84c] sm:$0xf]
                %549 = vst [vmem:[%s429 + $0x2c4] sm:$0xf] %v548
                %v550 = vld [vmem:[%s428 + $0x870] sm:$0xf]
                %551 = vst [vmem:[%s429 + $0x2d0] sm:$0xf] %v550
                %v552 = vld [vmem:[%s428 + $0x894] sm:$0xf]
                %553 = vst [vmem:[%s429 + $0x2dc] sm:$0xf] %v552
                %v554 = vld [vmem:[%s428 + $0x8b8] sm:$0xf]
                %555 = vst [vmem:[%s429 + $0x2e8] sm:$0xf] %v554
                %v556 = vld [vmem:[%s428 + $0x8dc] sm:$0xf]
                %557 = vst [vmem:[%s429 + $0x2f4] sm:$0xf] %v556
                %v558 = vld [vmem:[%s428 + $0x900] sm:$0xf]
                %559 = vst [vmem:[%s429 + $0x300] sm:$0xf] %v558
                %v560 = vld [vmem:[%s428 + $0x924] sm:$0xf]
                %561 = vst [vmem:[%s429 + $0x30c] sm:$0xf] %v560
                %v562 = vld [vmem:[%s428 + $0x948] sm:$0xf]
                %563 = vst [vmem:[%s429 + $0x318] sm:$0xf] %v562
                %v564 = vld [vmem:[%s428 + $0x96c] sm:$0xf]
                %565 = vst [vmem:[%s429 + $0x324] sm:$0xf] %v564
                %v566 = vld [vmem:[%s428 + $0x990] sm:$0xf]
                %567 = vst [vmem:[%s429 + $0x330] sm:$0xf] %v566
                %v568 = vld [vmem:[%s428 + $0x9b4] sm:$0xf]
                %569 = vst [vmem:[%s429 + $0x33c] sm:$0xf] %v568
                %v570 = vld [vmem:[%s428 + $0x9d8] sm:$0xf]
                %571 = vst [vmem:[%s429 + $0x348] sm:$0xf] %v570
                %v572 = vld [vmem:[%s428 + $0x9fc] sm:$0xf]
                %573 = vst [vmem:[%s429 + $0x354] sm:$0xf] %v572
                %v574 = vld [vmem:[%s428 + $0xa20] sm:$0xf]
                %575 = vst [vmem:[%s429 + $0x360] sm:$0xf] %v574
                %v576 = vld [vmem:[%s428 + $0xa44] sm:$0xf]
                %577 = vst [vmem:[%s429 + $0x36c] sm:$0xf] %v576
                %v578 = vld [vmem:[%s428 + $0xa68] sm:$0xf]
                %579 = vst [vmem:[%s429 + $0x378] sm:$0xf] %v578
                %v580 = vld [vmem:[%s428 + $0xa8c] sm:$0xf]
                %581 = vst [vmem:[%s429 + $0x384] sm:$0xf] %v580
                %v582 = vld [vmem:[%s428 + $0xab0] sm:$0xf]
                %583 = vst [vmem:[%s429 + $0x390] sm:$0xf] %v582
                %v584 = vld [vmem:[%s428 + $0xad4] sm:$0xf]
                %585 = vst [vmem:[%s429 + $0x39c] sm:$0xf] %v584
                %v586 = vld [vmem:[%s428 + $0xaf8] sm:$0xf]
                %587 = vst [vmem:[%s429 + $0x3a8] sm:$0xf] %v586
                %v588 = vld [vmem:[%s428 + $0xb1c] sm:$0xf]
                %589 = vst [vmem:[%s429 + $0x3b4] sm:$0xf] %v588
                %v590 = vld [vmem:[%s428 + $0xb40] sm:$0xf]
                %591 = vst [vmem:[%s429 + $0x3c0] sm:$0xf] %v590
                %v592 = vld [vmem:[%s428 + $0xb64] sm:$0xf]
                %593 = vst [vmem:[%s429 + $0x3cc] sm:$0xf] %v592
                %v594 = vld [vmem:[%s428 + $0xb88] sm:$0xf]
                %595 = vst [vmem:[%s429 + $0x3d8] sm:$0xf] %v594
                %v596 = vld [vmem:[%s428 + $0xbac] sm:$0xf]
                %597 = vst [vmem:[%s429 + $0x3e4] sm:$0xf] %v596
                %v598 = vld [vmem:[%s428 + $0xbd0] sm:$0xf]
                %599 = vst [vmem:[%s429 + $0x3f0] sm:$0xf] %v598
                %v600 = vld [vmem:[%s428 + $0xbf4] sm:$0xf]
                %601 = vst [vmem:[%s429 + $0x3fc] sm:$0xf] %v600
                %v602 = vld [vmem:[%s428 + $0xc18] sm:$0xf]
                %603 = vst [vmem:[%s429 + $0x408] sm:$0xf] %v602
                %v604 = vld [vmem:[%s428 + $0xc3c] sm:$0xf]
                %605 = vst [vmem:[%s429 + $0x414] sm:$0xf] %v604
                %v606 = vld [vmem:[%s428 + $0xc60] sm:$0xf]
                %607 = vst [vmem:[%s429 + $0x420] sm:$0xf] %v606
                %v608 = vld [vmem:[%s428 + $0xc84] sm:$0xf]
                %609 = vst [vmem:[%s429 + $0x42c] sm:$0xf] %v608
                %v610 = vld [vmem:[%s428 + $0xca8] sm:$0xf]
                %611 = vst [vmem:[%s429 + $0x438] sm:$0xf] %v610
                %v612 = vld [vmem:[%s428 + $0xccc] sm:$0xf]
                %613 = vst [vmem:[%s429 + $0x444] sm:$0xf] %v612
                %v614 = vld [vmem:[%s428 + $0xcf0] sm:$0xf]
                %615 = vst [vmem:[%s429 + $0x450] sm:$0xf] %v614
                %v616 = vld [vmem:[%s428 + $0xd14] sm:$0xf]
                %617 = vst [vmem:[%s429 + $0x45c] sm:$0xf] %v616
                %v618 = vld [vmem:[%s428 + $0xd38] sm:$0xf]
                %619 = vst [vmem:[%s429 + $0x468] sm:$0xf] %v618
                %v620 = vld [vmem:[%s428 + $0xd5c] sm:$0xf]
                %621 = vst [vmem:[%s429 + $0x474] sm:$0xf] %v620
                %v622 = vld [vmem:[%s428 + $0xd80] sm:$0xf]
                %623 = vst [vmem:[%s429 + $0x480] sm:$0xf] %v622
                %v624 = vld [vmem:[%s428 + $0xda4] sm:$0xf]
                %625 = vst [vmem:[%s429 + $0x48c] sm:$0xf] %v624
                %v626 = vld [vmem:[%s428 + $0xdc8] sm:$0xf]
                %627 = vst [vmem:[%s429 + $0x498] sm:$0xf] %v626
                %v628 = vld [vmem:[%s428 + $0xdec] sm:$0xf]
                %629 = vst [vmem:[%s429 + $0x4a4] sm:$0xf] %v628
                %v630 = vld [vmem:[%s428 + $0xe10] sm:$0xf]
                %631 = vst [vmem:[%s429 + $0x4b0] sm:$0xf] %v630
                %v632 = vld [vmem:[%s428 + $0xe34] sm:$0xf]
                %633 = vst [vmem:[%s429 + $0x4bc] sm:$0xf] %v632
                %v634 = vld [vmem:[%s428 + $0xe58] sm:$0xf]
                %635 = vst [vmem:[%s429 + $0x4c8] sm:$0xf] %v634
                %v636 = vld [vmem:[%s428 + $0xe7c] sm:$0xf]
                %637 = vst [vmem:[%s429 + $0x4d4] sm:$0xf] %v636
                %v638 = vld [vmem:[%s428 + $0xea0] sm:$0xf]
                %639 = vst [vmem:[%s429 + $0x4e0] sm:$0xf] %v638
                %v640 = vld [vmem:[%s428 + $0xec4] sm:$0xf]
                %641 = vst [vmem:[%s429 + $0x4ec] sm:$0xf] %v640
                %v642 = vld [vmem:[%s428 + $0xee8] sm:$0xf]
                %643 = vst [vmem:[%s429 + $0x4f8] sm:$0xf] %v642
                %v644 = vld [vmem:[%s428 + $0xf0c] sm:$0xf]
                %645 = vst [vmem:[%s429 + $0x504] sm:$0xf] %v644
                %v646 = vld [vmem:[%s428 + $0xf30] sm:$0xf]
                %647 = vst [vmem:[%s429 + $0x510] sm:$0xf] %v646
                %v648 = vld [vmem:[%s428 + $0xf54] sm:$0xf]
                %649 = vst [vmem:[%s429 + $0x51c] sm:$0xf] %v648
                %v650 = vld [vmem:[%s428 + $0xf78] sm:$0xf]
                %651 = vst [vmem:[%s429 + $0x528] sm:$0xf] %v650
                %v652 = vld [vmem:[%s428 + $0xf9c] sm:$0xf]
                %653 = vst [vmem:[%s429 + $0x534] sm:$0xf] %v652
              $region44: #{branchnet_forward.6} parent=31 // loop_footer
                %s427 = sadd.s32 1, %s423
              $region45: #{branchnet_forward.6} parent=31 // loop_footer_branch
                %422 = sbr.rel target = $region41
              $region46: #{branchnet_forward.6} parent=31 // loop_exit
                _
            $region32: #{branchnet_forward.6} parent=27 // pred_fallthru
              _
          $region28: #{branchnet_forward.6} parent=23 // pred_fallthru
            _
          %654 = vnop
        $region24: #{branchnet_forward.6} parent=19 // pred_fallthru
          _
        // Predicated region
        $region47: #{branchnet_forward.6} parent=19 // pred_check
          %p655 = pneg %p104
        $region48: #{branchnet_forward.6} parent=19 // pred_check_branch
          %657 = sbr.rel (%p655) target = $region50
        $region49: #{branchnet_forward.6} parent=19 // pred_region
          %s658 = smul.u32 3, %s17
          %p659 = scmp.lt.s32.totalorder %s658, 8
          %s660 = scalar_select %p659, %s658, 8
          %s661 = scalar_lea.vmem %s2, %s660
          %s662 = smul.u32 3, %s17
        $region50: #{branchnet_forward.6} parent=19 // pred_fallthru
          _
      $region20: #{branchnet_forward.6} parent=5 // pred_fallthru
        _
      %p663 = scmp.le.s32.totalorder 1, %s9
      %p664 = scmp.lt.s32.totalorder %s9, 4
      %p665 = pnand %p663, %p664
      %p666 = pneg %p665
      // Predicated region
      $region51: #{branchnet_forward.6} parent=5 // pred_check
        _
      $region52: #{branchnet_forward.6} parent=5 // pred_check_branch
        %668 = sbr.rel (%p665) target = $region54
      $region53: #{branchnet_forward.6} parent=5 // pred_region
        %s669 = ssub.s32 %s9, 1
        %s670 = sand.u32 %s71, 1
        %s671 = sand.u32 %s71, 1
        %s672 = smul.addr %s671, 1344
        %s673 = scalar_lea.vmem [#allocation2], %s672
        // Predicated region
        $region55: #{branchnet_forward.6} parent=53 // pred_check
          %p674 = pneg %p84
        $region56: #{branchnet_forward.6} parent=53 // pred_check_branch
          %676 = sbr.rel (%p674) target = $region58
        $region57: #{branchnet_forward.6} parent=53 // pred_region
          _
        $region58: #{branchnet_forward.6} parent=53 // pred_fallthru
          _
        %s677 = smul.u32 7, %s21
        %p678 = scmp.lt.s32.totalorder %s19, 0
        %s679 = scalar_select %p678, %s19, 0
        %p680 = scmp.lt.s32.totalorder %s677, 6
        %s681 = scalar_select %p680, %s677, 6
        %s682 = smul.addr %s679, 7
        %s683 = sadd.s32 %s681, %s682
        %s684 = smul.addr %s683, 4
        %s685 = scalar_lea.vmem %s0, %s684
        %p686 = pneg %p56
        %p687 = pneg %p53
        %s688 = sand.u32 %s71, 1
        %s689 = sand.u32 %s71, 1
        %s690 = smul.addr %s689, 1344
        %s691 = scalar_lea.vmem [#allocation2], %s690
        %p692 = pneg %p84
        %p693 = pneg %p81
        %s694 = smul.u32 3, %s20
        %p695 = scmp.lt.s32.totalorder %s694, 8
        %s696 = scalar_select %p695, %s694, 8
        %s697 = scalar_lea.vmem %s2, %s696
        %p698 = pneg %p110
        %p699 = pneg %p107
        %p700 = pneg %p138
        %p701 = pneg %p135
        %s702 = smul.u32 3, %s20
        %p703 = scmp.lt.s32.totalorder %s19, 0
        %s704 = scalar_select %p703, %s19, 0
        %p705 = scmp.lt.s32.totalorder %s702, 8
        %s706 = scalar_select %p705, %s702, 8
        %s707 = smul.addr %s704, 9
        %s708 = sadd.s32 %s706, %s707
        %s709 = smul.addr %s708, 8
        %s710 = scalar_lea.vmem %s3, %s709
        %s711 = smul.u32 7, %s21
        %p712 = scmp.lt.s32.totalorder %s19, 0
        %s713 = scalar_select %p712, %s19, 0
        %p714 = scmp.lt.s32.totalorder %s711, 6
        %s715 = scalar_select %p714, %s711, 6
        %s716 = smul.addr %s713, 7
        %s717 = sadd.s32 %s715, %s716
        %s718 = smul.addr %s717, 4
        %s719 = scalar_lea.vmem %s0, %s718
        %s720 = smul.u32 7, %s21
        %s721 = smul.u32 112, %s21
        %s722 = smul.u32 3, %s20
        %s723 = smul.u32 3, %s20
        %p724 = scmp.lt.s32.totalorder %s723, 8
        %s725 = scalar_select %p724, %s723, 8
        %s726 = scalar_lea.vmem %s2, %s725
        %s727 = smul.u32 3, %s20
        %s728 = smul.u32 3, %s20
        %p729 = scmp.lt.s32.totalorder %s19, 0
        %s730 = scalar_select %p729, %s19, 0
        %p731 = scmp.lt.s32.totalorder %s728, 8
        %s732 = scalar_select %p731, %s728, 8
        %s733 = smul.addr %s730, 9
        %s734 = sadd.s32 %s732, %s733
        %s735 = smul.addr %s734, 8
        %s736 = scalar_lea.vmem %s3, %s735
        %s737 = smul.u32 3, %s20
        %p739 = scmp.eq.s32.totalorder %s21, 0
        // Predicated region
        $region59: #{branchnet_forward.6} parent=53 // pred_check
          %p740 = pneg %p739
        $region60: #{branchnet_forward.6} parent=53 // pred_check_branch
          %742 = sbr.rel (%p740) target = $region62
        $region61: #{branchnet_forward.6} parent=53 // pred_region
          %743 = vst [vmem:[%s736] sm:$0xff] 0.0
          %744 = vst [vmem:[%s736 + $0x8] sm:$0xff] 0.0
          %745 = vst [vmem:[%s736 + $0x10] sm:$0xff] 0.0
        $region62: #{branchnet_forward.6} parent=53 // pred_fallthru
          _
        %v746 = vld [vmem:[%s736] sm:$0xff]
        %v747 = vld [vmem:[%s736 + $0x8] sm:$0xff]
        %v748 = vld [vmem:[%s736 + $0x10] sm:$0xff]
        %v749 = vld [vmem:[%s719] sm:$0xff]
        %v750 = vld [vmem:[%s719 + $0x8] sm:$0xff]
        %v751 = vld [vmem:[%s719 + $0x10] sm:$0xff]
        %v752 = vld [vmem:[%s719 + $0x18] sm:$0xf]
        %v753 = vld [vmem:[%s673] sm:$0xff]
        %v754 = vld [vmem:[%s673 + $0x8] sm:$0xf]
        %v755 = vld [vmem:[%s673 + $0xc] sm:$0xff]
        %v756 = vld [vmem:[%s673 + $0x14] sm:$0xf]
        %v757 = vld [vmem:[%s673 + $0x18] sm:$0xff]
        %v758 = vld [vmem:[%s673 + $0x20] sm:$0xf]
        %v759 = vld [vmem:[%s673 + $0x24] sm:$0xff]
        %v760 = vld [vmem:[%s673 + $0x2c] sm:$0xf]
        %v761 = vld [vmem:[%s673 + $0x30] sm:$0xff]
        %v762 = vld [vmem:[%s673 + $0x38] sm:$0xf]
        %v763 = vld [vmem:[%s673 + $0x3c] sm:$0xff]
        %v764 = vld [vmem:[%s673 + $0x44] sm:$0xf]
        %v765 = vld [vmem:[%s673 + $0x48] sm:$0xff]
        %v766 = vld [vmem:[%s673 + $0x50] sm:$0xf]
        %v767 = vld [vmem:[%s673 + $0x54] sm:$0xff]
        %v768 = vld [vmem:[%s673 + $0x5c] sm:$0xf]
        %v769 = vld [vmem:[%s673 + $0x60] sm:$0xff]
        %v770 = vld [vmem:[%s673 + $0x68] sm:$0xf]
        %v771 = vld [vmem:[%s673 + $0x6c] sm:$0xff]
        %v772 = vld [vmem:[%s673 + $0x74] sm:$0xf]
        %v773 = vld [vmem:[%s673 + $0x78] sm:$0xff]
        %v774 = vld [vmem:[%s673 + $0x80] sm:$0xf]
        %v775 = vld [vmem:[%s673 + $0x84] sm:$0xff]
        %v776 = vld [vmem:[%s673 + $0x8c] sm:$0xf]
        %v777 = vld [vmem:[%s673 + $0x90] sm:$0xff]
        %v778 = vld [vmem:[%s673 + $0x98] sm:$0xf]
        %v779 = vld [vmem:[%s673 + $0x9c] sm:$0xff]
        %v780 = vld [vmem:[%s673 + $0xa4] sm:$0xf]
        %v781 = vld [vmem:[%s673 + $0xa8] sm:$0xff]
        %v782 = vld [vmem:[%s673 + $0xb0] sm:$0xf]
        %v783 = vld [vmem:[%s673 + $0xb4] sm:$0xff]
        %v784 = vld [vmem:[%s673 + $0xbc] sm:$0xf]
        %v785 = vld [vmem:[%s673 + $0xc0] sm:$0xff]
        %v786 = vld [vmem:[%s673 + $0xc8] sm:$0xf]
        %v787 = vld [vmem:[%s673 + $0xcc] sm:$0xff]
        %v788 = vld [vmem:[%s673 + $0xd4] sm:$0xf]
        %v789 = vld [vmem:[%s673 + $0xd8] sm:$0xff]
        %v790 = vld [vmem:[%s673 + $0xe0] sm:$0xf]
        %v791 = vld [vmem:[%s673 + $0xe4] sm:$0xff]
        %v792 = vld [vmem:[%s673 + $0xec] sm:$0xf]
        %v793 = vld [vmem:[%s673 + $0xf0] sm:$0xff]
        %v794 = vld [vmem:[%s673 + $0xf8] sm:$0xf]
        %v795 = vld [vmem:[%s673 + $0xfc] sm:$0xff]
        %v796 = vld [vmem:[%s673 + $0x104] sm:$0xf]
        %v797 = vld [vmem:[%s673 + $0x108] sm:$0xff]
        %v798 = vld [vmem:[%s673 + $0x110] sm:$0xf]
        %v799 = vld [vmem:[%s673 + $0x114] sm:$0xff]
        %v800 = vld [vmem:[%s673 + $0x11c] sm:$0xf]
        %v801 = vld [vmem:[%s673 + $0x120] sm:$0xff]
        %v802 = vld [vmem:[%s673 + $0x128] sm:$0xf]
        %v803 = vld [vmem:[%s673 + $0x12c] sm:$0xff]
        %v804 = vld [vmem:[%s673 + $0x134] sm:$0xf]
        %v805 = vld [vmem:[%s673 + $0x138] sm:$0xff]
        %v806 = vld [vmem:[%s673 + $0x140] sm:$0xf]
        %v807 = vld [vmem:[%s673 + $0x144] sm:$0xff]
        %v808 = vld [vmem:[%s673 + $0x14c] sm:$0xf]
        %v809 = vld [vmem:[%s673 + $0x150] sm:$0xff]
        %v810 = vld [vmem:[%s673 + $0x158] sm:$0xf]
        %v811 = vld [vmem:[%s673 + $0x15c] sm:$0xff]
        %v812 = vld [vmem:[%s673 + $0x164] sm:$0xf]
        %v813 = vld [vmem:[%s673 + $0x168] sm:$0xff]
        %v814 = vld [vmem:[%s673 + $0x170] sm:$0xf]
        %v815 = vld [vmem:[%s673 + $0x174] sm:$0xff]
        %v816 = vld [vmem:[%s673 + $0x17c] sm:$0xf]
        %v817 = vld [vmem:[%s673 + $0x180] sm:$0xff]
        %v818 = vld [vmem:[%s673 + $0x188] sm:$0xf]
        %v819 = vld [vmem:[%s673 + $0x18c] sm:$0xff]
        %v820 = vld [vmem:[%s673 + $0x194] sm:$0xf]
        %v821 = vld [vmem:[%s673 + $0x198] sm:$0xff]
        %v822 = vld [vmem:[%s673 + $0x1a0] sm:$0xf]
        %v823 = vld [vmem:[%s673 + $0x1a4] sm:$0xff]
        %v824 = vld [vmem:[%s673 + $0x1ac] sm:$0xf]
        %v825 = vld [vmem:[%s673 + $0x1b0] sm:$0xff]
        %v826 = vld [vmem:[%s673 + $0x1b8] sm:$0xf]
        %v827 = vld [vmem:[%s673 + $0x1bc] sm:$0xff]
        %v828 = vld [vmem:[%s673 + $0x1c4] sm:$0xf]
        %v829 = vld [vmem:[%s673 + $0x1c8] sm:$0xff]
        %v830 = vld [vmem:[%s673 + $0x1d0] sm:$0xf]
        %v831 = vld [vmem:[%s673 + $0x1d4] sm:$0xff]
        %v832 = vld [vmem:[%s673 + $0x1dc] sm:$0xf]
        %v833 = vld [vmem:[%s673 + $0x1e0] sm:$0xff]
        %v834 = vld [vmem:[%s673 + $0x1e8] sm:$0xf]
        %v835 = vld [vmem:[%s673 + $0x1ec] sm:$0xff]
        %v836 = vld [vmem:[%s673 + $0x1f4] sm:$0xf]
        %v837 = vld [vmem:[%s673 + $0x1f8] sm:$0xff]
        %v838 = vld [vmem:[%s673 + $0x200] sm:$0xf]
        %v839 = vld [vmem:[%s673 + $0x204] sm:$0xff]
        %v840 = vld [vmem:[%s673 + $0x20c] sm:$0xf]
        %v841 = vld [vmem:[%s673 + $0x210] sm:$0xff]
        %v842 = vld [vmem:[%s673 + $0x218] sm:$0xf]
        %v843 = vld [vmem:[%s673 + $0x21c] sm:$0xff]
        %v844 = vld [vmem:[%s673 + $0x224] sm:$0xf]
        %v845 = vld [vmem:[%s673 + $0x228] sm:$0xff]
        %v846 = vld [vmem:[%s673 + $0x230] sm:$0xf]
        %v847 = vld [vmem:[%s673 + $0x234] sm:$0xff]
        %v848 = vld [vmem:[%s673 + $0x23c] sm:$0xf]
        %v849 = vld [vmem:[%s673 + $0x240] sm:$0xff]
        %v850 = vld [vmem:[%s673 + $0x248] sm:$0xf]
        %v851 = vld [vmem:[%s673 + $0x24c] sm:$0xff]
        %v852 = vld [vmem:[%s673 + $0x254] sm:$0xf]
        %v853 = vld [vmem:[%s673 + $0x258] sm:$0xff]
        %v854 = vld [vmem:[%s673 + $0x260] sm:$0xf]
        %v855 = vld [vmem:[%s673 + $0x264] sm:$0xff]
        %v856 = vld [vmem:[%s673 + $0x26c] sm:$0xf]
        %v857 = vld [vmem:[%s673 + $0x270] sm:$0xff]
        %v858 = vld [vmem:[%s673 + $0x278] sm:$0xf]
        %v859 = vld [vmem:[%s673 + $0x27c] sm:$0xff]
        %v860 = vld [vmem:[%s673 + $0x284] sm:$0xf]
        %v861 = vld [vmem:[%s673 + $0x288] sm:$0xff]
        %v862 = vld [vmem:[%s673 + $0x290] sm:$0xf]
        %v863 = vld [vmem:[%s673 + $0x294] sm:$0xff]
        %v864 = vld [vmem:[%s673 + $0x29c] sm:$0xf]
        %v865 = vld [vmem:[%s673 + $0x2a0] sm:$0xff]
        %v866 = vld [vmem:[%s673 + $0x2a8] sm:$0xf]
        %v867 = vld [vmem:[%s673 + $0x2ac] sm:$0xff]
        %v868 = vld [vmem:[%s673 + $0x2b4] sm:$0xf]
        %v869 = vld [vmem:[%s673 + $0x2b8] sm:$0xff]
        %v870 = vld [vmem:[%s673 + $0x2c0] sm:$0xf]
        %v871 = vld [vmem:[%s673 + $0x2c4] sm:$0xff]
        %v872 = vld [vmem:[%s673 + $0x2cc] sm:$0xf]
        %v873 = vld [vmem:[%s673 + $0x2d0] sm:$0xff]
        %v874 = vld [vmem:[%s673 + $0x2d8] sm:$0xf]
        %v875 = vld [vmem:[%s673 + $0x2dc] sm:$0xff]
        %v876 = vld [vmem:[%s673 + $0x2e4] sm:$0xf]
        %v877 = vld [vmem:[%s673 + $0x2e8] sm:$0xff]
        %v878 = vld [vmem:[%s673 + $0x2f0] sm:$0xf]
        %v879 = vld [vmem:[%s673 + $0x2f4] sm:$0xff]
        %v880 = vld [vmem:[%s673 + $0x2fc] sm:$0xf]
        %v881 = vld [vmem:[%s673 + $0x300] sm:$0xff]
        %v882 = vld [vmem:[%s673 + $0x308] sm:$0xf]
        %v883 = vld [vmem:[%s673 + $0x30c] sm:$0xff]
        %v884 = vld [vmem:[%s673 + $0x314] sm:$0xf]
        %v885 = vld [vmem:[%s673 + $0x318] sm:$0xff]
        %v886 = vld [vmem:[%s673 + $0x320] sm:$0xf]
        %v887 = vld [vmem:[%s673 + $0x324] sm:$0xff]
        %v888 = vld [vmem:[%s673 + $0x32c] sm:$0xf]
        %v889 = vld [vmem:[%s673 + $0x330] sm:$0xff]
        %v890 = vld [vmem:[%s673 + $0x338] sm:$0xf]
        %v891 = vld [vmem:[%s673 + $0x33c] sm:$0xff]
        %v892 = vld [vmem:[%s673 + $0x344] sm:$0xf]
        %v893 = vld [vmem:[%s673 + $0x348] sm:$0xff]
        %v894 = vld [vmem:[%s673 + $0x350] sm:$0xf]
        %v895 = vld [vmem:[%s673 + $0x354] sm:$0xff]
        %v896 = vld [vmem:[%s673 + $0x35c] sm:$0xf]
        %v897 = vld [vmem:[%s673 + $0x360] sm:$0xff]
        %v898 = vld [vmem:[%s673 + $0x368] sm:$0xf]
        %v899 = vld [vmem:[%s673 + $0x36c] sm:$0xff]
        %v900 = vld [vmem:[%s673 + $0x374] sm:$0xf]
        %v901 = vld [vmem:[%s673 + $0x378] sm:$0xff]
        %v902 = vld [vmem:[%s673 + $0x380] sm:$0xf]
        %v903 = vld [vmem:[%s673 + $0x384] sm:$0xff]
        %v904 = vld [vmem:[%s673 + $0x38c] sm:$0xf]
        %v905 = vld [vmem:[%s673 + $0x390] sm:$0xff]
        %v906 = vld [vmem:[%s673 + $0x398] sm:$0xf]
        %v907 = vld [vmem:[%s673 + $0x39c] sm:$0xff]
        %v908 = vld [vmem:[%s673 + $0x3a4] sm:$0xf]
        %v909 = vld [vmem:[%s673 + $0x3a8] sm:$0xff]
        %v910 = vld [vmem:[%s673 + $0x3b0] sm:$0xf]
        %v911 = vld [vmem:[%s673 + $0x3b4] sm:$0xff]
        %v912 = vld [vmem:[%s673 + $0x3bc] sm:$0xf]
        %v913 = vld [vmem:[%s673 + $0x3c0] sm:$0xff]
        %v914 = vld [vmem:[%s673 + $0x3c8] sm:$0xf]
        %v915 = vld [vmem:[%s673 + $0x3cc] sm:$0xff]
        %v916 = vld [vmem:[%s673 + $0x3d4] sm:$0xf]
        %v917 = vld [vmem:[%s673 + $0x3d8] sm:$0xff]
        %v918 = vld [vmem:[%s673 + $0x3e0] sm:$0xf]
        %v919 = vld [vmem:[%s673 + $0x3e4] sm:$0xff]
        %v920 = vld [vmem:[%s673 + $0x3ec] sm:$0xf]
        %v921 = vld [vmem:[%s673 + $0x3f0] sm:$0xff]
        %v922 = vld [vmem:[%s673 + $0x3f8] sm:$0xf]
        %v923 = vld [vmem:[%s673 + $0x3fc] sm:$0xff]
        %v924 = vld [vmem:[%s673 + $0x404] sm:$0xf]
        %v925 = vld [vmem:[%s673 + $0x408] sm:$0xff]
        %v926 = vld [vmem:[%s673 + $0x410] sm:$0xf]
        %v927 = vld [vmem:[%s673 + $0x414] sm:$0xff]
        %v928 = vld [vmem:[%s673 + $0x41c] sm:$0xf]
        %v929 = vld [vmem:[%s673 + $0x420] sm:$0xff]
        %v930 = vld [vmem:[%s673 + $0x428] sm:$0xf]
        %v931 = vld [vmem:[%s673 + $0x42c] sm:$0xff]
        %v932 = vld [vmem:[%s673 + $0x434] sm:$0xf]
        %v933 = vld [vmem:[%s673 + $0x438] sm:$0xff]
        %v934 = vld [vmem:[%s673 + $0x440] sm:$0xf]
        %v935 = vld [vmem:[%s673 + $0x444] sm:$0xff]
        %v936 = vld [vmem:[%s673 + $0x44c] sm:$0xf]
        %v937 = vld [vmem:[%s673 + $0x450] sm:$0xff]
        %v938 = vld [vmem:[%s673 + $0x458] sm:$0xf]
        %v939 = vld [vmem:[%s673 + $0x45c] sm:$0xff]
        %v940 = vld [vmem:[%s673 + $0x464] sm:$0xf]
        %v941 = vld [vmem:[%s673 + $0x468] sm:$0xff]
        %v942 = vld [vmem:[%s673 + $0x470] sm:$0xf]
        %v943 = vld [vmem:[%s673 + $0x474] sm:$0xff]
        %v944 = vld [vmem:[%s673 + $0x47c] sm:$0xf]
        %v945 = vld [vmem:[%s673 + $0x480] sm:$0xff]
        %v946 = vld [vmem:[%s673 + $0x488] sm:$0xf]
        %v947 = vld [vmem:[%s673 + $0x48c] sm:$0xff]
        %v948 = vld [vmem:[%s673 + $0x494] sm:$0xf]
        %v949 = vld [vmem:[%s673 + $0x498] sm:$0xff]
        %v950 = vld [vmem:[%s673 + $0x4a0] sm:$0xf]
        %v951 = vld [vmem:[%s673 + $0x4a4] sm:$0xff]
        %v952 = vld [vmem:[%s673 + $0x4ac] sm:$0xf]
        %v953 = vld [vmem:[%s673 + $0x4b0] sm:$0xff]
        %v954 = vld [vmem:[%s673 + $0x4b8] sm:$0xf]
        %v955 = vld [vmem:[%s673 + $0x4bc] sm:$0xff]
        %v956 = vld [vmem:[%s673 + $0x4c4] sm:$0xf]
        %v957 = vld [vmem:[%s673 + $0x4c8] sm:$0xff]
        %v958 = vld [vmem:[%s673 + $0x4d0] sm:$0xf]
        %v959 = vld [vmem:[%s673 + $0x4d4] sm:$0xff]
        %v960 = vld [vmem:[%s673 + $0x4dc] sm:$0xf]
        %v961 = vld [vmem:[%s673 + $0x4e0] sm:$0xff]
        %v962 = vld [vmem:[%s673 + $0x4e8] sm:$0xf]
        %v963 = vld [vmem:[%s673 + $0x4ec] sm:$0xff]
        %v964 = vld [vmem:[%s673 + $0x4f4] sm:$0xf]
        %v965 = vld [vmem:[%s673 + $0x4f8] sm:$0xff]
        %v966 = vld [vmem:[%s673 + $0x500] sm:$0xf]
        %v967 = vld [vmem:[%s673 + $0x504] sm:$0xff]
        %v968 = vld [vmem:[%s673 + $0x50c] sm:$0xf]
        %v969 = vld [vmem:[%s673 + $0x510] sm:$0xff]
        %v970 = vld [vmem:[%s673 + $0x518] sm:$0xf]
        %v971 = vld [vmem:[%s673 + $0x51c] sm:$0xff]
        %v972 = vld [vmem:[%s673 + $0x524] sm:$0xf]
        %v973 = vld [vmem:[%s673 + $0x528] sm:$0xff]
        %v974 = vld [vmem:[%s673 + $0x530] sm:$0xf]
        %v975 = vld [vmem:[%s673 + $0x534] sm:$0xff]
        %v976 = vld [vmem:[%s673 + $0x53c] sm:$0xf]
        %v981 = vunpack.c.l.b16 %v749
        %v982 = vunpack.c.h.b16 %v749
        %v983 = vunpack.c.l.b16 %v750
        %v984 = vunpack.c.h.b16 %v750
        %v985 = vunpack.c.l.b16 %v751
        %v986 = vunpack.c.h.b16 %v751
        %v987 = vunpack.c.l.b16 %v752
        %v988 = vpack.c.b16 %v981, %v981
        %v989 = vpack.c.b16 %v982, %v982
        %v990 = vpack.c.b16 %v983, %v983
        %v991 = vpack.c.b16 %v984, %v984
        %v992 = vpack.c.b16 %v985, %v985
        %v993 = vpack.c.b16 %v986, %v986
        %v994 = vpack.c.b16 %v987, %v987
        %v1226 = vunpack.c.l.b16 %v753
        %v1227 = vunpack.c.h.b16 %v753
        %v1228 = vunpack.c.l.b16 %v754
        %v1229 = vunpack.c.l.b16 %v755
        %v1230 = vunpack.c.h.b16 %v755
        %v1231 = vunpack.c.l.b16 %v756
        %v1232 = vunpack.c.l.b16 %v757
        %v1233 = vunpack.c.h.b16 %v757
        %v1234 = vunpack.c.l.b16 %v758
        %v1235 = vunpack.c.l.b16 %v759
        %v1236 = vunpack.c.h.b16 %v759
        %v1237 = vunpack.c.l.b16 %v760
        %v1238 = vunpack.c.l.b16 %v761
        %v1239 = vunpack.c.h.b16 %v761
        %v1240 = vunpack.c.l.b16 %v762
        %v1241 = vunpack.c.l.b16 %v763
        %v1242 = vunpack.c.h.b16 %v763
        %v1243 = vunpack.c.l.b16 %v764
        %v1244 = vunpack.c.l.b16 %v765
        %v1245 = vunpack.c.h.b16 %v765
        %v1246 = vunpack.c.l.b16 %v766
        %v1247 = vunpack.c.l.b16 %v767
        %v1248 = vunpack.c.h.b16 %v767
        %v1249 = vunpack.c.l.b16 %v768
        %v1250 = vunpack.c.l.b16 %v769
        %v1251 = vunpack.c.h.b16 %v769
        %v1252 = vunpack.c.l.b16 %v770
        %v1253 = vunpack.c.l.b16 %v771
        %v1254 = vunpack.c.h.b16 %v771
        %v1255 = vunpack.c.l.b16 %v772
        %v1256 = vunpack.c.l.b16 %v773
        %v1257 = vunpack.c.h.b16 %v773
        %v1258 = vunpack.c.l.b16 %v774
        %v1259 = vunpack.c.l.b16 %v775
        %v1260 = vunpack.c.h.b16 %v775
        %v1261 = vunpack.c.l.b16 %v776
        %v1262 = vunpack.c.l.b16 %v777
        %v1263 = vunpack.c.h.b16 %v777
        %v1264 = vunpack.c.l.b16 %v778
        %v1265 = vunpack.c.l.b16 %v779
        %v1266 = vunpack.c.h.b16 %v779
        %v1267 = vunpack.c.l.b16 %v780
        %v1268 = vunpack.c.l.b16 %v781
        %v1269 = vunpack.c.h.b16 %v781
        %v1270 = vunpack.c.l.b16 %v782
        %v1271 = vunpack.c.l.b16 %v783
        %v1272 = vunpack.c.h.b16 %v783
        %v1273 = vunpack.c.l.b16 %v784
        %v1274 = vunpack.c.l.b16 %v785
        %v1275 = vunpack.c.h.b16 %v785
        %v1276 = vunpack.c.l.b16 %v786
        %v1277 = vunpack.c.l.b16 %v787
        %v1278 = vunpack.c.h.b16 %v787
        %v1279 = vunpack.c.l.b16 %v788
        %v1280 = vunpack.c.l.b16 %v789
        %v1281 = vunpack.c.h.b16 %v789
        %v1282 = vunpack.c.l.b16 %v790
        %v1283 = vunpack.c.l.b16 %v791
        %v1284 = vunpack.c.h.b16 %v791
        %v1285 = vunpack.c.l.b16 %v792
        %v1286 = vunpack.c.l.b16 %v793
        %v1287 = vunpack.c.h.b16 %v793
        %v1288 = vunpack.c.l.b16 %v794
        %v1289 = vunpack.c.l.b16 %v795
        %v1290 = vunpack.c.h.b16 %v795
        %v1291 = vunpack.c.l.b16 %v796
        %v1292 = vunpack.c.l.b16 %v797
        %v1293 = vunpack.c.h.b16 %v797
        %v1294 = vunpack.c.l.b16 %v798
        %v1295 = vunpack.c.l.b16 %v799
        %v1296 = vunpack.c.h.b16 %v799
        %v1297 = vunpack.c.l.b16 %v800
        %v1298 = vunpack.c.l.b16 %v801
        %v1299 = vunpack.c.h.b16 %v801
        %v1300 = vunpack.c.l.b16 %v802
        %v1301 = vunpack.c.l.b16 %v803
        %v1302 = vunpack.c.h.b16 %v803
        %v1303 = vunpack.c.l.b16 %v804
        %v1304 = vunpack.c.l.b16 %v805
        %v1305 = vunpack.c.h.b16 %v805
        %v1306 = vunpack.c.l.b16 %v806
        %v1307 = vunpack.c.l.b16 %v807
        %v1308 = vunpack.c.h.b16 %v807
        %v1309 = vunpack.c.l.b16 %v808
        %v1310 = vunpack.c.l.b16 %v809
        %v1311 = vunpack.c.h.b16 %v809
        %v1312 = vunpack.c.l.b16 %v810
        %v1313 = vunpack.c.l.b16 %v811
        %v1314 = vunpack.c.h.b16 %v811
        %v1315 = vunpack.c.l.b16 %v812
        %v1316 = vunpack.c.l.b16 %v813
        %v1317 = vunpack.c.h.b16 %v813
        %v1318 = vunpack.c.l.b16 %v814
        %v1319 = vunpack.c.l.b16 %v815
        %v1320 = vunpack.c.h.b16 %v815
        %v1321 = vunpack.c.l.b16 %v816
        %v1322 = vunpack.c.l.b16 %v817
        %v1323 = vunpack.c.h.b16 %v817
        %v1324 = vunpack.c.l.b16 %v818
        %v1325 = vunpack.c.l.b16 %v819
        %v1326 = vunpack.c.h.b16 %v819
        %v1327 = vunpack.c.l.b16 %v820
        %v1328 = vunpack.c.l.b16 %v821
        %v1329 = vunpack.c.h.b16 %v821
        %v1330 = vunpack.c.l.b16 %v822
        %v1331 = vunpack.c.l.b16 %v823
        %v1332 = vunpack.c.h.b16 %v823
        %v1333 = vunpack.c.l.b16 %v824
        %v1334 = vunpack.c.l.b16 %v825
        %v1335 = vunpack.c.h.b16 %v825
        %v1336 = vunpack.c.l.b16 %v826
        %v1337 = vunpack.c.l.b16 %v827
        %v1338 = vunpack.c.h.b16 %v827
        %v1339 = vunpack.c.l.b16 %v828
        %v1340 = vunpack.c.l.b16 %v829
        %v1341 = vunpack.c.h.b16 %v829
        %v1342 = vunpack.c.l.b16 %v830
        %v1343 = vunpack.c.l.b16 %v831
        %v1344 = vunpack.c.h.b16 %v831
        %v1345 = vunpack.c.l.b16 %v832
        %v1346 = vunpack.c.l.b16 %v833
        %v1347 = vunpack.c.h.b16 %v833
        %v1348 = vunpack.c.l.b16 %v834
        %v1349 = vunpack.c.l.b16 %v835
        %v1350 = vunpack.c.h.b16 %v835
        %v1351 = vunpack.c.l.b16 %v836
        %v1352 = vunpack.c.l.b16 %v837
        %v1353 = vunpack.c.h.b16 %v837
        %v1354 = vunpack.c.l.b16 %v838
        %v1355 = vunpack.c.l.b16 %v839
        %v1356 = vunpack.c.h.b16 %v839
        %v1357 = vunpack.c.l.b16 %v840
        %v1358 = vunpack.c.l.b16 %v841
        %v1359 = vunpack.c.h.b16 %v841
        %v1360 = vunpack.c.l.b16 %v842
        %v1361 = vunpack.c.l.b16 %v843
        %v1362 = vunpack.c.h.b16 %v843
        %v1363 = vunpack.c.l.b16 %v844
        %v1364 = vunpack.c.l.b16 %v845
        %v1365 = vunpack.c.h.b16 %v845
        %v1366 = vunpack.c.l.b16 %v846
        %v1367 = vunpack.c.l.b16 %v847
        %v1368 = vunpack.c.h.b16 %v847
        %v1369 = vunpack.c.l.b16 %v848
        %v1370 = vunpack.c.l.b16 %v849
        %v1371 = vunpack.c.h.b16 %v849
        %v1372 = vunpack.c.l.b16 %v850
        %v1373 = vunpack.c.l.b16 %v851
        %v1374 = vunpack.c.h.b16 %v851
        %v1375 = vunpack.c.l.b16 %v852
        %v1376 = vunpack.c.l.b16 %v853
        %v1377 = vunpack.c.h.b16 %v853
        %v1378 = vunpack.c.l.b16 %v854
        %v1379 = vunpack.c.l.b16 %v855
        %v1380 = vunpack.c.h.b16 %v855
        %v1381 = vunpack.c.l.b16 %v856
        %v1382 = vunpack.c.l.b16 %v857
        %v1383 = vunpack.c.h.b16 %v857
        %v1384 = vunpack.c.l.b16 %v858
        %v1385 = vunpack.c.l.b16 %v859
        %v1386 = vunpack.c.h.b16 %v859
        %v1387 = vunpack.c.l.b16 %v860
        %v1388 = vunpack.c.l.b16 %v861
        %v1389 = vunpack.c.h.b16 %v861
        %v1390 = vunpack.c.l.b16 %v862
        %v1391 = vunpack.c.l.b16 %v863
        %v1392 = vunpack.c.h.b16 %v863
        %v1393 = vunpack.c.l.b16 %v864
        %v1394 = vunpack.c.l.b16 %v865
        %v1395 = vunpack.c.h.b16 %v865
        %v1396 = vunpack.c.l.b16 %v866
        %v1397 = vunpack.c.l.b16 %v867
        %v1398 = vunpack.c.h.b16 %v867
        %v1399 = vunpack.c.l.b16 %v868
        %v1400 = vunpack.c.l.b16 %v869
        %v1401 = vunpack.c.h.b16 %v869
        %v1402 = vunpack.c.l.b16 %v870
        %v1403 = vunpack.c.l.b16 %v871
        %v1404 = vunpack.c.h.b16 %v871
        %v1405 = vunpack.c.l.b16 %v872
        %v1406 = vunpack.c.l.b16 %v873
        %v1407 = vunpack.c.h.b16 %v873
        %v1408 = vunpack.c.l.b16 %v874
        %v1409 = vunpack.c.l.b16 %v875
        %v1410 = vunpack.c.h.b16 %v875
        %v1411 = vunpack.c.l.b16 %v876
        %v1412 = vunpack.c.l.b16 %v877
        %v1413 = vunpack.c.h.b16 %v877
        %v1414 = vunpack.c.l.b16 %v878
        %v1415 = vunpack.c.l.b16 %v879
        %v1416 = vunpack.c.h.b16 %v879
        %v1417 = vunpack.c.l.b16 %v880
        %v1418 = vunpack.c.l.b16 %v881
        %v1419 = vunpack.c.h.b16 %v881
        %v1420 = vunpack.c.l.b16 %v882
        %v1421 = vunpack.c.l.b16 %v883
        %v1422 = vunpack.c.h.b16 %v883
        %v1423 = vunpack.c.l.b16 %v884
        %v1424 = vunpack.c.l.b16 %v885
        %v1425 = vunpack.c.h.b16 %v885
        %v1426 = vunpack.c.l.b16 %v886
        %v1427 = vunpack.c.l.b16 %v887
        %v1428 = vunpack.c.h.b16 %v887
        %v1429 = vunpack.c.l.b16 %v888
        %v1430 = vunpack.c.l.b16 %v889
        %v1431 = vunpack.c.h.b16 %v889
        %v1432 = vunpack.c.l.b16 %v890
        %v1433 = vunpack.c.l.b16 %v891
        %v1434 = vunpack.c.h.b16 %v891
        %v1435 = vunpack.c.l.b16 %v892
        %v1436 = vunpack.c.l.b16 %v893
        %v1437 = vunpack.c.h.b16 %v893
        %v1438 = vunpack.c.l.b16 %v894
        %v1439 = vunpack.c.l.b16 %v895
        %v1440 = vunpack.c.h.b16 %v895
        %v1441 = vunpack.c.l.b16 %v896
        %v1442 = vunpack.c.l.b16 %v897
        %v1443 = vunpack.c.h.b16 %v897
        %v1444 = vunpack.c.l.b16 %v898
        %v1445 = vunpack.c.l.b16 %v899
        %v1446 = vunpack.c.h.b16 %v899
        %v1447 = vunpack.c.l.b16 %v900
        %v1448 = vunpack.c.l.b16 %v901
        %v1449 = vunpack.c.h.b16 %v901
        %v1450 = vunpack.c.l.b16 %v902
        %v1451 = vunpack.c.l.b16 %v903
        %v1452 = vunpack.c.h.b16 %v903
        %v1453 = vunpack.c.l.b16 %v904
        %v1454 = vunpack.c.l.b16 %v905
        %v1455 = vunpack.c.h.b16 %v905
        %v1456 = vunpack.c.l.b16 %v906
        %v1457 = vunpack.c.l.b16 %v907
        %v1458 = vunpack.c.h.b16 %v907
        %v1459 = vunpack.c.l.b16 %v908
        %v1460 = vunpack.c.l.b16 %v909
        %v1461 = vunpack.c.h.b16 %v909
        %v1462 = vunpack.c.l.b16 %v910
        %v1463 = vunpack.c.l.b16 %v911
        %v1464 = vunpack.c.h.b16 %v911
        %v1465 = vunpack.c.l.b16 %v912
        %v1466 = vunpack.c.l.b16 %v913
        %v1467 = vunpack.c.h.b16 %v913
        %v1468 = vunpack.c.l.b16 %v914
        %v1469 = vunpack.c.l.b16 %v915
        %v1470 = vunpack.c.h.b16 %v915
        %v1471 = vunpack.c.l.b16 %v916
        %v1472 = vunpack.c.l.b16 %v917
        %v1473 = vunpack.c.h.b16 %v917
        %v1474 = vunpack.c.l.b16 %v918
        %v1475 = vunpack.c.l.b16 %v919
        %v1476 = vunpack.c.h.b16 %v919
        %v1477 = vunpack.c.l.b16 %v920
        %v1478 = vunpack.c.l.b16 %v921
        %v1479 = vunpack.c.h.b16 %v921
        %v1480 = vunpack.c.l.b16 %v922
        %v1481 = vunpack.c.l.b16 %v923
        %v1482 = vunpack.c.h.b16 %v923
        %v1483 = vunpack.c.l.b16 %v924
        %v1484 = vunpack.c.l.b16 %v925
        %v1485 = vunpack.c.h.b16 %v925
        %v1486 = vunpack.c.l.b16 %v926
        %v1487 = vunpack.c.l.b16 %v927
        %v1488 = vunpack.c.h.b16 %v927
        %v1489 = vunpack.c.l.b16 %v928
        %v1490 = vunpack.c.l.b16 %v929
        %v1491 = vunpack.c.h.b16 %v929
        %v1492 = vunpack.c.l.b16 %v930
        %v1493 = vunpack.c.l.b16 %v931
        %v1494 = vunpack.c.h.b16 %v931
        %v1495 = vunpack.c.l.b16 %v932
        %v1496 = vunpack.c.l.b16 %v933
        %v1497 = vunpack.c.h.b16 %v933
        %v1498 = vunpack.c.l.b16 %v934
        %v1499 = vunpack.c.l.b16 %v935
        %v1500 = vunpack.c.h.b16 %v935
        %v1501 = vunpack.c.l.b16 %v936
        %v1502 = vunpack.c.l.b16 %v937
        %v1503 = vunpack.c.h.b16 %v937
        %v1504 = vunpack.c.l.b16 %v938
        %v1505 = vunpack.c.l.b16 %v939
        %v1506 = vunpack.c.h.b16 %v939
        %v1507 = vunpack.c.l.b16 %v940
        %v1508 = vunpack.c.l.b16 %v941
        %v1509 = vunpack.c.h.b16 %v941
        %v1510 = vunpack.c.l.b16 %v942
        %v1511 = vunpack.c.l.b16 %v943
        %v1512 = vunpack.c.h.b16 %v943
        %v1513 = vunpack.c.l.b16 %v944
        %v1514 = vunpack.c.l.b16 %v945
        %v1515 = vunpack.c.h.b16 %v945
        %v1516 = vunpack.c.l.b16 %v946
        %v1517 = vunpack.c.l.b16 %v947
        %v1518 = vunpack.c.h.b16 %v947
        %v1519 = vunpack.c.l.b16 %v948
        %v1520 = vunpack.c.l.b16 %v949
        %v1521 = vunpack.c.h.b16 %v949
        %v1522 = vunpack.c.l.b16 %v950
        %v1523 = vunpack.c.l.b16 %v951
        %v1524 = vunpack.c.h.b16 %v951
        %v1525 = vunpack.c.l.b16 %v952
        %v1526 = vunpack.c.l.b16 %v953
        %v1527 = vunpack.c.h.b16 %v953
        %v1528 = vunpack.c.l.b16 %v954
        %v1529 = vunpack.c.l.b16 %v955
        %v1530 = vunpack.c.h.b16 %v955
        %v1531 = vunpack.c.l.b16 %v956
        %v1532 = vunpack.c.l.b16 %v957
        %v1533 = vunpack.c.h.b16 %v957
        %v1534 = vunpack.c.l.b16 %v958
        %v1535 = vunpack.c.l.b16 %v959
        %v1536 = vunpack.c.h.b16 %v959
        %v1537 = vunpack.c.l.b16 %v960
        %v1538 = vunpack.c.l.b16 %v961
        %v1539 = vunpack.c.h.b16 %v961
        %v1540 = vunpack.c.l.b16 %v962
        %v1541 = vunpack.c.l.b16 %v963
        %v1542 = vunpack.c.h.b16 %v963
        %v1543 = vunpack.c.l.b16 %v964
        %v1544 = vunpack.c.l.b16 %v965
        %v1545 = vunpack.c.h.b16 %v965
        %v1546 = vunpack.c.l.b16 %v966
        %v1547 = vunpack.c.l.b16 %v967
        %v1548 = vunpack.c.h.b16 %v967
        %v1549 = vunpack.c.l.b16 %v968
        %v1550 = vunpack.c.l.b16 %v969
        %v1551 = vunpack.c.h.b16 %v969
        %v1552 = vunpack.c.l.b16 %v970
        %v1553 = vunpack.c.l.b16 %v971
        %v1554 = vunpack.c.h.b16 %v971
        %v1555 = vunpack.c.l.b16 %v972
        %v1556 = vunpack.c.l.b16 %v973
        %v1557 = vunpack.c.h.b16 %v973
        %v1558 = vunpack.c.l.b16 %v974
        %v1559 = vunpack.c.l.b16 %v975
        %v1560 = vunpack.c.h.b16 %v975
        %v1561 = vunpack.c.l.b16 %v976
        %v1562 = vpack.c.b16 %v1229, %v1226
        %v1563 = vpack.c.b16 %v1230, %v1227
        %v1564 = vpack.c.b16 %v1231, %v1228
        %v1565 = vpack.c.b16 %v1235, %v1232
        %v1566 = vpack.c.b16 %v1236, %v1233
        %v1567 = vpack.c.b16 %v1237, %v1234
        %v1568 = vpack.c.b16 %v1241, %v1238
        %v1569 = vpack.c.b16 %v1242, %v1239
        %v1570 = vpack.c.b16 %v1243, %v1240
        %v1571 = vpack.c.b16 %v1247, %v1244
        %v1572 = vpack.c.b16 %v1248, %v1245
        %v1573 = vpack.c.b16 %v1249, %v1246
        %v1574 = vpack.c.b16 %v1253, %v1250
        %v1575 = vpack.c.b16 %v1254, %v1251
        %v1576 = vpack.c.b16 %v1255, %v1252
        %v1577 = vpack.c.b16 %v1259, %v1256
        %v1578 = vpack.c.b16 %v1260, %v1257
        %v1579 = vpack.c.b16 %v1261, %v1258
        %v1580 = vpack.c.b16 %v1265, %v1262
        %v1581 = vpack.c.b16 %v1266, %v1263
        %v1582 = vpack.c.b16 %v1267, %v1264
        %v1583 = vpack.c.b16 %v1271, %v1268
        %v1584 = vpack.c.b16 %v1272, %v1269
        %v1585 = vpack.c.b16 %v1273, %v1270
        %v1586 = vpack.c.b16 %v1277, %v1274
        %v1587 = vpack.c.b16 %v1278, %v1275
        %v1588 = vpack.c.b16 %v1279, %v1276
        %v1589 = vpack.c.b16 %v1283, %v1280
        %v1590 = vpack.c.b16 %v1284, %v1281
        %v1591 = vpack.c.b16 %v1285, %v1282
        %v1592 = vpack.c.b16 %v1289, %v1286
        %v1593 = vpack.c.b16 %v1290, %v1287
        %v1594 = vpack.c.b16 %v1291, %v1288
        %v1595 = vpack.c.b16 %v1295, %v1292
        %v1596 = vpack.c.b16 %v1296, %v1293
        %v1597 = vpack.c.b16 %v1297, %v1294
        %v1598 = vpack.c.b16 %v1301, %v1298
        %v1599 = vpack.c.b16 %v1302, %v1299
        %v1600 = vpack.c.b16 %v1303, %v1300
        %v1601 = vpack.c.b16 %v1307, %v1304
        %v1602 = vpack.c.b16 %v1308, %v1305
        %v1603 = vpack.c.b16 %v1309, %v1306
        %v1604 = vpack.c.b16 %v1313, %v1310
        %v1605 = vpack.c.b16 %v1314, %v1311
        %v1606 = vpack.c.b16 %v1315, %v1312
        %v1607 = vpack.c.b16 %v1319, %v1316
        %v1608 = vpack.c.b16 %v1320, %v1317
        %v1609 = vpack.c.b16 %v1321, %v1318
        %v1610 = vpack.c.b16 %v1325, %v1322
        %v1611 = vpack.c.b16 %v1326, %v1323
        %v1612 = vpack.c.b16 %v1327, %v1324
        %v1613 = vpack.c.b16 %v1331, %v1328
        %v1614 = vpack.c.b16 %v1332, %v1329
        %v1615 = vpack.c.b16 %v1333, %v1330
        %v1616 = vpack.c.b16 %v1337, %v1334
        %v1617 = vpack.c.b16 %v1338, %v1335
        %v1618 = vpack.c.b16 %v1339, %v1336
        %v1619 = vpack.c.b16 %v1343, %v1340
        %v1620 = vpack.c.b16 %v1344, %v1341
        %v1621 = vpack.c.b16 %v1345, %v1342
        %v1622 = vpack.c.b16 %v1349, %v1346
        %v1623 = vpack.c.b16 %v1350, %v1347
        %v1624 = vpack.c.b16 %v1351, %v1348
        %v1625 = vpack.c.b16 %v1355, %v1352
        %v1626 = vpack.c.b16 %v1356, %v1353
        %v1627 = vpack.c.b16 %v1357, %v1354
        %v1628 = vpack.c.b16 %v1361, %v1358
        %v1629 = vpack.c.b16 %v1362, %v1359
        %v1630 = vpack.c.b16 %v1363, %v1360
        %v1631 = vpack.c.b16 %v1367, %v1364
        %v1632 = vpack.c.b16 %v1368, %v1365
        %v1633 = vpack.c.b16 %v1369, %v1366
        %v1634 = vpack.c.b16 %v1373, %v1370
        %v1635 = vpack.c.b16 %v1374, %v1371
        %v1636 = vpack.c.b16 %v1375, %v1372
        %v1637 = vpack.c.b16 %v1379, %v1376
        %v1638 = vpack.c.b16 %v1380, %v1377
        %v1639 = vpack.c.b16 %v1381, %v1378
        %v1640 = vpack.c.b16 %v1385, %v1382
        %v1641 = vpack.c.b16 %v1386, %v1383
        %v1642 = vpack.c.b16 %v1387, %v1384
        %v1643 = vpack.c.b16 %v1391, %v1388
        %v1644 = vpack.c.b16 %v1392, %v1389
        %v1645 = vpack.c.b16 %v1393, %v1390
        %v1646 = vpack.c.b16 %v1397, %v1394
        %v1647 = vpack.c.b16 %v1398, %v1395
        %v1648 = vpack.c.b16 %v1399, %v1396
        %v1649 = vpack.c.b16 %v1403, %v1400
        %v1650 = vpack.c.b16 %v1404, %v1401
        %v1651 = vpack.c.b16 %v1405, %v1402
        %v1652 = vpack.c.b16 %v1409, %v1406
        %v1653 = vpack.c.b16 %v1410, %v1407
        %v1654 = vpack.c.b16 %v1411, %v1408
        %v1655 = vpack.c.b16 %v1415, %v1412
        %v1656 = vpack.c.b16 %v1416, %v1413
        %v1657 = vpack.c.b16 %v1417, %v1414
        %v1658 = vpack.c.b16 %v1421, %v1418
        %v1659 = vpack.c.b16 %v1422, %v1419
        %v1660 = vpack.c.b16 %v1423, %v1420
        %v1661 = vpack.c.b16 %v1427, %v1424
        %v1662 = vpack.c.b16 %v1428, %v1425
        %v1663 = vpack.c.b16 %v1429, %v1426
        %v1664 = vpack.c.b16 %v1433, %v1430
        %v1665 = vpack.c.b16 %v1434, %v1431
        %v1666 = vpack.c.b16 %v1435, %v1432
        %v1667 = vpack.c.b16 %v1439, %v1436
        %v1668 = vpack.c.b16 %v1440, %v1437
        %v1669 = vpack.c.b16 %v1441, %v1438
        %v1670 = vpack.c.b16 %v1445, %v1442
        %v1671 = vpack.c.b16 %v1446, %v1443
        %v1672 = vpack.c.b16 %v1447, %v1444
        %v1673 = vpack.c.b16 %v1451, %v1448
        %v1674 = vpack.c.b16 %v1452, %v1449
        %v1675 = vpack.c.b16 %v1453, %v1450
        %v1676 = vpack.c.b16 %v1457, %v1454
        %v1677 = vpack.c.b16 %v1458, %v1455
        %v1678 = vpack.c.b16 %v1459, %v1456
        %v1679 = vpack.c.b16 %v1463, %v1460
        %v1680 = vpack.c.b16 %v1464, %v1461
        %v1681 = vpack.c.b16 %v1465, %v1462
        %v1682 = vpack.c.b16 %v1469, %v1466
        %v1683 = vpack.c.b16 %v1470, %v1467
        %v1684 = vpack.c.b16 %v1471, %v1468
        %v1685 = vpack.c.b16 %v1475, %v1472
        %v1686 = vpack.c.b16 %v1476, %v1473
        %v1687 = vpack.c.b16 %v1477, %v1474
        %v1688 = vpack.c.b16 %v1481, %v1478
        %v1689 = vpack.c.b16 %v1482, %v1479
        %v1690 = vpack.c.b16 %v1483, %v1480
        %v1691 = vpack.c.b16 %v1487, %v1484
        %v1692 = vpack.c.b16 %v1488, %v1485
        %v1693 = vpack.c.b16 %v1489, %v1486
        %v1694 = vpack.c.b16 %v1493, %v1490
        %v1695 = vpack.c.b16 %v1494, %v1491
        %v1696 = vpack.c.b16 %v1495, %v1492
        %v1697 = vpack.c.b16 %v1499, %v1496
        %v1698 = vpack.c.b16 %v1500, %v1497
        %v1699 = vpack.c.b16 %v1501, %v1498
        %v1700 = vpack.c.b16 %v1505, %v1502
        %v1701 = vpack.c.b16 %v1506, %v1503
        %v1702 = vpack.c.b16 %v1507, %v1504
        %v1703 = vpack.c.b16 %v1511, %v1508
        %v1704 = vpack.c.b16 %v1512, %v1509
        %v1705 = vpack.c.b16 %v1513, %v1510
        %v1706 = vpack.c.b16 %v1517, %v1514
        %v1707 = vpack.c.b16 %v1518, %v1515
        %v1708 = vpack.c.b16 %v1519, %v1516
        %v1709 = vpack.c.b16 %v1523, %v1520
        %v1710 = vpack.c.b16 %v1524, %v1521
        %v1711 = vpack.c.b16 %v1525, %v1522
        %v1712 = vpack.c.b16 %v1529, %v1526
        %v1713 = vpack.c.b16 %v1530, %v1527
        %v1714 = vpack.c.b16 %v1531, %v1528
        %v1715 = vpack.c.b16 %v1535, %v1532
        %v1716 = vpack.c.b16 %v1536, %v1533
        %v1717 = vpack.c.b16 %v1537, %v1534
        %v1718 = vpack.c.b16 %v1541, %v1538
        %v1719 = vpack.c.b16 %v1542, %v1539
        %v1720 = vpack.c.b16 %v1543, %v1540
        %v1721 = vpack.c.b16 %v1547, %v1544
        %v1722 = vpack.c.b16 %v1548, %v1545
        %v1723 = vpack.c.b16 %v1549, %v1546
        %v1724 = vpack.c.b16 %v1553, %v1550
        %v1725 = vpack.c.b16 %v1554, %v1551
        %v1726 = vpack.c.b16 %v1555, %v1552
        %v1727 = vpack.c.b16 %v1559, %v1556
        %v1728 = vpack.c.b16 %v1560, %v1557
        %v1729 = vpack.c.b16 %v1561, %v1558
        %1898 = vmatprep.subr.bf16.mxu0 %v1563
        %1899 = vmatpush1.bf16.msra.mxu0 %v1562
        %1900 = vmatprep.subr.bf16.mxu0 %v1566
        %1901 = vmatpush1.bf16.msra.mxu0 %v1565
        %1902 = vmatprep.subr.bf16.mxu0 %v1569
        %1903 = vmatpush1.bf16.msra.mxu0 %v1568
        %1904 = vmatprep.subr.bf16.mxu0 %v1572
        %1905 = vmatpush1.bf16.msra.mxu0 %v1571
        %1906 = vmatprep.subr.bf16.mxu0 %v1575
        %1907 = vmatpush1.bf16.msra.mxu0 %v1574
        %1908 = vmatprep.subr.bf16.mxu0 %v1578
        %1909 = vmatpush1.bf16.msra.mxu0 %v1577
        %1910 = vmatprep.subr.bf16.mxu0 %v1581
        %1911 = vmatpush1.bf16.msra.mxu0 %v1580
        %1912 = vmatprep.subr.bf16.mxu0 %v1584
        %1913 = vmatpush1.bf16.msra.mxu0 %v1583
        %1914 = vmatprep.subr.bf16.mxu0 %v1587
        %1915 = vmatpush1.bf16.msra.mxu0 %v1586
        %1916 = vmatprep.subr.bf16.mxu0 %v1590
        %1917 = vmatpush1.bf16.msra.mxu0 %v1589
        %1918 = vmatprep.subr.bf16.mxu0 %v1593
        %1919 = vmatpush1.bf16.msra.mxu0 %v1592
        %1920 = vmatprep.subr.bf16.mxu0 %v1596
        %1921 = vmatpush1.bf16.msra.mxu0 %v1595
        %1922 = vmatprep.subr.bf16.mxu0 %v1599
        %1923 = vmatpush1.bf16.msra.mxu0 %v1598
        %1924 = vmatprep.subr.bf16.mxu0 %v1602
        %1925 = vmatpush1.bf16.msra.mxu0 %v1601
        %1926 = vmatprep.subr.bf16.mxu0 %v1605
        %1927 = vmatpush1.bf16.msra.mxu0 %v1604
        %1928 = vmatprep.subr.bf16.mxu0 %v1608
        %1929 = vmatpush1.bf16.msra.mxu0 %v1607
        %1930 = vmatprep.mubr.bf16.mxu0 %v989
        %1931 = vmatmul.mubr.bf16.gmra.mrb[0].mxu0 %v988
        %v1932 = vpop.f32.mrb[0].mxu0
        %v1933 = vadd.f32 0.0, %v1932
        %v1934 = vpop.f32.mrb[0].mxu0
        %v1935 = vadd.f32 0.0, %v1934
        %v1936 = vpop.f32.mrb[0].mxu0
        %v1937 = vpop.f32.mrb[0].mxu0
        %1938 = vdwg.mxu0
        %1939 = vmatprep.subr.bf16.mxu0 %v1611
        %1940 = vmatpush1.bf16.msra.mxu0 %v1610
        %1941 = vmatprep.subr.bf16.mxu0 %v1614
        %1942 = vmatpush1.bf16.msra.mxu0 %v1613
        %1943 = vmatprep.subr.bf16.mxu0 %v1617
        %1944 = vmatpush1.bf16.msra.mxu0 %v1616
        %1945 = vmatprep.subr.bf16.mxu0 %v1620
        %1946 = vmatpush1.bf16.msra.mxu0 %v1619
        %1947 = vmatprep.subr.bf16.mxu0 %v1623
        %1948 = vmatpush1.bf16.msra.mxu0 %v1622
        %1949 = vmatprep.subr.bf16.mxu0 %v1626
        %1950 = vmatpush1.bf16.msra.mxu0 %v1625
        %1951 = vmatprep.subr.bf16.mxu0 %v1629
        %1952 = vmatpush1.bf16.msra.mxu0 %v1628
        %1953 = vmatprep.subr.bf16.mxu0 %v1632
        %1954 = vmatpush1.bf16.msra.mxu0 %v1631
        %1955 = vmatprep.subr.bf16.mxu0 %v1635
        %1956 = vmatpush1.bf16.msra.mxu0 %v1634
        %1957 = vmatprep.subr.bf16.mxu0 %v1638
        %1958 = vmatpush1.bf16.msra.mxu0 %v1637
        %1959 = vmatprep.subr.bf16.mxu0 %v1641
        %1960 = vmatpush1.bf16.msra.mxu0 %v1640
        %1961 = vmatprep.subr.bf16.mxu0 %v1644
        %1962 = vmatpush1.bf16.msra.mxu0 %v1643
        %1963 = vmatprep.subr.bf16.mxu0 %v1647
        %1964 = vmatpush1.bf16.msra.mxu0 %v1646
        %1965 = vmatprep.subr.bf16.mxu0 %v1650
        %1966 = vmatpush1.bf16.msra.mxu0 %v1649
        %1967 = vmatprep.subr.bf16.mxu0 %v1653
        %1968 = vmatpush1.bf16.msra.mxu0 %v1652
        %1969 = vmatprep.subr.bf16.mxu0 %v1656
        %1970 = vmatpush1.bf16.msra.mxu0 %v1655
        %1971 = vmatprep.mubr.bf16.mxu0 %v991
        %1972 = vmatmul.mubr.bf16.gmra.mrb[0].mxu0 %v990
        %v1973 = vpop.f32.mrb[0].mxu0
        %v1974 = vadd.f32 %v1933, %v1973
        %v1975 = vpop.f32.mrb[0].mxu0
        %v1976 = vadd.f32 %v1935, %v1975
        %v1977 = vpop.f32.mrb[0].mxu0
        %v1978 = vpop.f32.mrb[0].mxu0
        %1979 = vdwg.mxu0
        %1980 = vmatprep.subr.bf16.mxu0 %v1659
        %1981 = vmatpush1.bf16.msra.mxu0 %v1658
        %1982 = vmatprep.subr.bf16.mxu0 %v1662
        %1983 = vmatpush1.bf16.msra.mxu0 %v1661
        %1984 = vmatprep.subr.bf16.mxu0 %v1665
        %1985 = vmatpush1.bf16.msra.mxu0 %v1664
        %1986 = vmatprep.subr.bf16.mxu0 %v1668
        %1987 = vmatpush1.bf16.msra.mxu0 %v1667
        %1988 = vmatprep.subr.bf16.mxu0 %v1671
        %1989 = vmatpush1.bf16.msra.mxu0 %v1670
        %1990 = vmatprep.subr.bf16.mxu0 %v1674
        %1991 = vmatpush1.bf16.msra.mxu0 %v1673
        %1992 = vmatprep.subr.bf16.mxu0 %v1677
        %1993 = vmatpush1.bf16.msra.mxu0 %v1676
        %1994 = vmatprep.subr.bf16.mxu0 %v1680
        %1995 = vmatpush1.bf16.msra.mxu0 %v1679
        %1996 = vmatprep.subr.bf16.mxu0 %v1683
        %1997 = vmatpush1.bf16.msra.mxu0 %v1682
        %1998 = vmatprep.subr.bf16.mxu0 %v1686
        %1999 = vmatpush1.bf16.msra.mxu0 %v1685
        %2000 = vmatprep.subr.bf16.mxu0 %v1689
        %2001 = vmatpush1.bf16.msra.mxu0 %v1688
        %2002 = vmatprep.subr.bf16.mxu0 %v1692
        %2003 = vmatpush1.bf16.msra.mxu0 %v1691
        %2004 = vmatprep.subr.bf16.mxu0 %v1695
        %2005 = vmatpush1.bf16.msra.mxu0 %v1694
        %2006 = vmatprep.subr.bf16.mxu0 %v1698
        %2007 = vmatpush1.bf16.msra.mxu0 %v1697
        %2008 = vmatprep.subr.bf16.mxu0 %v1701
        %2009 = vmatpush1.bf16.msra.mxu0 %v1700
        %2010 = vmatprep.subr.bf16.mxu0 %v1704
        %2011 = vmatpush1.bf16.msra.mxu0 %v1703
        %2012 = vmatprep.mubr.bf16.mxu0 %v993
        %2013 = vmatmul.mubr.bf16.gmra.mrb[0].mxu0 %v992
        %v2014 = vpop.f32.mrb[0].mxu0
        %v2015 = vadd.f32 %v1974, %v2014
        %v2016 = vpop.f32.mrb[0].mxu0
        %v2017 = vadd.f32 %v1976, %v2016
        %v2018 = vpop.f32.mrb[0].mxu0
        %v2019 = vpop.f32.mrb[0].mxu0
        %2020 = vdwg.mxu0
        %2021 = vmatprep.subr.bf16.mxu0 %v1707
        %2022 = vmatpush1.bf16.msra.mxu0 %v1706
        %2023 = vmatprep.subr.bf16.mxu0 %v1710
        %2024 = vmatpush1.bf16.msra.mxu0 %v1709
        %2025 = vmatprep.subr.bf16.mxu0 %v1713
        %2026 = vmatpush1.bf16.msra.mxu0 %v1712
        %2027 = vmatprep.subr.bf16.mxu0 %v1716
        %2028 = vmatpush1.bf16.msra.mxu0 %v1715
        %2029 = vmatprep.subr.bf16.mxu0 %v1719
        %2030 = vmatpush1.bf16.msra.mxu0 %v1718
        %2031 = vmatprep.subr.bf16.mxu0 %v1722
        %2032 = vmatpush1.bf16.msra.mxu0 %v1721
        %2033 = vmatprep.subr.bf16.mxu0 %v1725
        %2034 = vmatpush1.bf16.msra.mxu0 %v1724
        %2035 = vmatprep.subr.bf16.mxu0 %v1728
        %2036 = vmatpush1.bf16.msra.mxu0 %v1727
        %2037 = vmatprep.subr.bf16.mxu0 0
        %2038 = vmatpush1.bf16.msra.mxu0 0
        %2039 = vmatprep.subr.bf16.mxu0 0
        %2040 = vmatpush1.bf16.msra.mxu0 0
        %2041 = vmatprep.subr.bf16.mxu0 0
        %2042 = vmatpush1.bf16.msra.mxu0 0
        %2043 = vmatprep.subr.bf16.mxu0 0
        %2044 = vmatpush1.bf16.msra.mxu0 0
        %2045 = vmatprep.subr.bf16.mxu0 0
        %2046 = vmatpush1.bf16.msra.mxu0 0
        %2047 = vmatprep.subr.bf16.mxu0 0
        %2048 = vmatpush1.bf16.msra.mxu0 0
        %2049 = vmatprep.subr.bf16.mxu0 0
        %2050 = vmatpush1.bf16.msra.mxu0 0
        %2051 = vmatprep.subr.bf16.mxu0 0
        %2052 = vmatpush1.bf16.msra.mxu0 0
        %2053 = vmatprep.mubr.bf16.mxu0 0
        %2054 = vmatmul.mubr.bf16.gmra.mrb[0].mxu0 %v994
        %v2055 = vpop.f32.mrb[0].mxu0
        %v2056 = vadd.f32 %v2015, %v2055
        %v2057 = vpop.f32.mrb[0].mxu0
        %v2058 = vadd.f32 %v2017, %v2057
        %v2059 = vpop.f32.mrb[0].mxu0
        %v2060 = vpop.f32.mrb[0].mxu0
        %2061 = vdwg.mxu0
        %2062 = vmatprep.subr.bf16.mxu0 0
        %2063 = vmatpush1.bf16.msra.mxu0 %v1564
        %2064 = vmatprep.subr.bf16.mxu0 0
        %2065 = vmatpush1.bf16.msra.mxu0 %v1567
        %2066 = vmatprep.subr.bf16.mxu0 0
        %2067 = vmatpush1.bf16.msra.mxu0 %v1570
        %2068 = vmatprep.subr.bf16.mxu0 0
        %2069 = vmatpush1.bf16.msra.mxu0 %v1573
        %2070 = vmatprep.subr.bf16.mxu0 0
        %2071 = vmatpush1.bf16.msra.mxu0 %v1576
        %2072 = vmatprep.subr.bf16.mxu0 0
        %2073 = vmatpush1.bf16.msra.mxu0 %v1579
        %2074 = vmatprep.subr.bf16.mxu0 0
        %2075 = vmatpush1.bf16.msra.mxu0 %v1582
        %2076 = vmatprep.subr.bf16.mxu0 0
        %2077 = vmatpush1.bf16.msra.mxu0 %v1585
        %2078 = vmatprep.subr.bf16.mxu0 0
        %2079 = vmatpush1.bf16.msra.mxu0 %v1588
        %2080 = vmatprep.subr.bf16.mxu0 0
        %2081 = vmatpush1.bf16.msra.mxu0 %v1591
        %2082 = vmatprep.subr.bf16.mxu0 0
        %2083 = vmatpush1.bf16.msra.mxu0 %v1594
        %2084 = vmatprep.subr.bf16.mxu0 0
        %2085 = vmatpush1.bf16.msra.mxu0 %v1597
        %2086 = vmatprep.subr.bf16.mxu0 0
        %2087 = vmatpush1.bf16.msra.mxu0 %v1600
        %2088 = vmatprep.subr.bf16.mxu0 0
        %2089 = vmatpush1.bf16.msra.mxu0 %v1603
        %2090 = vmatprep.subr.bf16.mxu0 0
        %2091 = vmatpush1.bf16.msra.mxu0 %v1606
        %2092 = vmatprep.subr.bf16.mxu0 0
        %2093 = vmatpush1.bf16.msra.mxu0 %v1609
        %2094 = vmatprep.mubr.bf16.mxu0 %v989
        %2095 = vmatmul.mubr.bf16.gmra.mrb[0].mxu0 %v988
        %v2096 = vpop.f32.mrb[0].mxu0
        %v2097 = vadd.f32 0.0, %v2096
        %v2098 = vpop.f32.mrb[0].mxu0
        %v2099 = vpop.f32.mrb[0].mxu0
        %v2100 = vpop.f32.mrb[0].mxu0
        %2101 = vdwg.mxu0
        %2102 = vmatprep.subr.bf16.mxu0 0
        %2103 = vmatpush1.bf16.msra.mxu0 %v1612
        %2104 = vmatprep.subr.bf16.mxu0 0
        %2105 = vmatpush1.bf16.msra.mxu0 %v1615
        %2106 = vmatprep.subr.bf16.mxu0 0
        %2107 = vmatpush1.bf16.msra.mxu0 %v1618
        %2108 = vmatprep.subr.bf16.mxu0 0
        %2109 = vmatpush1.bf16.msra.mxu0 %v1621
        %2110 = vmatprep.subr.bf16.mxu0 0
        %2111 = vmatpush1.bf16.msra.mxu0 %v1624
        %2112 = vmatprep.subr.bf16.mxu0 0
        %2113 = vmatpush1.bf16.msra.mxu0 %v1627
        %2114 = vmatprep.subr.bf16.mxu0 0
        %2115 = vmatpush1.bf16.msra.mxu0 %v1630
        %2116 = vmatprep.subr.bf16.mxu0 0
        %2117 = vmatpush1.bf16.msra.mxu0 %v1633
        %2118 = vmatprep.subr.bf16.mxu0 0
        %2119 = vmatpush1.bf16.msra.mxu0 %v1636
        %2120 = vmatprep.subr.bf16.mxu0 0
        %2121 = vmatpush1.bf16.msra.mxu0 %v1639
        %2122 = vmatprep.subr.bf16.mxu0 0
        %2123 = vmatpush1.bf16.msra.mxu0 %v1642
        %2124 = vmatprep.subr.bf16.mxu0 0
        %2125 = vmatpush1.bf16.msra.mxu0 %v1645
        %2126 = vmatprep.subr.bf16.mxu0 0
        %2127 = vmatpush1.bf16.msra.mxu0 %v1648
        %2128 = vmatprep.subr.bf16.mxu0 0
        %2129 = vmatpush1.bf16.msra.mxu0 %v1651
        %2130 = vmatprep.subr.bf16.mxu0 0
        %2131 = vmatpush1.bf16.msra.mxu0 %v1654
        %2132 = vmatprep.subr.bf16.mxu0 0
        %2133 = vmatpush1.bf16.msra.mxu0 %v1657
        %2134 = vmatprep.mubr.bf16.mxu0 %v991
        %2135 = vmatmul.mubr.bf16.gmra.mrb[0].mxu0 %v990
        %v2136 = vpop.f32.mrb[0].mxu0
        %v2137 = vadd.f32 %v2097, %v2136
        %v2138 = vpop.f32.mrb[0].mxu0
        %v2139 = vpop.f32.mrb[0].mxu0
        %v2140 = vpop.f32.mrb[0].mxu0
        %2141 = vdwg.mxu0
        %2142 = vmatprep.subr.bf16.mxu0 0
        %2143 = vmatpush1.bf16.msra.mxu0 %v1660
        %2144 = vmatprep.subr.bf16.mxu0 0
        %2145 = vmatpush1.bf16.msra.mxu0 %v1663
        %2146 = vmatprep.subr.bf16.mxu0 0
        %2147 = vmatpush1.bf16.msra.mxu0 %v1666
        %2148 = vmatprep.subr.bf16.mxu0 0
        %2149 = vmatpush1.bf16.msra.mxu0 %v1669
        %2150 = vmatprep.subr.bf16.mxu0 0
        %2151 = vmatpush1.bf16.msra.mxu0 %v1672
        %2152 = vmatprep.subr.bf16.mxu0 0
        %2153 = vmatpush1.bf16.msra.mxu0 %v1675
        %2154 = vmatprep.subr.bf16.mxu0 0
        %2155 = vmatpush1.bf16.msra.mxu0 %v1678
        %2156 = vmatprep.subr.bf16.mxu0 0
        %2157 = vmatpush1.bf16.msra.mxu0 %v1681
        %2158 = vmatprep.subr.bf16.mxu0 0
        %2159 = vmatpush1.bf16.msra.mxu0 %v1684
        %2160 = vmatprep.subr.bf16.mxu0 0
        %2161 = vmatpush1.bf16.msra.mxu0 %v1687
        %2162 = vmatprep.subr.bf16.mxu0 0
        %2163 = vmatpush1.bf16.msra.mxu0 %v1690
        %2164 = vmatprep.subr.bf16.mxu0 0
        %2165 = vmatpush1.bf16.msra.mxu0 %v1693
        %2166 = vmatprep.subr.bf16.mxu0 0
        %2167 = vmatpush1.bf16.msra.mxu0 %v1696
        %2168 = vmatprep.subr.bf16.mxu0 0
        %2169 = vmatpush1.bf16.msra.mxu0 %v1699
        %2170 = vmatprep.subr.bf16.mxu0 0
        %2171 = vmatpush1.bf16.msra.mxu0 %v1702
        %2172 = vmatprep.subr.bf16.mxu0 0
        %2173 = vmatpush1.bf16.msra.mxu0 %v1705
        %2174 = vmatprep.mubr.bf16.mxu0 %v993
        %2175 = vmatmul.mubr.bf16.gmra.mrb[0].mxu0 %v992
        %v2176 = vpop.f32.mrb[0].mxu0
        %v2177 = vadd.f32 %v2137, %v2176
        %v2178 = vpop.f32.mrb[0].mxu0
        %v2179 = vpop.f32.mrb[0].mxu0
        %v2180 = vpop.f32.mrb[0].mxu0
        %2181 = vdwg.mxu0
        %2182 = vmatprep.subr.bf16.mxu0 0
        %2183 = vmatpush1.bf16.msra.mxu0 %v1708
        %2184 = vmatprep.subr.bf16.mxu0 0
        %2185 = vmatpush1.bf16.msra.mxu0 %v1711
        %2186 = vmatprep.subr.bf16.mxu0 0
        %2187 = vmatpush1.bf16.msra.mxu0 %v1714
        %2188 = vmatprep.subr.bf16.mxu0 0
        %2189 = vmatpush1.bf16.msra.mxu0 %v1717
        %2190 = vmatprep.subr.bf16.mxu0 0
        %2191 = vmatpush1.bf16.msra.mxu0 %v1720
        %2192 = vmatprep.subr.bf16.mxu0 0
        %2193 = vmatpush1.bf16.msra.mxu0 %v1723
        %2194 = vmatprep.subr.bf16.mxu0 0
        %2195 = vmatpush1.bf16.msra.mxu0 %v1726
        %2196 = vmatprep.subr.bf16.mxu0 0
        %2197 = vmatpush1.bf16.msra.mxu0 %v1729
        %2198 = vmatprep.subr.bf16.mxu0 0
        %2199 = vmatpush1.bf16.msra.mxu0 0
        %2200 = vmatprep.subr.bf16.mxu0 0
        %2201 = vmatpush1.bf16.msra.mxu0 0
        %2202 = vmatprep.subr.bf16.mxu0 0
        %2203 = vmatpush1.bf16.msra.mxu0 0
        %2204 = vmatprep.subr.bf16.mxu0 0
        %2205 = vmatpush1.bf16.msra.mxu0 0
        %2206 = vmatprep.subr.bf16.mxu0 0
        %2207 = vmatpush1.bf16.msra.mxu0 0
        %2208 = vmatprep.subr.bf16.mxu0 0
        %2209 = vmatpush1.bf16.msra.mxu0 0
        %2210 = vmatprep.subr.bf16.mxu0 0
        %2211 = vmatpush1.bf16.msra.mxu0 0
        %2212 = vmatprep.subr.bf16.mxu0 0
        %2213 = vmatpush1.bf16.msra.mxu0 0
        %2214 = vmatprep.mubr.bf16.mxu0 0
        %2215 = vmatmul.mubr.bf16.gmra.mrb[0].mxu0 %v994
        %v2216 = vpop.f32.mrb[0].mxu0
        %v2217 = vadd.f32 %v2177, %v2216
        %v2218 = vpop.f32.mrb[0].mxu0
        %v2219 = vpop.f32.mrb[0].mxu0
        %v2220 = vpop.f32.mrb[0].mxu0
        %2221 = vdwg.mxu0
        %v2222 = vadd.f32 %v746, %v2056
        %v2223 = vadd.f32 %v747, %v2058
        %v2224 = vadd.f32 %v748, %v2217
        %2225 = vst [vmem:[%s736] sm:$0xff] %v2222
        %2226 = vst [vmem:[%s736 + $0x8] sm:$0xff] %v2223
        %2227 = vst [vmem:[%s736 + $0x10] sm:$0xff] %v2224
        // Predicated region
        $region63: #{branchnet_forward.6} parent=53 // pred_check
          %p2228 = pneg %p739
        $region64: #{branchnet_forward.6} parent=53 // pred_check_branch
          %2230 = sbr.rel (%p2228) target = $region66
        $region65: #{branchnet_forward.6} parent=53 // pred_region
          %v2231 = vld [vmem:[%s736] sm:$0xff]
          %v2232 = vld [vmem:[%s736 + $0x8] sm:$0xff]
          %v2233 = vld [vmem:[%s736 + $0x10] sm:$0xff]
          %v2234 = vld [vmem:[%s726] sm:$0x7]
          %v2236 = vlaneseq
          %v2237 = vshrl.u32 %v2236, 7
          %v2238 = vsub.s32 0, %v2237
          %v2239 = vrot.slane %v2234, %v2238
          %v2240 = vlaneseq
          %v2241 = vshrl.u32 %v2240, 7
          %v2242 = vsub.s32 1, %v2241
          %v2243 = vrot.slane %v2234, %v2242
          %v2244 = vlaneseq
          %v2245 = vshrl.u32 %v2244, 7
          %v2246 = vsub.s32 2, %v2245
          %v2247 = vrot.slane %v2234, %v2246
          %v2251 = vadd.f32 %v2231, %v2239
          %v2252 = vadd.f32 %v2232, %v2243
          %v2253 = vadd.f32 %v2233, %v2247
          %v2254 = vmax.f32 %v2251, 0.0
          %v2255 = vmax.f32 %v2252, 0.0
          %v2256 = vmax.f32 %v2253, 0.0
          %2257 = vst [vmem:[%s736] sm:$0xff] %v2254
          %2258 = vst [vmem:[%s736 + $0x8] sm:$0xff] %v2255
          %2259 = vst [vmem:[%s736 + $0x10] sm:$0xff] %v2256
        $region66: #{branchnet_forward.6} parent=53 // pred_fallthru
          _
        %s2260 = smul.u32 3, %s20
        %p2261 = scmp.lt.s32.totalorder %s19, 0
        %s2262 = scalar_select %p2261, %s19, 0
        %p2263 = scmp.lt.s32.totalorder %s2260, 8
        %s2264 = scalar_select %p2263, %s2260, 8
        %s2265 = smul.addr %s2262, 9
        %s2266 = sadd.s32 %s2264, %s2265
        %s2267 = smul.addr %s2266, 8
        %s2268 = scalar_lea.vmem %s3, %s2267
        // Predicated region
        $region67: #{branchnet_forward.6} parent=53 // pred_check
          %p2269 = pneg %p135
        $region68: #{branchnet_forward.6} parent=53 // pred_check_branch
          %2271 = sbr.rel (%p2269) target = $region70
        $region69: #{branchnet_forward.6} parent=53 // pred_region
          %s2272 = smul.u32 3, %s20
        $region70: #{branchnet_forward.6} parent=53 // pred_fallthru
          _
      $region54: #{branchnet_forward.6} parent=5 // pred_fallthru
        _
      %p2273 = scmp.le.s32.totalorder 2, %s9
      // Predicated region
      $region71: #{branchnet_forward.6} parent=5 // pred_check
        %p2274 = pneg %p2273
      $region72: #{branchnet_forward.6} parent=5 // pred_check_branch
        %2276 = sbr.rel (%p2274) target = $region74
      $region73: #{branchnet_forward.6} parent=5 // pred_region
        %s2277 = ssub.s32 %s9, 2
        // Predicated region
        $region75: #{branchnet_forward.6} parent=73 // pred_check
          %p2278 = pneg %p141
        $region76: #{branchnet_forward.6} parent=73 // pred_check_branch
          %2280 = sbr.rel (%p2278) target = $region78
        $region77: #{branchnet_forward.6} parent=73 // pred_region
          %s2281 = smul.u32 3, %s23
          %p2282 = scmp.lt.s32.totalorder %s22, 0
          %s2283 = scalar_select %p2282, %s22, 0
          %p2284 = scmp.lt.s32.totalorder %s2281, 8
          %s2285 = scalar_select %p2284, %s2281, 8
          %s2286 = smul.addr %s2283, 9
          %s2287 = sadd.s32 %s2285, %s2286
          %s2288 = smul.addr %s2287, 8
          %s2289 = scalar_lea.vmem %s3, %s2288
        $region78: #{branchnet_forward.6} parent=73 // pred_fallthru
          _
      $region74: #{branchnet_forward.6} parent=5 // pred_fallthru
        _
    $region6: #{branchnet_forward.6} parent=1 // loop_footer
      %s13 = sadd.s32 1, %s9
    $region7: #{branchnet_forward.6} parent=1 // loop_footer_branch
      %8 = sbr.rel target = $region3
    $region8: #{branchnet_forward.6} parent=1 // loop_exit
      _

</llo_original>
